<compile_context>
chip_gen: v7x
topology: tpu7x:2x2x1
jax: 0.10.0
libtpu: 0.0.40
codegen_flags: <defaults>
</compile_context>

<pallas_src>
import functools

import jax
import jax.numpy as jnp
import numpy as np
from jax.experimental import pallas as pl
from jax.experimental.pallas import tpu as pltpu


# ---------------------------------------------------------------------------
# Fused Pallas kernel: conv1+pool1 -> conv2+pool2 -> fc1 -> fc2 -> fc3
# ---------------------------------------------------------------------------
def _fused_forward_kernel(x_ref, m1_ref, bc1_ref, sw1_ref, sh1_ref,
                          w2_ref, bc2_ref, sw2_ref, sh2_ref,
                          wf1_ref, b3_ref, w4_ref, b4_ref, w5_ref, b5_ref,
                          o_ref, f_scr, *, batch):
    def dot(a, b):
        return jnp.dot(a, b, preferred_element_type=jnp.float32)

    for b in range(batch):                            # tiny static batch, unrolled
        x_b = x_ref[b]                                # (28, 28)

        # ---- conv1 (1->6, 5x5, VALID) + bias + ReLU -------------------------
        # rows: i in [0,24); lanes: c*24 + j  (c output channel, j width)
        c1 = dot(x_b[0:24, :], m1_ref[0])
        for di in range(1, 5):
            c1 = c1 + dot(x_b[di:di + 24, :], m1_ref[di])
        c1 = jnp.maximum(c1 + bc1_ref[...], 0.0)      # (24, 144)

        # ---- maxpool 2x2 stride 2 (even/odd selection matmuls + max) --------
        cw = jnp.maximum(dot(c1, sw1_ref[0]), dot(c1, sw1_ref[1]))    # (24, 72)
        q1 = jnp.maximum(dot(sh1_ref[0], cw), dot(sh1_ref[1], cw))    # (12, 72)

        # ---- conv2 (6->12, 5x5, VALID) + bias + ReLU ------------------------
        # input lanes: c*12 + j ; output rows: i in [0,8); lanes: oc*8 + j
        c2 = dot(q1[0:8, :], w2_ref[0])
        for di in range(1, 5):
            c2 = c2 + dot(q1[di:di + 8, :], w2_ref[di])
        c2 = jnp.maximum(c2 + bc2_ref[...], 0.0)      # (8, 96)

        # ---- maxpool 2x2 stride 2 -------------------------------------------
        ow = jnp.maximum(dot(c2, sw2_ref[0]), dot(c2, sw2_ref[1]))    # (8, 48)
        q2 = jnp.maximum(dot(sh2_ref[0], ow), dot(sh2_ref[1], ow))    # (4, 48)

        # ---- fc1 (192->50, padded to 128 lanes), summed over pooled rows ----
        f = dot(q2[0:1, :], wf1_ref[0])
        for i in range(1, 4):
            f = f + dot(q2[i:i + 1, :], wf1_ref[i])   # (1, 128)
        f_scr[pl.ds(b, 1), :] = f

    # ---- batched classifier tail: ReLU -> fc2 -> ReLU -> Dropout(id) -> fc3 -
    feat = jnp.maximum(f_scr[...] + b3_ref[...], 0.0)                 # (B, 128)
    h = jnp.maximum(dot(feat, w4_ref[...]) + b4_ref[...], 0.0)        # (B, 128)
    o_ref[...] = dot(h, w5_ref[...]) + b5_ref[...]                    # (B, 128)


# ---------------------------------------------------------------------------
# Wrapper: repack PyTorch-layout params into the matmul operands the kernel uses
# ---------------------------------------------------------------------------
def _pack_params(params):
    f32 = jnp.float32
    w1 = params["conv1_w"].astype(f32)       # (6, 1, 5, 5)
    b1 = params["conv1_b"].astype(f32)       # (6,)
    w2 = params["conv2_w"].astype(f32)       # (12, 6, 5, 5)
    b2 = params["conv2_b"].astype(f32)       # (12,)
    fc1_w = params["fc1_w"].astype(f32)      # (50, 192)
    fc1_b = params["fc1_b"].astype(f32)
    fc2_w = params["fc2_w"].astype(f32)      # (100, 50)
    fc2_b = params["fc2_b"].astype(f32)
    fc3_w = params["fc3_w"].astype(f32)      # (10, 100)
    fc3_b = params["fc3_b"].astype(f32)

    # conv1 as 5 banded matmuls: m1[di][w, c*24 + j] = w1[c, 0, di, w - j]
    e1 = jnp.stack([jnp.eye(28, 24, k=-dj, dtype=f32) for dj in range(5)])  # (5,28,24)
    m1 = jnp.einsum("cad,dwj->awcj", w1[:, 0], e1).reshape(5, 28, 6 * 24)   # (5,28,144)
    bc1 = jnp.repeat(b1, 24)[None, :]                                       # (1,144)

    # conv2 as 5 banded matmuls: w2m[di][c*12 + u, oc*8 + j] = w2[oc, c, di, u - j]
    e2 = jnp.stack([jnp.eye(12, 8, k=-dj, dtype=f32) for dj in range(5)])   # (5,12,8)
    w2m = jnp.einsum("ocad,duj->acuoj", w2, e2).reshape(5, 6 * 12, 12 * 8)  # (5,72,96)
    bc2 = jnp.repeat(b2, 8)[None, :]                                        # (1,96)

    # 2x2 max-pool even/odd selection matrices (data-independent -> jit folds them).
    sw1 = jnp.stack([jnp.kron(jnp.eye(6, dtype=f32), jnp.eye(24, dtype=f32)[:, p::2])
                     for p in (0, 1)])                                      # (2,144,72)
    sh1 = jnp.stack([jnp.eye(24, dtype=f32)[p::2, :] for p in (0, 1)])      # (2,12,24)
    sw2 = jnp.stack([jnp.kron(jnp.eye(12, dtype=f32), jnp.eye(8, dtype=f32)[:, p::2])
                     for p in (0, 1)])                                      # (2,96,48)
    sh2 = jnp.stack([jnp.eye(8, dtype=f32)[p::2, :] for p in (0, 1)])       # (2,4,8)

    # fc1 split per pooled row i: wf1[i][c*4 + j, o] = fc1_w[o, c*16 + i*4 + j]
    wf1 = fc1_w.reshape(50, 12, 4, 4).transpose(2, 1, 3, 0).reshape(4, 48, 50)
    wf1 = jnp.pad(wf1, ((0, 0), (0, 0), (0, 78)))                           # (4,48,128)
    b3 = jnp.pad(fc1_b, (0, 78))[None, :]                                   # (1,128)

    # fc2 / fc3, transposed and zero-padded to 128 lanes (lane-dense).
    w4 = jnp.pad(fc2_w.T, ((0, 78), (0, 28)))                               # (128,128)
    b4 = jnp.pad(fc2_b, (0, 28))[None, :]                                   # (1,128)
    w5 = jnp.pad(fc3_w.T, ((0, 28), (0, 118)))                              # (128,128)
    b5 = jnp.pad(fc3_b, (0, 118))[None, :]                                  # (1,128)

    return (m1, bc1, sw1, sh1, w2m, bc2, sw2, sh2, wf1, b3, w4, b4, w5, b5)


@jax.jit
def model_fashion_forward(x, params):
    """x: (B, 1, 28, 28) float32 -> logits (B, 10)."""
    B = x.shape[0]
    x2 = x.reshape(B, 28, 28).astype(jnp.float32)
    ops = _pack_params(params)

    out = pl.pallas_call(
        functools.partial(_fused_forward_kernel, batch=B),
        out_shape=jax.ShapeDtypeStruct((B, 128), jnp.float32),
        scratch_shapes=[pltpu.VMEM((B, 128), jnp.float32)],
    )(x2, *ops)
    return out[:, :10]


# ---------------------------------------------------------------------------
# Pure-JAX reference (test only; high precision so it is a tight reference)
# ---------------------------------------------------------------------------
def maxpool2x2(x):
    B, C, H, W = x.shape
    return x.reshape(B, C, H // 2, 2, W // 2, 2).max(axis=(3, 5))


def reference_forward(x, params):
    dn = ("NCHW", "OIHW", "NCHW")
    prec = jax.lax.Precision.HIGHEST
    h = jax.lax.conv_general_dilated(x, params["conv1_w"], (1, 1), "VALID",
                                     dimension_numbers=dn, precision=prec)
    h = jnp.maximum(h + params["conv1_b"][None, :, None, None], 0.0)
    h = maxpool2x2(h)
    h = jax.lax.conv_general_dilated(h, params["conv2_w"], (1, 1), "VALID",
                                     dimension_numbers=dn, precision=prec)
    h = jnp.maximum(h + params["conv2_b"][None, :, None, None], 0.0)
    h = maxpool2x2(h)
    flat = h.reshape(h.shape[0], -1)
    h = jnp.maximum(jnp.dot(flat, params["fc1_w"].T, precision=prec) + params["fc1_b"], 0.0)
    h = jnp.maximum(jnp.dot(h, params["fc2_w"].T, precision=prec) + params["fc2_b"], 0.0)
    return jnp.dot(h, params["fc3_w"].T, precision=prec) + params["fc3_b"]


# ---------------------------------------------------------------------------
# Deterministic parameter init (PyTorch-style uniform fan-in bounds)
# ---------------------------------------------------------------------------
def init_params(key):
    ks = jax.random.split(key, 10)

    def uni(k, shape, fan_in):
        bound = 1.0 / np.sqrt(fan_in)
        return jax.random.uniform(k, shape, jnp.float32, -bound, bound)

    return {
        "conv1_w": uni(ks[0], (6, 1, 5, 5), 1 * 5 * 5),
        "conv1_b": uni(ks[1], (6,), 1 * 5 * 5),
        "conv2_w": uni(ks[2], (12, 6, 5, 5), 6 * 5 * 5),
        "conv2_b": uni(ks[3], (12,), 6 * 5 * 5),
        "fc1_w": uni(ks[4], (50, 192), 192),    # nn.Linear weight layout: (out, in)
        "fc1_b": uni(ks[5], (50,), 192),
        "fc2_w": uni(ks[6], (100, 50), 50),
        "fc2_b": uni(ks[7], (100,), 50),
        "fc3_w": uni(ks[8], (10, 100), 100),
        "fc3_b": uni(ks[9], (10,), 100),
    }


if __name__ == "__main__":
    root = jax.random.PRNGKey(0)
    k_params, k_input = jax.random.split(root)

    params = init_params(k_params)
    # FashionMNIST-style input: batch=2, 1 channel, 28x28 (required so that the
    # flattened feature map is 12*4*4 = 192).
    x = jax.random.normal(k_input, (2, 1, 28, 28), dtype=jnp.float32)

    out = jax.block_until_ready(model_fashion_forward(x, params))
    ref = jax.block_until_ready(reference_forward(x, params))

    assert out.shape == (2, 10), out.shape
    # Kernel uses default (bf16-pass, f32-accumulate) MXU precision per review;
    # tolerance reflects that while still catching any real bug.
    np.testing.assert_allclose(np.asarray(out), np.asarray(ref), rtol=2e-2, atol=2e-2)

    print("KERNEL_OK")
</pallas_src>

<mosaic_0001>
module attributes {stable_mosaic.version = 11 : i64} {
  func.func @_fused_forward_kernel(%arg0: memref<2x28x28xf32, #tpu.memory_space<vmem>>, %arg1: memref<5x28x144xf32, #tpu.memory_space<vmem>>, %arg2: memref<1x144xf32, #tpu.memory_space<vmem>>, %arg3: memref<2x144x72xf32, #tpu.memory_space<vmem>>, %arg4: memref<2x12x24xf32, #tpu.memory_space<vmem>>, %arg5: memref<5x72x96xf32, #tpu.memory_space<vmem>>, %arg6: memref<1x96xf32, #tpu.memory_space<vmem>>, %arg7: memref<2x96x48xf32, #tpu.memory_space<vmem>>, %arg8: memref<2x4x8xf32, #tpu.memory_space<vmem>>, %arg9: memref<4x48x128xf32, #tpu.memory_space<vmem>>, %arg10: memref<1x128xf32, #tpu.memory_space<vmem>>, %arg11: memref<128x128xf32, #tpu.memory_space<vmem>>, %arg12: memref<1x128xf32, #tpu.memory_space<vmem>>, %arg13: memref<128x128xf32, #tpu.memory_space<vmem>>, %arg14: memref<1x128xf32, #tpu.memory_space<vmem>>, %arg15: memref<2x128xf32, #tpu.memory_space<vmem>>, %arg16: memref<2x128xf32, #tpu.memory_space<vmem>>) attributes {dimension_semantics = [], scalar_prefetch = 0 : i64, scratch_operands = 1 : i64, tpu.core_type = #tpu.core_type<tc>} {
    %c0 = arith.constant 0 : index
    %c0_0 = arith.constant 0 : index
    %c0_1 = arith.constant 0 : index
    %0 = vector.load %arg0[%c0, %c0_0, %c0_1] : memref<2x28x28xf32, #tpu.memory_space<vmem>>, vector<1x28x28xf32>
    %1 = vector.shape_cast %0 : vector<1x28x28xf32> to vector<28x28xf32>
    %2 = vector.extract_strided_slice %1 {offsets = [0, 0], sizes = [24, 28], strides = [1, 1]} : vector<28x28xf32> to vector<24x28xf32>
    %c0_2 = arith.constant 0 : index
    %c0_3 = arith.constant 0 : index
    %c0_4 = arith.constant 0 : index
    %3 = vector.load %arg1[%c0_2, %c0_3, %c0_4] : memref<5x28x144xf32, #tpu.memory_space<vmem>>, vector<1x28x144xf32>
    %4 = vector.shape_cast %3 : vector<1x28x144xf32> to vector<28x144xf32>
    %cst = arith.constant dense<0.000000e+00> : vector<24x144xf32>
    %5 = tpu.matmul %2, %4, %cst {dimension_numbers = #tpu.dot_dimension_numbers<[1], [0], [0], [1], [0, 0, 1, 1], [], []>} : vector<24x28xf32>, vector<28x144xf32>, vector<24x144xf32> -> vector<24x144xf32>
    %6 = vector.extract_strided_slice %1 {offsets = [1, 0], sizes = [24, 28], strides = [1, 1]} : vector<28x28xf32> to vector<24x28xf32>
    %c1 = arith.constant 1 : index
    %c0_5 = arith.constant 0 : index
    %c0_6 = arith.constant 0 : index
    %7 = vector.load %arg1[%c1, %c0_5, %c0_6] : memref<5x28x144xf32, #tpu.memory_space<vmem>>, vector<1x28x144xf32>
    %8 = vector.shape_cast %7 : vector<1x28x144xf32> to vector<28x144xf32>
    %cst_7 = arith.constant dense<0.000000e+00> : vector<24x144xf32>
    %9 = tpu.matmul %6, %8, %cst_7 {dimension_numbers = #tpu.dot_dimension_numbers<[1], [0], [0], [1], [0, 0, 1, 1], [], []>} : vector<24x28xf32>, vector<28x144xf32>, vector<24x144xf32> -> vector<24x144xf32>
    %10 = arith.addf %5, %9 : vector<24x144xf32>
    %11 = vector.extract_strided_slice %1 {offsets = [2, 0], sizes = [24, 28], strides = [1, 1]} : vector<28x28xf32> to vector<24x28xf32>
    %c2 = arith.constant 2 : index
    %c0_8 = arith.constant 0 : index
    %c0_9 = arith.constant 0 : index
    %12 = vector.load %arg1[%c2, %c0_8, %c0_9] : memref<5x28x144xf32, #tpu.memory_space<vmem>>, vector<1x28x144xf32>
    %13 = vector.shape_cast %12 : vector<1x28x144xf32> to vector<28x144xf32>
    %cst_10 = arith.constant dense<0.000000e+00> : vector<24x144xf32>
    %14 = tpu.matmul %11, %13, %cst_10 {dimension_numbers = #tpu.dot_dimension_numbers<[1], [0], [0], [1], [0, 0, 1, 1], [], []>} : vector<24x28xf32>, vector<28x144xf32>, vector<24x144xf32> -> vector<24x144xf32>
    %15 = arith.addf %10, %14 : vector<24x144xf32>
    %16 = vector.extract_strided_slice %1 {offsets = [3, 0], sizes = [24, 28], strides = [1, 1]} : vector<28x28xf32> to vector<24x28xf32>
    %c3 = arith.constant 3 : index
    %c0_11 = arith.constant 0 : index
    %c0_12 = arith.constant 0 : index
    %17 = vector.load %arg1[%c3, %c0_11, %c0_12] : memref<5x28x144xf32, #tpu.memory_space<vmem>>, vector<1x28x144xf32>
    %18 = vector.shape_cast %17 : vector<1x28x144xf32> to vector<28x144xf32>
    %cst_13 = arith.constant dense<0.000000e+00> : vector<24x144xf32>
    %19 = tpu.matmul %16, %18, %cst_13 {dimension_numbers = #tpu.dot_dimension_numbers<[1], [0], [0], [1], [0, 0, 1, 1], [], []>} : vector<24x28xf32>, vector<28x144xf32>, vector<24x144xf32> -> vector<24x144xf32>
    %20 = arith.addf %15, %19 : vector<24x144xf32>
    %21 = vector.extract_strided_slice %1 {offsets = [4, 0], sizes = [24, 28], strides = [1, 1]} : vector<28x28xf32> to vector<24x28xf32>
    %c4 = arith.constant 4 : index
    %c0_14 = arith.constant 0 : index
    %c0_15 = arith.constant 0 : index
    %22 = vector.load %arg1[%c4, %c0_14, %c0_15] : memref<5x28x144xf32, #tpu.memory_space<vmem>>, vector<1x28x144xf32>
    %23 = vector.shape_cast %22 : vector<1x28x144xf32> to vector<28x144xf32>
    %cst_16 = arith.constant dense<0.000000e+00> : vector<24x144xf32>
    %24 = tpu.matmul %21, %23, %cst_16 {dimension_numbers = #tpu.dot_dimension_numbers<[1], [0], [0], [1], [0, 0, 1, 1], [], []>} : vector<24x28xf32>, vector<28x144xf32>, vector<24x144xf32> -> vector<24x144xf32>
    %25 = arith.addf %20, %24 : vector<24x144xf32>
    %c0_17 = arith.constant 0 : index
    %c0_18 = arith.constant 0 : index
    %26 = vector.load %arg2[%c0_17, %c0_18] : memref<1x144xf32, #tpu.memory_space<vmem>>, vector<1x144xf32>
    %27 = vector.broadcast %26 : vector<1x144xf32> to vector<24x144xf32>
    %28 = arith.addf %25, %27 : vector<24x144xf32>
    %cst_19 = arith.constant 0.000000e+00 : f32
    %29 = vector.broadcast %cst_19 : f32 to vector<24x144xf32>
    %30 = arith.maximumf %28, %29 : vector<24x144xf32>
    %c0_20 = arith.constant 0 : index
    %c0_21 = arith.constant 0 : index
    %c0_22 = arith.constant 0 : index
    %31 = vector.load %arg3[%c0_20, %c0_21, %c0_22] : memref<2x144x72xf32, #tpu.memory_space<vmem>>, vector<1x144x72xf32>
    %32 = vector.shape_cast %31 : vector<1x144x72xf32> to vector<144x72xf32>
    %cst_23 = arith.constant dense<0.000000e+00> : vector<24x72xf32>
    %33 = tpu.matmul %30, %32, %cst_23 {dimension_numbers = #tpu.dot_dimension_numbers<[1], [0], [0], [1], [0, 0, 1, 1], [], []>} : vector<24x144xf32>, vector<144x72xf32>, vector<24x72xf32> -> vector<24x72xf32>
    %c1_24 = arith.constant 1 : index
    %c0_25 = arith.constant 0 : index
    %c0_26 = arith.constant 0 : index
    %34 = vector.load %arg3[%c1_24, %c0_25, %c0_26] : memref<2x144x72xf32, #tpu.memory_space<vmem>>, vector<1x144x72xf32>
    %35 = vector.shape_cast %34 : vector<1x144x72xf32> to vector<144x72xf32>
    %cst_27 = arith.constant dense<0.000000e+00> : vector<24x72xf32>
    %36 = tpu.matmul %30, %35, %cst_27 {dimension_numbers = #tpu.dot_dimension_numbers<[1], [0], [0], [1], [0, 0, 1, 1], [], []>} : vector<24x144xf32>, vector<144x72xf32>, vector<24x72xf32> -> vector<24x72xf32>
    %37 = arith.maximumf %33, %36 : vector<24x72xf32>
    %c0_28 = arith.constant 0 : index
    %c0_29 = arith.constant 0 : index
    %c0_30 = arith.constant 0 : index
    %38 = vector.load %arg4[%c0_28, %c0_29, %c0_30] : memref<2x12x24xf32, #tpu.memory_space<vmem>>, vector<1x12x24xf32>
    %39 = vector.shape_cast %38 : vector<1x12x24xf32> to vector<12x24xf32>
    %cst_31 = arith.constant dense<0.000000e+00> : vector<12x72xf32>
    %40 = tpu.matmul %39, %37, %cst_31 {dimension_numbers = #tpu.dot_dimension_numbers<[1], [0], [0], [1], [0, 0, 1, 1], [], []>} : vector<12x24xf32>, vector<24x72xf32>, vector<12x72xf32> -> vector<12x72xf32>
    %c1_32 = arith.constant 1 : index
    %c0_33 = arith.constant 0 : index
    %c0_34 = arith.constant 0 : index
    %41 = vector.load %arg4[%c1_32, %c0_33, %c0_34] : memref<2x12x24xf32, #tpu.memory_space<vmem>>, vector<1x12x24xf32>
    %42 = vector.shape_cast %41 : vector<1x12x24xf32> to vector<12x24xf32>
    %cst_35 = arith.constant dense<0.000000e+00> : vector<12x72xf32>
    %43 = tpu.matmul %42, %37, %cst_35 {dimension_numbers = #tpu.dot_dimension_numbers<[1], [0], [0], [1], [0, 0, 1, 1], [], []>} : vector<12x24xf32>, vector<24x72xf32>, vector<12x72xf32> -> vector<12x72xf32>
    %44 = arith.maximumf %40, %43 : vector<12x72xf32>
    %45 = vector.extract_strided_slice %44 {offsets = [0, 0], sizes = [8, 72], strides = [1, 1]} : vector<12x72xf32> to vector<8x72xf32>
    %c0_36 = arith.constant 0 : index
    %c0_37 = arith.constant 0 : index
    %c0_38 = arith.constant 0 : index
    %46 = vector.load %arg5[%c0_36, %c0_37, %c0_38] : memref<5x72x96xf32, #tpu.memory_space<vmem>>, vector<1x72x96xf32>
    %47 = vector.shape_cast %46 : vector<1x72x96xf32> to vector<72x96xf32>
    %cst_39 = arith.constant dense<0.000000e+00> : vector<8x96xf32>
    %48 = tpu.matmul %45, %47, %cst_39 {dimension_numbers = #tpu.dot_dimension_numbers<[1], [0], [0], [1], [0, 0, 1, 1], [], []>} : vector<8x72xf32>, vector<72x96xf32>, vector<8x96xf32> -> vector<8x96xf32>
    %49 = vector.extract_strided_slice %44 {offsets = [1, 0], sizes = [8, 72], strides = [1, 1]} : vector<12x72xf32> to vector<8x72xf32>
    %c1_40 = arith.constant 1 : index
    %c0_41 = arith.constant 0 : index
    %c0_42 = arith.constant 0 : index
    %50 = vector.load %arg5[%c1_40, %c0_41, %c0_42] : memref<5x72x96xf32, #tpu.memory_space<vmem>>, vector<1x72x96xf32>
    %51 = vector.shape_cast %50 : vector<1x72x96xf32> to vector<72x96xf32>
    %cst_43 = arith.constant dense<0.000000e+00> : vector<8x96xf32>
    %52 = tpu.matmul %49, %51, %cst_43 {dimension_numbers = #tpu.dot_dimension_numbers<[1], [0], [0], [1], [0, 0, 1, 1], [], []>} : vector<8x72xf32>, vector<72x96xf32>, vector<8x96xf32> -> vector<8x96xf32>
    %53 = arith.addf %48, %52 : vector<8x96xf32>
    %54 = vector.extract_strided_slice %44 {offsets = [2, 0], sizes = [8, 72], strides = [1, 1]} : vector<12x72xf32> to vector<8x72xf32>
    %c2_44 = arith.constant 2 : index
    %c0_45 = arith.constant 0 : index
    %c0_46 = arith.constant 0 : index
    %55 = vector.load %arg5[%c2_44, %c0_45, %c0_46] : memref<5x72x96xf32, #tpu.memory_space<vmem>>, vector<1x72x96xf32>
    %56 = vector.shape_cast %55 : vector<1x72x96xf32> to vector<72x96xf32>
    %cst_47 = arith.constant dense<0.000000e+00> : vector<8x96xf32>
    %57 = tpu.matmul %54, %56, %cst_47 {dimension_numbers = #tpu.dot_dimension_numbers<[1], [0], [0], [1], [0, 0, 1, 1], [], []>} : vector<8x72xf32>, vector<72x96xf32>, vector<8x96xf32> -> vector<8x96xf32>
    %58 = arith.addf %53, %57 : vector<8x96xf32>
    %59 = vector.extract_strided_slice %44 {offsets = [3, 0], sizes = [8, 72], strides = [1, 1]} : vector<12x72xf32> to vector<8x72xf32>
    %c3_48 = arith.constant 3 : index
    %c0_49 = arith.constant 0 : index
    %c0_50 = arith.constant 0 : index
    %60 = vector.load %arg5[%c3_48, %c0_49, %c0_50] : memref<5x72x96xf32, #tpu.memory_space<vmem>>, vector<1x72x96xf32>
    %61 = vector.shape_cast %60 : vector<1x72x96xf32> to vector<72x96xf32>
    %cst_51 = arith.constant dense<0.000000e+00> : vector<8x96xf32>
    %62 = tpu.matmul %59, %61, %cst_51 {dimension_numbers = #tpu.dot_dimension_numbers<[1], [0], [0], [1], [0, 0, 1, 1], [], []>} : vector<8x72xf32>, vector<72x96xf32>, vector<8x96xf32> -> vector<8x96xf32>
    %63 = arith.addf %58, %62 : vector<8x96xf32>
    %64 = vector.extract_strided_slice %44 {offsets = [4, 0], sizes = [8, 72], strides = [1, 1]} : vector<12x72xf32> to vector<8x72xf32>
    %c4_52 = arith.constant 4 : index
    %c0_53 = arith.constant 0 : index
    %c0_54 = arith.constant 0 : index
    %65 = vector.load %arg5[%c4_52, %c0_53, %c0_54] : memref<5x72x96xf32, #tpu.memory_space<vmem>>, vector<1x72x96xf32>
    %66 = vector.shape_cast %65 : vector<1x72x96xf32> to vector<72x96xf32>
    %cst_55 = arith.constant dense<0.000000e+00> : vector<8x96xf32>
    %67 = tpu.matmul %64, %66, %cst_55 {dimension_numbers = #tpu.dot_dimension_numbers<[1], [0], [0], [1], [0, 0, 1, 1], [], []>} : vector<8x72xf32>, vector<72x96xf32>, vector<8x96xf32> -> vector<8x96xf32>
    %68 = arith.addf %63, %67 : vector<8x96xf32>
    %c0_56 = arith.constant 0 : index
    %c0_57 = arith.constant 0 : index
    %69 = vector.load %arg6[%c0_56, %c0_57] : memref<1x96xf32, #tpu.memory_space<vmem>>, vector<1x96xf32>
    %70 = vector.broadcast %69 : vector<1x96xf32> to vector<8x96xf32>
    %71 = arith.addf %68, %70 : vector<8x96xf32>
    %cst_58 = arith.constant 0.000000e+00 : f32
    %72 = vector.broadcast %cst_58 : f32 to vector<8x96xf32>
    %73 = arith.maximumf %71, %72 : vector<8x96xf32>
    %c0_59 = arith.constant 0 : index
    %c0_60 = arith.constant 0 : index
    %c0_61 = arith.constant 0 : index
    %74 = vector.load %arg7[%c0_59, %c0_60, %c0_61] : memref<2x96x48xf32, #tpu.memory_space<vmem>>, vector<1x96x48xf32>
    %75 = vector.shape_cast %74 : vector<1x96x48xf32> to vector<96x48xf32>
    %cst_62 = arith.constant dense<0.000000e+00> : vector<8x48xf32>
    %76 = tpu.matmul %73, %75, %cst_62 {dimension_numbers = #tpu.dot_dimension_numbers<[1], [0], [0], [1], [0, 0, 1, 1], [], []>} : vector<8x96xf32>, vector<96x48xf32>, vector<8x48xf32> -> vector<8x48xf32>
    %c1_63 = arith.constant 1 : index
    %c0_64 = arith.constant 0 : index
    %c0_65 = arith.constant 0 : index
    %77 = vector.load %arg7[%c1_63, %c0_64, %c0_65] : memref<2x96x48xf32, #tpu.memory_space<vmem>>, vector<1x96x48xf32>
    %78 = vector.shape_cast %77 : vector<1x96x48xf32> to vector<96x48xf32>
    %cst_66 = arith.constant dense<0.000000e+00> : vector<8x48xf32>
    %79 = tpu.matmul %73, %78, %cst_66 {dimension_numbers = #tpu.dot_dimension_numbers<[1], [0], [0], [1], [0, 0, 1, 1], [], []>} : vector<8x96xf32>, vector<96x48xf32>, vector<8x48xf32> -> vector<8x48xf32>
    %80 = arith.maximumf %76, %79 : vector<8x48xf32>
    %c0_67 = arith.constant 0 : index
    %c0_68 = arith.constant 0 : index
    %c0_69 = arith.constant 0 : index
    %81 = vector.load %arg8[%c0_67, %c0_68, %c0_69] : memref<2x4x8xf32, #tpu.memory_space<vmem>>, vector<1x4x8xf32>
    %82 = vector.shape_cast %81 : vector<1x4x8xf32> to vector<4x8xf32>
    %cst_70 = arith.constant dense<0.000000e+00> : vector<4x48xf32>
    %83 = tpu.matmul %82, %80, %cst_70 {dimension_numbers = #tpu.dot_dimension_numbers<[1], [0], [0], [1], [0, 0, 1, 1], [], []>} : vector<4x8xf32>, vector<8x48xf32>, vector<4x48xf32> -> vector<4x48xf32>
    %c1_71 = arith.constant 1 : index
    %c0_72 = arith.constant 0 : index
    %c0_73 = arith.constant 0 : index
    %84 = vector.load %arg8[%c1_71, %c0_72, %c0_73] : memref<2x4x8xf32, #tpu.memory_space<vmem>>, vector<1x4x8xf32>
    %85 = vector.shape_cast %84 : vector<1x4x8xf32> to vector<4x8xf32>
    %cst_74 = arith.constant dense<0.000000e+00> : vector<4x48xf32>
    %86 = tpu.matmul %85, %80, %cst_74 {dimension_numbers = #tpu.dot_dimension_numbers<[1], [0], [0], [1], [0, 0, 1, 1], [], []>} : vector<4x8xf32>, vector<8x48xf32>, vector<4x48xf32> -> vector<4x48xf32>
    %87 = arith.maximumf %83, %86 : vector<4x48xf32>
    %88 = vector.extract_strided_slice %87 {offsets = [0, 0], sizes = [1, 48], strides = [1, 1]} : vector<4x48xf32> to vector<1x48xf32>
    %c0_75 = arith.constant 0 : index
    %c0_76 = arith.constant 0 : index
    %c0_77 = arith.constant 0 : index
    %89 = vector.load %arg9[%c0_75, %c0_76, %c0_77] : memref<4x48x128xf32, #tpu.memory_space<vmem>>, vector<1x48x128xf32>
    %90 = vector.shape_cast %89 : vector<1x48x128xf32> to vector<48x128xf32>
    %cst_78 = arith.constant dense<0.000000e+00> : vector<1x128xf32>
    %91 = tpu.matmul %88, %90, %cst_78 {dimension_numbers = #tpu.dot_dimension_numbers<[1], [0], [0], [1], [0, 0, 1, 1], [], []>} : vector<1x48xf32>, vector<48x128xf32>, vector<1x128xf32> -> vector<1x128xf32>
    %92 = vector.extract_strided_slice %87 {offsets = [1, 0], sizes = [1, 48], strides = [1, 1]} : vector<4x48xf32> to vector<1x48xf32>
    %c1_79 = arith.constant 1 : index
    %c0_80 = arith.constant 0 : index
    %c0_81 = arith.constant 0 : index
    %93 = vector.load %arg9[%c1_79, %c0_80, %c0_81] : memref<4x48x128xf32, #tpu.memory_space<vmem>>, vector<1x48x128xf32>
    %94 = vector.shape_cast %93 : vector<1x48x128xf32> to vector<48x128xf32>
    %cst_82 = arith.constant dense<0.000000e+00> : vector<1x128xf32>
    %95 = tpu.matmul %92, %94, %cst_82 {dimension_numbers = #tpu.dot_dimension_numbers<[1], [0], [0], [1], [0, 0, 1, 1], [], []>} : vector<1x48xf32>, vector<48x128xf32>, vector<1x128xf32> -> vector<1x128xf32>
    %96 = arith.addf %91, %95 : vector<1x128xf32>
    %97 = vector.extract_strided_slice %87 {offsets = [2, 0], sizes = [1, 48], strides = [1, 1]} : vector<4x48xf32> to vector<1x48xf32>
    %c2_83 = arith.constant 2 : index
    %c0_84 = arith.constant 0 : index
    %c0_85 = arith.constant 0 : index
    %98 = vector.load %arg9[%c2_83, %c0_84, %c0_85] : memref<4x48x128xf32, #tpu.memory_space<vmem>>, vector<1x48x128xf32>
    %99 = vector.shape_cast %98 : vector<1x48x128xf32> to vector<48x128xf32>
    %cst_86 = arith.constant dense<0.000000e+00> : vector<1x128xf32>
    %100 = tpu.matmul %97, %99, %cst_86 {dimension_numbers = #tpu.dot_dimension_numbers<[1], [0], [0], [1], [0, 0, 1, 1], [], []>} : vector<1x48xf32>, vector<48x128xf32>, vector<1x128xf32> -> vector<1x128xf32>
    %101 = arith.addf %96, %100 : vector<1x128xf32>
    %102 = vector.extract_strided_slice %87 {offsets = [3, 0], sizes = [1, 48], strides = [1, 1]} : vector<4x48xf32> to vector<1x48xf32>
    %c3_87 = arith.constant 3 : index
    %c0_88 = arith.constant 0 : index
    %c0_89 = arith.constant 0 : index
    %103 = vector.load %arg9[%c3_87, %c0_88, %c0_89] : memref<4x48x128xf32, #tpu.memory_space<vmem>>, vector<1x48x128xf32>
    %104 = vector.shape_cast %103 : vector<1x48x128xf32> to vector<48x128xf32>
    %cst_90 = arith.constant dense<0.000000e+00> : vector<1x128xf32>
    %105 = tpu.matmul %102, %104, %cst_90 {dimension_numbers = #tpu.dot_dimension_numbers<[1], [0], [0], [1], [0, 0, 1, 1], [], []>} : vector<1x48xf32>, vector<48x128xf32>, vector<1x128xf32> -> vector<1x128xf32>
    %106 = arith.addf %101, %105 : vector<1x128xf32>
    %c0_91 = arith.constant 0 : index
    %c0_92 = arith.constant 0 : index
    %107 = vector.load %arg16[%c0_91, %c0_92] : memref<2x128xf32, #tpu.memory_space<vmem>>, vector<1x128xf32>
    tpu.vector_store %arg16[%c0_91, %c0_92], %106 {strides = array<i32>} : memref<2x128xf32, #tpu.memory_space<vmem>>, vector<1x128xf32>,
    %c1_93 = arith.constant 1 : index
    %c0_94 = arith.constant 0 : index
    %c0_95 = arith.constant 0 : index
    %108 = vector.load %arg0[%c1_93, %c0_94, %c0_95] : memref<2x28x28xf32, #tpu.memory_space<vmem>>, vector<1x28x28xf32>
    %109 = vector.shape_cast %108 : vector<1x28x28xf32> to vector<28x28xf32>
    %110 = vector.extract_strided_slice %109 {offsets = [0, 0], sizes = [24, 28], strides = [1, 1]} : vector<28x28xf32> to vector<24x28xf32>
    %c0_96 = arith.constant 0 : index
    %c0_97 = arith.constant 0 : index
    %c0_98 = arith.constant 0 : index
    %111 = vector.load %arg1[%c0_96, %c0_97, %c0_98] : memref<5x28x144xf32, #tpu.memory_space<vmem>>, vector<1x28x144xf32>
    %112 = vector.shape_cast %111 : vector<1x28x144xf32> to vector<28x144xf32>
    %cst_99 = arith.constant dense<0.000000e+00> : vector<24x144xf32>
    %113 = tpu.matmul %110, %112, %cst_99 {dimension_numbers = #tpu.dot_dimension_numbers<[1], [0], [0], [1], [0, 0, 1, 1], [], []>} : vector<24x28xf32>, vector<28x144xf32>, vector<24x144xf32> -> vector<24x144xf32>
    %114 = vector.extract_strided_slice %109 {offsets = [1, 0], sizes = [24, 28], strides = [1, 1]} : vector<28x28xf32> to vector<24x28xf32>
    %c1_100 = arith.constant 1 : index
    %c0_101 = arith.constant 0 : index
    %c0_102 = arith.constant 0 : index
    %115 = vector.load %arg1[%c1_100, %c0_101, %c0_102] : memref<5x28x144xf32, #tpu.memory_space<vmem>>, vector<1x28x144xf32>
    %116 = vector.shape_cast %115 : vector<1x28x144xf32> to vector<28x144xf32>
    %cst_103 = arith.constant dense<0.000000e+00> : vector<24x144xf32>
    %117 = tpu.matmul %114, %116, %cst_103 {dimension_numbers = #tpu.dot_dimension_numbers<[1], [0], [0], [1], [0, 0, 1, 1], [], []>} : vector<24x28xf32>, vector<28x144xf32>, vector<24x144xf32> -> vector<24x144xf32>
    %118 = arith.addf %113, %117 : vector<24x144xf32>
    %119 = vector.extract_strided_slice %109 {offsets = [2, 0], sizes = [24, 28], strides = [1, 1]} : vector<28x28xf32> to vector<24x28xf32>
    %c2_104 = arith.constant 2 : index
    %c0_105 = arith.constant 0 : index
    %c0_106 = arith.constant 0 : index
    %120 = vector.load %arg1[%c2_104, %c0_105, %c0_106] : memref<5x28x144xf32, #tpu.memory_space<vmem>>, vector<1x28x144xf32>
    %121 = vector.shape_cast %120 : vector<1x28x144xf32> to vector<28x144xf32>
    %cst_107 = arith.constant dense<0.000000e+00> : vector<24x144xf32>
    %122 = tpu.matmul %119, %121, %cst_107 {dimension_numbers = #tpu.dot_dimension_numbers<[1], [0], [0], [1], [0, 0, 1, 1], [], []>} : vector<24x28xf32>, vector<28x144xf32>, vector<24x144xf32> -> vector<24x144xf32>
    %123 = arith.addf %118, %122 : vector<24x144xf32>
    %124 = vector.extract_strided_slice %109 {offsets = [3, 0], sizes = [24, 28], strides = [1, 1]} : vector<28x28xf32> to vector<24x28xf32>
    %c3_108 = arith.constant 3 : index
    %c0_109 = arith.constant 0 : index
    %c0_110 = arith.constant 0 : index
    %125 = vector.load %arg1[%c3_108, %c0_109, %c0_110] : memref<5x28x144xf32, #tpu.memory_space<vmem>>, vector<1x28x144xf32>
    %126 = vector.shape_cast %125 : vector<1x28x144xf32> to vector<28x144xf32>
    %cst_111 = arith.constant dense<0.000000e+00> : vector<24x144xf32>
    %127 = tpu.matmul %124, %126, %cst_111 {dimension_numbers = #tpu.dot_dimension_numbers<[1], [0], [0], [1], [0, 0, 1, 1], [], []>} : vector<24x28xf32>, vector<28x144xf32>, vector<24x144xf32> -> vector<24x144xf32>
    %128 = arith.addf %123, %127 : vector<24x144xf32>
    %129 = vector.extract_strided_slice %109 {offsets = [4, 0], sizes = [24, 28], strides = [1, 1]} : vector<28x28xf32> to vector<24x28xf32>
    %c4_112 = arith.constant 4 : index
    %c0_113 = arith.constant 0 : index
    %c0_114 = arith.constant 0 : index
    %130 = vector.load %arg1[%c4_112, %c0_113, %c0_114] : memref<5x28x144xf32, #tpu.memory_space<vmem>>, vector<1x28x144xf32>
    %131 = vector.shape_cast %130 : vector<1x28x144xf32> to vector<28x144xf32>
    %cst_115 = arith.constant dense<0.000000e+00> : vector<24x144xf32>
    %132 = tpu.matmul %129, %131, %cst_115 {dimension_numbers = #tpu.dot_dimension_numbers<[1], [0], [0], [1], [0, 0, 1, 1], [], []>} : vector<24x28xf32>, vector<28x144xf32>, vector<24x144xf32> -> vector<24x144xf32>
    %133 = arith.addf %128, %132 : vector<24x144xf32>
    %c0_116 = arith.constant 0 : index
    %c0_117 = arith.constant 0 : index
    %134 = vector.load %arg2[%c0_116, %c0_117] : memref<1x144xf32, #tpu.memory_space<vmem>>, vector<1x144xf32>
    %135 = vector.broadcast %134 : vector<1x144xf32> to vector<24x144xf32>
    %136 = arith.addf %133, %135 : vector<24x144xf32>
    %cst_118 = arith.constant 0.000000e+00 : f32
    %137 = vector.broadcast %cst_118 : f32 to vector<24x144xf32>
    %138 = arith.maximumf %136, %137 : vector<24x144xf32>
    %c0_119 = arith.constant 0 : index
    %c0_120 = arith.constant 0 : index
    %c0_121 = arith.constant 0 : index
    %139 = vector.load %arg3[%c0_119, %c0_120, %c0_121] : memref<2x144x72xf32, #tpu.memory_space<vmem>>, vector<1x144x72xf32>
    %140 = vector.shape_cast %139 : vector<1x144x72xf32> to vector<144x72xf32>
    %cst_122 = arith.constant dense<0.000000e+00> : vector<24x72xf32>
    %141 = tpu.matmul %138, %140, %cst_122 {dimension_numbers = #tpu.dot_dimension_numbers<[1], [0], [0], [1], [0, 0, 1, 1], [], []>} : vector<24x144xf32>, vector<144x72xf32>, vector<24x72xf32> -> vector<24x72xf32>
    %c1_123 = arith.constant 1 : index
    %c0_124 = arith.constant 0 : index
    %c0_125 = arith.constant 0 : index
    %142 = vector.load %arg3[%c1_123, %c0_124, %c0_125] : memref<2x144x72xf32, #tpu.memory_space<vmem>>, vector<1x144x72xf32>
    %143 = vector.shape_cast %142 : vector<1x144x72xf32> to vector<144x72xf32>
    %cst_126 = arith.constant dense<0.000000e+00> : vector<24x72xf32>
    %144 = tpu.matmul %138, %143, %cst_126 {dimension_numbers = #tpu.dot_dimension_numbers<[1], [0], [0], [1], [0, 0, 1, 1], [], []>} : vector<24x144xf32>, vector<144x72xf32>, vector<24x72xf32> -> vector<24x72xf32>
    %145 = arith.maximumf %141, %144 : vector<24x72xf32>
    %c0_127 = arith.constant 0 : index
    %c0_128 = arith.constant 0 : index
    %c0_129 = arith.constant 0 : index
    %146 = vector.load %arg4[%c0_127, %c0_128, %c0_129] : memref<2x12x24xf32, #tpu.memory_space<vmem>>, vector<1x12x24xf32>
    %147 = vector.shape_cast %146 : vector<1x12x24xf32> to vector<12x24xf32>
    %cst_130 = arith.constant dense<0.000000e+00> : vector<12x72xf32>
    %148 = tpu.matmul %147, %145, %cst_130 {dimension_numbers = #tpu.dot_dimension_numbers<[1], [0], [0], [1], [0, 0, 1, 1], [], []>} : vector<12x24xf32>, vector<24x72xf32>, vector<12x72xf32> -> vector<12x72xf32>
    %c1_131 = arith.constant 1 : index
    %c0_132 = arith.constant 0 : index
    %c0_133 = arith.constant 0 : index
    %149 = vector.load %arg4[%c1_131, %c0_132, %c0_133] : memref<2x12x24xf32, #tpu.memory_space<vmem>>, vector<1x12x24xf32>
    %150 = vector.shape_cast %149 : vector<1x12x24xf32> to vector<12x24xf32>
    %cst_134 = arith.constant dense<0.000000e+00> : vector<12x72xf32>
    %151 = tpu.matmul %150, %145, %cst_134 {dimension_numbers = #tpu.dot_dimension_numbers<[1], [0], [0], [1], [0, 0, 1, 1], [], []>} : vector<12x24xf32>, vector<24x72xf32>, vector<12x72xf32> -> vector<12x72xf32>
    %152 = arith.maximumf %148, %151 : vector<12x72xf32>
    %153 = vector.extract_strided_slice %152 {offsets = [0, 0], sizes = [8, 72], strides = [1, 1]} : vector<12x72xf32> to vector<8x72xf32>
    %c0_135 = arith.constant 0 : index
    %c0_136 = arith.constant 0 : index
    %c0_137 = arith.constant 0 : index
    %154 = vector.load %arg5[%c0_135, %c0_136, %c0_137] : memref<5x72x96xf32, #tpu.memory_space<vmem>>, vector<1x72x96xf32>
    %155 = vector.shape_cast %154 : vector<1x72x96xf32> to vector<72x96xf32>
    %cst_138 = arith.constant dense<0.000000e+00> : vector<8x96xf32>
    %156 = tpu.matmul %153, %155, %cst_138 {dimension_numbers = #tpu.dot_dimension_numbers<[1], [0], [0], [1], [0, 0, 1, 1], [], []>} : vector<8x72xf32>, vector<72x96xf32>, vector<8x96xf32> -> vector<8x96xf32>
    %157 = vector.extract_strided_slice %152 {offsets = [1, 0], sizes = [8, 72], strides = [1, 1]} : vector<12x72xf32> to vector<8x72xf32>
    %c1_139 = arith.constant 1 : index
    %c0_140 = arith.constant 0 : index
    %c0_141 = arith.constant 0 : index
    %158 = vector.load %arg5[%c1_139, %c0_140, %c0_141] : memref<5x72x96xf32, #tpu.memory_space<vmem>>, vector<1x72x96xf32>
    %159 = vector.shape_cast %158 : vector<1x72x96xf32> to vector<72x96xf32>
    %cst_142 = arith.constant dense<0.000000e+00> : vector<8x96xf32>
    %160 = tpu.matmul %157, %159, %cst_142 {dimension_numbers = #tpu.dot_dimension_numbers<[1], [0], [0], [1], [0, 0, 1, 1], [], []>} : vector<8x72xf32>, vector<72x96xf32>, vector<8x96xf32> -> vector<8x96xf32>
    %161 = arith.addf %156, %160 : vector<8x96xf32>
    %162 = vector.extract_strided_slice %152 {offsets = [2, 0], sizes = [8, 72], strides = [1, 1]} : vector<12x72xf32> to vector<8x72xf32>
    %c2_143 = arith.constant 2 : index
    %c0_144 = arith.constant 0 : index
    %c0_145 = arith.constant 0 : index
    %163 = vector.load %arg5[%c2_143, %c0_144, %c0_145] : memref<5x72x96xf32, #tpu.memory_space<vmem>>, vector<1x72x96xf32>
    %164 = vector.shape_cast %163 : vector<1x72x96xf32> to vector<72x96xf32>
    %cst_146 = arith.constant dense<0.000000e+00> : vector<8x96xf32>
    %165 = tpu.matmul %162, %164, %cst_146 {dimension_numbers = #tpu.dot_dimension_numbers<[1], [0], [0], [1], [0, 0, 1, 1], [], []>} : vector<8x72xf32>, vector<72x96xf32>, vector<8x96xf32> -> vector<8x96xf32>
    %166 = arith.addf %161, %165 : vector<8x96xf32>
    %167 = vector.extract_strided_slice %152 {offsets = [3, 0], sizes = [8, 72], strides = [1, 1]} : vector<12x72xf32> to vector<8x72xf32>
    %c3_147 = arith.constant 3 : index
    %c0_148 = arith.constant 0 : index
    %c0_149 = arith.constant 0 : index
    %168 = vector.load %arg5[%c3_147, %c0_148, %c0_149] : memref<5x72x96xf32, #tpu.memory_space<vmem>>, vector<1x72x96xf32>
    %169 = vector.shape_cast %168 : vector<1x72x96xf32> to vector<72x96xf32>
    %cst_150 = arith.constant dense<0.000000e+00> : vector<8x96xf32>
    %170 = tpu.matmul %167, %169, %cst_150 {dimension_numbers = #tpu.dot_dimension_numbers<[1], [0], [0], [1], [0, 0, 1, 1], [], []>} : vector<8x72xf32>, vector<72x96xf32>, vector<8x96xf32> -> vector<8x96xf32>
    %171 = arith.addf %166, %170 : vector<8x96xf32>
    %172 = vector.extract_strided_slice %152 {offsets = [4, 0], sizes = [8, 72], strides = [1, 1]} : vector<12x72xf32> to vector<8x72xf32>
    %c4_151 = arith.constant 4 : index
    %c0_152 = arith.constant 0 : index
    %c0_153 = arith.constant 0 : index
    %173 = vector.load %arg5[%c4_151, %c0_152, %c0_153] : memref<5x72x96xf32, #tpu.memory_space<vmem>>, vector<1x72x96xf32>
    %174 = vector.shape_cast %173 : vector<1x72x96xf32> to vector<72x96xf32>
    %cst_154 = arith.constant dense<0.000000e+00> : vector<8x96xf32>
    %175 = tpu.matmul %172, %174, %cst_154 {dimension_numbers = #tpu.dot_dimension_numbers<[1], [0], [0], [1], [0, 0, 1, 1], [], []>} : vector<8x72xf32>, vector<72x96xf32>, vector<8x96xf32> -> vector<8x96xf32>
    %176 = arith.addf %171, %175 : vector<8x96xf32>
    %c0_155 = arith.constant 0 : index
    %c0_156 = arith.constant 0 : index
    %177 = vector.load %arg6[%c0_155, %c0_156] : memref<1x96xf32, #tpu.memory_space<vmem>>, vector<1x96xf32>
    %178 = vector.broadcast %177 : vector<1x96xf32> to vector<8x96xf32>
    %179 = arith.addf %176, %178 : vector<8x96xf32>
    %cst_157 = arith.constant 0.000000e+00 : f32
    %180 = vector.broadcast %cst_157 : f32 to vector<8x96xf32>
    %181 = arith.maximumf %179, %180 : vector<8x96xf32>
    %c0_158 = arith.constant 0 : index
    %c0_159 = arith.constant 0 : index
    %c0_160 = arith.constant 0 : index
    %182 = vector.load %arg7[%c0_158, %c0_159, %c0_160] : memref<2x96x48xf32, #tpu.memory_space<vmem>>, vector<1x96x48xf32>
    %183 = vector.shape_cast %182 : vector<1x96x48xf32> to vector<96x48xf32>
    %cst_161 = arith.constant dense<0.000000e+00> : vector<8x48xf32>
    %184 = tpu.matmul %181, %183, %cst_161 {dimension_numbers = #tpu.dot_dimension_numbers<[1], [0], [0], [1], [0, 0, 1, 1], [], []>} : vector<8x96xf32>, vector<96x48xf32>, vector<8x48xf32> -> vector<8x48xf32>
    %c1_162 = arith.constant 1 : index
    %c0_163 = arith.constant 0 : index
    %c0_164 = arith.constant 0 : index
    %185 = vector.load %arg7[%c1_162, %c0_163, %c0_164] : memref<2x96x48xf32, #tpu.memory_space<vmem>>, vector<1x96x48xf32>
    %186 = vector.shape_cast %185 : vector<1x96x48xf32> to vector<96x48xf32>
    %cst_165 = arith.constant dense<0.000000e+00> : vector<8x48xf32>
    %187 = tpu.matmul %181, %186, %cst_165 {dimension_numbers = #tpu.dot_dimension_numbers<[1], [0], [0], [1], [0, 0, 1, 1], [], []>} : vector<8x96xf32>, vector<96x48xf32>, vector<8x48xf32> -> vector<8x48xf32>
    %188 = arith.maximumf %184, %187 : vector<8x48xf32>
    %c0_166 = arith.constant 0 : index
    %c0_167 = arith.constant 0 : index
    %c0_168 = arith.constant 0 : index
    %189 = vector.load %arg8[%c0_166, %c0_167, %c0_168] : memref<2x4x8xf32, #tpu.memory_space<vmem>>, vector<1x4x8xf32>
    %190 = vector.shape_cast %189 : vector<1x4x8xf32> to vector<4x8xf32>
    %cst_169 = arith.constant dense<0.000000e+00> : vector<4x48xf32>
    %191 = tpu.matmul %190, %188, %cst_169 {dimension_numbers = #tpu.dot_dimension_numbers<[1], [0], [0], [1], [0, 0, 1, 1], [], []>} : vector<4x8xf32>, vector<8x48xf32>, vector<4x48xf32> -> vector<4x48xf32>
    %c1_170 = arith.constant 1 : index
    %c0_171 = arith.constant 0 : index
    %c0_172 = arith.constant 0 : index
    %192 = vector.load %arg8[%c1_170, %c0_171, %c0_172] : memref<2x4x8xf32, #tpu.memory_space<vmem>>, vector<1x4x8xf32>
    %193 = vector.shape_cast %192 : vector<1x4x8xf32> to vector<4x8xf32>
    %cst_173 = arith.constant dense<0.000000e+00> : vector<4x48xf32>
    %194 = tpu.matmul %193, %188, %cst_173 {dimension_numbers = #tpu.dot_dimension_numbers<[1], [0], [0], [1], [0, 0, 1, 1], [], []>} : vector<4x8xf32>, vector<8x48xf32>, vector<4x48xf32> -> vector<4x48xf32>
    %195 = arith.maximumf %191, %194 : vector<4x48xf32>
    %196 = vector.extract_strided_slice %195 {offsets = [0, 0], sizes = [1, 48], strides = [1, 1]} : vector<4x48xf32> to vector<1x48xf32>
    %c0_174 = arith.constant 0 : index
    %c0_175 = arith.constant 0 : index
    %c0_176 = arith.constant 0 : index
    %197 = vector.load %arg9[%c0_174, %c0_175, %c0_176] : memref<4x48x128xf32, #tpu.memory_space<vmem>>, vector<1x48x128xf32>
    %198 = vector.shape_cast %197 : vector<1x48x128xf32> to vector<48x128xf32>
    %cst_177 = arith.constant dense<0.000000e+00> : vector<1x128xf32>
    %199 = tpu.matmul %196, %198, %cst_177 {dimension_numbers = #tpu.dot_dimension_numbers<[1], [0], [0], [1], [0, 0, 1, 1], [], []>} : vector<1x48xf32>, vector<48x128xf32>, vector<1x128xf32> -> vector<1x128xf32>
    %200 = vector.extract_strided_slice %195 {offsets = [1, 0], sizes = [1, 48], strides = [1, 1]} : vector<4x48xf32> to vector<1x48xf32>
    %c1_178 = arith.constant 1 : index
    %c0_179 = arith.constant 0 : index
    %c0_180 = arith.constant 0 : index
    %201 = vector.load %arg9[%c1_178, %c0_179, %c0_180] : memref<4x48x128xf32, #tpu.memory_space<vmem>>, vector<1x48x128xf32>
    %202 = vector.shape_cast %201 : vector<1x48x128xf32> to vector<48x128xf32>
    %cst_181 = arith.constant dense<0.000000e+00> : vector<1x128xf32>
    %203 = tpu.matmul %200, %202, %cst_181 {dimension_numbers = #tpu.dot_dimension_numbers<[1], [0], [0], [1], [0, 0, 1, 1], [], []>} : vector<1x48xf32>, vector<48x128xf32>, vector<1x128xf32> -> vector<1x128xf32>
    %204 = arith.addf %199, %203 : vector<1x128xf32>
    %205 = vector.extract_strided_slice %195 {offsets = [2, 0], sizes = [1, 48], strides = [1, 1]} : vector<4x48xf32> to vector<1x48xf32>
    %c2_182 = arith.constant 2 : index
    %c0_183 = arith.constant 0 : index
    %c0_184 = arith.constant 0 : index
    %206 = vector.load %arg9[%c2_182, %c0_183, %c0_184] : memref<4x48x128xf32, #tpu.memory_space<vmem>>, vector<1x48x128xf32>
    %207 = vector.shape_cast %206 : vector<1x48x128xf32> to vector<48x128xf32>
    %cst_185 = arith.constant dense<0.000000e+00> : vector<1x128xf32>
    %208 = tpu.matmul %205, %207, %cst_185 {dimension_numbers = #tpu.dot_dimension_numbers<[1], [0], [0], [1], [0, 0, 1, 1], [], []>} : vector<1x48xf32>, vector<48x128xf32>, vector<1x128xf32> -> vector<1x128xf32>
    %209 = arith.addf %204, %208 : vector<1x128xf32>
    %210 = vector.extract_strided_slice %195 {offsets = [3, 0], sizes = [1, 48], strides = [1, 1]} : vector<4x48xf32> to vector<1x48xf32>
    %c3_186 = arith.constant 3 : index
    %c0_187 = arith.constant 0 : index
    %c0_188 = arith.constant 0 : index
    %211 = vector.load %arg9[%c3_186, %c0_187, %c0_188] : memref<4x48x128xf32, #tpu.memory_space<vmem>>, vector<1x48x128xf32>
    %212 = vector.shape_cast %211 : vector<1x48x128xf32> to vector<48x128xf32>
    %cst_189 = arith.constant dense<0.000000e+00> : vector<1x128xf32>
    %213 = tpu.matmul %210, %212, %cst_189 {dimension_numbers = #tpu.dot_dimension_numbers<[1], [0], [0], [1], [0, 0, 1, 1], [], []>} : vector<1x48xf32>, vector<48x128xf32>, vector<1x128xf32> -> vector<1x128xf32>
    %214 = arith.addf %209, %213 : vector<1x128xf32>
    %c1_190 = arith.constant 1 : index
    %c0_191 = arith.constant 0 : index
    %215 = vector.load %arg16[%c1_190, %c0_191] : memref<2x128xf32, #tpu.memory_space<vmem>>, vector<1x128xf32>
    tpu.vector_store %arg16[%c1_190, %c0_191], %214 {strides = array<i32>} : memref<2x128xf32, #tpu.memory_space<vmem>>, vector<1x128xf32>,
    %c0_192 = arith.constant 0 : index
    %c0_193 = arith.constant 0 : index
    %216 = vector.load %arg16[%c0_192, %c0_193] : memref<2x128xf32, #tpu.memory_space<vmem>>, vector<2x128xf32>
    %c0_194 = arith.constant 0 : index
    %c0_195 = arith.constant 0 : index
    %217 = vector.load %arg10[%c0_194, %c0_195] : memref<1x128xf32, #tpu.memory_space<vmem>>, vector<1x128xf32>
    %218 = vector.broadcast %217 : vector<1x128xf32> to vector<2x128xf32>
    %219 = arith.addf %216, %218 : vector<2x128xf32>
    %cst_196 = arith.constant 0.000000e+00 : f32
    %220 = vector.broadcast %cst_196 : f32 to vector<2x128xf32>
    %221 = arith.maximumf %219, %220 : vector<2x128xf32>
    %c0_197 = arith.constant 0 : index
    %c0_198 = arith.constant 0 : index
    %222 = vector.load %arg11[%c0_197, %c0_198] : memref<128x128xf32, #tpu.memory_space<vmem>>, vector<128x128xf32>
    %cst_199 = arith.constant dense<0.000000e+00> : vector<2x128xf32>
    %223 = tpu.matmul %221, %222, %cst_199 {dimension_numbers = #tpu.dot_dimension_numbers<[1], [0], [0], [1], [0, 0, 1, 1], [], []>} : vector<2x128xf32>, vector<128x128xf32>, vector<2x128xf32> -> vector<2x128xf32>
    %c0_200 = arith.constant 0 : index
    %c0_201 = arith.constant 0 : index
    %224 = vector.load %arg12[%c0_200, %c0_201] : memref<1x128xf32, #tpu.memory_space<vmem>>, vector<1x128xf32>
    %225 = vector.broadcast %224 : vector<1x128xf32> to vector<2x128xf32>
    %226 = arith.addf %223, %225 : vector<2x128xf32>
    %cst_202 = arith.constant 0.000000e+00 : f32
    %227 = vector.broadcast %cst_202 : f32 to vector<2x128xf32>
    %228 = arith.maximumf %226, %227 : vector<2x128xf32>
    %c0_203 = arith.constant 0 : index
    %c0_204 = arith.constant 0 : index
    %229 = vector.load %arg13[%c0_203, %c0_204] : memref<128x128xf32, #tpu.memory_space<vmem>>, vector<128x128xf32>
    %cst_205 = arith.constant dense<0.000000e+00> : vector<2x128xf32>
    %230 = tpu.matmul %228, %229, %cst_205 {dimension_numbers = #tpu.dot_dimension_numbers<[1], [0], [0], [1], [0, 0, 1, 1], [], []>} : vector<2x128xf32>, vector<128x128xf32>, vector<2x128xf32> -> vector<2x128xf32>
    %c0_206 = arith.constant 0 : index
    %c0_207 = arith.constant 0 : index
    %231 = vector.load %arg14[%c0_206, %c0_207] : memref<1x128xf32, #tpu.memory_space<vmem>>, vector<1x128xf32>
    %232 = vector.broadcast %231 : vector<1x128xf32> to vector<2x128xf32>
    %233 = arith.addf %230, %232 : vector<2x128xf32>
    %c0_208 = arith.constant 0 : index
    %c0_209 = arith.constant 0 : index
    %234 = vector.load %arg15[%c0_208, %c0_209] : memref<2x128xf32, #tpu.memory_space<vmem>>, vector<2x128xf32>
    tpu.vector_store %arg15[%c0_208, %c0_209], %233 {strides = array<i32>} : memref<2x128xf32, #tpu.memory_space<vmem>>, vector<2x128xf32>,
    return
  }
}

</mosaic_0001>

<llo_original>
// kernel: model_fashion_forward.1
$region0: #{model_fashion_forward.1}
  #allocation0 [shape = 'u32[]', space=smem, size = 0x4, offset = 0x4, fixed_abs, tag = 'smem constant byte address 0x4 - core index']
  #allocation1 [shape = 'u32[144,128]{1,0:T(1,128)}', space=vmem, size = 0x12000, scoped, tag = 'internal scratch']
  #allocation2 [shape = 'f32[2,128]{1,0:T(2,128)}', space=vmem, size = 0x400, scoped, tag = 'scratch operand']
  %s0 = inlined_call_operand.vmem [shape: f32[2,28,28], index: 0, kind: input, shape index: {}]
  %s1 = inlined_call_operand.vmem [shape: f32[5,28,144], index: 1, kind: input, shape index: {}]
  %s2 = inlined_call_operand.vmem [shape: f32[1,144], index: 2, kind: input, shape index: {}]
  %s3 = inlined_call_operand.vmem [shape: f32[2,144,72], index: 3, kind: input, shape index: {}]
  %s4 = inlined_call_operand.vmem [shape: f32[2,12,24], index: 4, kind: input, shape index: {}]
  %s5 = inlined_call_operand.vmem [shape: f32[5,72,96], index: 5, kind: input, shape index: {}]
  %s6 = inlined_call_operand.vmem [shape: f32[1,96], index: 6, kind: input, shape index: {}]
  %s7 = inlined_call_operand.vmem [shape: f32[2,96,48], index: 7, kind: input, shape index: {}]
  %s8 = inlined_call_operand.vmem [shape: f32[2,4,8], index: 8, kind: input, shape index: {}]
  %s9 = inlined_call_operand.vmem [shape: f32[4,48,128], index: 9, kind: input, shape index: {}]
  %s10 = inlined_call_operand.vmem [shape: f32[1,128], index: 10, kind: input, shape index: {}]
  %s11 = inlined_call_operand.vmem [shape: f32[128,128], index: 11, kind: input, shape index: {}]
  %s12 = inlined_call_operand.vmem [shape: f32[1,128], index: 12, kind: input, shape index: {}]
  %s13 = inlined_call_operand.vmem [shape: f32[128,128], index: 13, kind: input, shape index: {}]
  %s14 = inlined_call_operand.vmem [shape: f32[1,128], index: 14, kind: input, shape index: {}]
  %s15 = inlined_call_operand.hbm [shape: f32[2,128], index: 15, kind: output, shape index: {}]
  %s16 = sld [smem:[#allocation0]]
  $region70: #{model_fashion_forward.1} parent=0
    _
  %s18 = ssub.s32 1, %s16
  %s19 = scalar_select 0, %s18, %s16
  $region1: #{model_fashion_forward.1} parent=0
    #allocation3 [shape = 'u8[1024]{0}', space=vmem, size = 0x400, scoped, tag = 'output window, operand 0, single buffered']
    #allocation4 [shape = 's32[1]{0}', space=sflag, size = 0x4, scoped, tag = 'scoped memory for model_fashion_forward.1']
    %20 = vsyncpa [#allocation4], 0
    // Predicated region
    $region2: #{model_fashion_forward.1} parent=1 // pred_check
      _
    $region3: #{model_fashion_forward.1} parent=1 // pred_check_branch
      %22 = sbr.rel (0) target = $region5
    $region4: #{model_fashion_forward.1} parent=1 // pred_region
      _
    $region5: #{model_fashion_forward.1} parent=1 // pred_fallthru
      _
    // Predicated region
    $region6: #{model_fashion_forward.1} parent=1 // pred_check
      _
    $region7: #{model_fashion_forward.1} parent=1 // pred_check_branch
      %24 = sbr.rel (0) target = $region9
    $region8: #{model_fashion_forward.1} parent=1 // pred_region
      _
    $region9: #{model_fashion_forward.1} parent=1 // pred_fallthru
      _
    // Predicated region
    $region10: #{model_fashion_forward.1} parent=1 // pred_check
      _
    $region11: #{model_fashion_forward.1} parent=1 // pred_check_branch
      %26 = sbr.rel (0) target = $region13
    $region12: #{model_fashion_forward.1} parent=1 // pred_region
      _
    $region13: #{model_fashion_forward.1} parent=1 // pred_fallthru
      _
    // Predicated region
    $region14: #{model_fashion_forward.1} parent=1 // pred_check
      _
    $region15: #{model_fashion_forward.1} parent=1 // pred_check_branch
      %28 = sbr.rel (0) target = $region17
    $region16: #{model_fashion_forward.1} parent=1 // pred_region
      _
    $region17: #{model_fashion_forward.1} parent=1 // pred_fallthru
      _
    // Predicated region
    $region18: #{model_fashion_forward.1} parent=1 // pred_check
      _
    $region19: #{model_fashion_forward.1} parent=1 // pred_check_branch
      %30 = sbr.rel (0) target = $region21
    $region20: #{model_fashion_forward.1} parent=1 // pred_region
      _
    $region21: #{model_fashion_forward.1} parent=1 // pred_fallthru
      _
    // Predicated region
    $region22: #{model_fashion_forward.1} parent=1 // pred_check
      _
    $region23: #{model_fashion_forward.1} parent=1 // pred_check_branch
      %32 = sbr.rel (0) target = $region25
    $region24: #{model_fashion_forward.1} parent=1 // pred_region
      _
    $region25: #{model_fashion_forward.1} parent=1 // pred_fallthru
      _
    // Predicated region
    $region26: #{model_fashion_forward.1} parent=1 // pred_check
      _
    $region27: #{model_fashion_forward.1} parent=1 // pred_check_branch
      %34 = sbr.rel (0) target = $region29
    $region28: #{model_fashion_forward.1} parent=1 // pred_region
      _
    $region29: #{model_fashion_forward.1} parent=1 // pred_fallthru
      _
    // Predicated region
    $region30: #{model_fashion_forward.1} parent=1 // pred_check
      _
    $region31: #{model_fashion_forward.1} parent=1 // pred_check_branch
      %36 = sbr.rel (0) target = $region33
    $region32: #{model_fashion_forward.1} parent=1 // pred_region
      _
    $region33: #{model_fashion_forward.1} parent=1 // pred_fallthru
      _
    // Predicated region
    $region34: #{model_fashion_forward.1} parent=1 // pred_check
      _
    $region35: #{model_fashion_forward.1} parent=1 // pred_check_branch
      %38 = sbr.rel (0) target = $region37
    $region36: #{model_fashion_forward.1} parent=1 // pred_region
      _
    $region37: #{model_fashion_forward.1} parent=1 // pred_fallthru
      _
    // Predicated region
    $region38: #{model_fashion_forward.1} parent=1 // pred_check
      _
    $region39: #{model_fashion_forward.1} parent=1 // pred_check_branch
      %40 = sbr.rel (0) target = $region41
    $region40: #{model_fashion_forward.1} parent=1 // pred_region
      _
    $region41: #{model_fashion_forward.1} parent=1 // pred_fallthru
      _
    // Predicated region
    $region42: #{model_fashion_forward.1} parent=1 // pred_check
      _
    $region43: #{model_fashion_forward.1} parent=1 // pred_check_branch
      %42 = sbr.rel (0) target = $region45
    $region44: #{model_fashion_forward.1} parent=1 // pred_region
      _
    $region45: #{model_fashion_forward.1} parent=1 // pred_fallthru
      _
    // Predicated region
    $region46: #{model_fashion_forward.1} parent=1 // pred_check
      _
    $region47: #{model_fashion_forward.1} parent=1 // pred_check_branch
      %44 = sbr.rel (0) target = $region49
    $region48: #{model_fashion_forward.1} parent=1 // pred_region
      _
    $region49: #{model_fashion_forward.1} parent=1 // pred_fallthru
      _
    // Predicated region
    $region50: #{model_fashion_forward.1} parent=1 // pred_check
      _
    $region51: #{model_fashion_forward.1} parent=1 // pred_check_branch
      %46 = sbr.rel (0) target = $region53
    $region52: #{model_fashion_forward.1} parent=1 // pred_region
      _
    $region53: #{model_fashion_forward.1} parent=1 // pred_fallthru
      _
    // Predicated region
    $region54: #{model_fashion_forward.1} parent=1 // pred_check
      _
    $region55: #{model_fashion_forward.1} parent=1 // pred_check_branch
      %48 = sbr.rel (0) target = $region57
    $region56: #{model_fashion_forward.1} parent=1 // pred_region
      _
    $region57: #{model_fashion_forward.1} parent=1 // pred_fallthru
      _
    // Predicated region
    $region58: #{model_fashion_forward.1} parent=1 // pred_check
      _
    $region59: #{model_fashion_forward.1} parent=1 // pred_check_branch
      %50 = sbr.rel (0) target = $region61
    $region60: #{model_fashion_forward.1} parent=1 // pred_region
      _
    $region61: #{model_fashion_forward.1} parent=1 // pred_fallthru
      _
    %v51 = vld [vmem:[%s0] sm:$0xff]
    %v52 = vld [vmem:[%s0 + $0x8] sm:$0xff]
    %v53 = vld [vmem:[%s0 + $0x10] sm:$0xff]
    %v54 = vld [vmem:[%s0 + $0x18] sm:$0xf]
    %v55 = vld [vmem:[%s1] sm:$0xff]
    %v56 = vld [vmem:[%s1 + $0x8] sm:$0xff]
    %v57 = vld [vmem:[%s1 + $0x10] sm:$0xff]
    %v58 = vld [vmem:[%s1 + $0x18] sm:$0xff]
    %v59 = vld [vmem:[%s1 + $0x20] sm:$0xff]
    %v60 = vld [vmem:[%s1 + $0x28] sm:$0xff]
    %v61 = vld [vmem:[%s1 + $0x30] sm:$0xf]
    %v62 = vld [vmem:[%s1 + $0x38] sm:$0xf]
    %s63 = scalar_lea.vmem %s1, 64
    %v64 = vld [vmem:[%s63] sm:$0xff]
    %v65 = vld [vmem:[%s63 + $0x8] sm:$0xff]
    %v66 = vld [vmem:[%s63 + $0x10] sm:$0xff]
    %v67 = vld [vmem:[%s63 + $0x18] sm:$0xff]
    %v68 = vld [vmem:[%s63 + $0x20] sm:$0xff]
    %v69 = vld [vmem:[%s63 + $0x28] sm:$0xff]
    %v70 = vld [vmem:[%s63 + $0x30] sm:$0xf]
    %v71 = vld [vmem:[%s63 + $0x38] sm:$0xf]
    %vm76 = vcmask 1046528
    %v77 = vrot.slane %v51, 1
    %v78 = vrot.slane %v52, 1
    %v79 = vsel %vm76, %v77, %v78
    %v80 = vrot.slane %v53, 1
    %v81 = vsel %vm76, %v78, %v80
    %v82 = vrot.slane %v54, 1
    %v83 = vsel %vm76, %v80, %v82
    %vm84 = vcmask 228352
    %v85 = vsel %vm84, %v79, 0
    %v87 = vsel %vm84, %v81, 0
    %v89 = vsel %vm84, %v83, 0
    %vm91 = vcmask 1043456
    %v93 = vsel %vm91, %v70, 0
    %v96 = vsel %vm91, %v71, 0
    %98 = vmatprep.subr.mxu0 %v65
    %99 = vmatpush1.msra.mxu0 %v64
    %100 = vmatprep.subr.mxu0 %v67
    %101 = vmatpush1.msra.mxu0 %v66
    %102 = vmatprep.subr.mxu0 %v69
    %103 = vmatpush1.msra.mxu0 %v68
    %104 = vmatprep.subr.mxu0 %v96
    %105 = vmatpush1.msra.mxu0 %v93
    %106 = vmatprep.subr.mxu0 0.0
    %107 = vmatpush1.msra.mxu0 0.0
    %108 = vmatprep.subr.mxu0 0.0
    %109 = vmatpush1.msra.mxu0 0.0
    %110 = vmatprep.subr.mxu0 0.0
    %111 = vmatpush1.msra.mxu0 0.0
    %112 = vmatprep.subr.mxu0 0.0
    %113 = vmatpush1.msra.mxu0 0.0
    %114 = vmatprep.subr.mxu0 0.0
    %115 = vmatpush1.msra.mxu0 0.0
    %116 = vmatprep.subr.mxu0 0.0
    %117 = vmatpush1.msra.mxu0 0.0
    %118 = vmatprep.subr.mxu0 0.0
    %119 = vmatpush1.msra.mxu0 0.0
    %120 = vmatprep.subr.mxu0 0.0
    %121 = vmatpush1.msra.mxu0 0.0
    %122 = vmatprep.subr.mxu0 0.0
    %123 = vmatpush1.msra.mxu0 0.0
    %124 = vmatprep.subr.mxu0 0.0
    %125 = vmatpush1.msra.mxu0 0.0
    %126 = vmatprep.subr.mxu0 0.0
    %127 = vmatpush1.msra.mxu0 0.0
    %128 = vmatprep.subr.mxu0 0.0
    %129 = vmatpush1.msra.mxu0 0.0
    %130 = vmatprep.subr.mxu0 0.0
    %131 = vmatpush1.msra.mxu0 0.0
    %132 = vmatprep.subr.mxu0 0.0
    %133 = vmatpush1.msra.mxu0 0.0
    %134 = vmatprep.subr.mxu0 0.0
    %135 = vmatpush1.msra.mxu0 0.0
    %136 = vmatprep.subr.mxu0 0.0
    %137 = vmatpush1.msra.mxu0 0.0
    %138 = vmatprep.subr.mxu0 0.0
    %139 = vmatpush1.msra.mxu0 0.0
    %140 = vmatprep.subr.mxu0 0.0
    %141 = vmatpush1.msra.mxu0 0.0
    %142 = vmatprep.subr.mxu0 0.0
    %143 = vmatpush1.msra.mxu0 0.0
    %144 = vmatprep.subr.mxu0 0.0
    %145 = vmatpush1.msra.mxu0 0.0
    %146 = vmatprep.subr.mxu0 0.0
    %147 = vmatpush1.msra.mxu0 0.0
    %148 = vmatprep.subr.mxu0 0.0
    %149 = vmatpush1.msra.mxu0 0.0
    %150 = vmatprep.subr.mxu0 0.0
    %151 = vmatpush1.msra.mxu0 0.0
    %152 = vmatprep.subr.mxu0 0.0
    %153 = vmatpush1.msra.mxu0 0.0
    %154 = vmatprep.subr.mxu0 0.0
    %155 = vmatpush1.msra.mxu0 0.0
    %156 = vmatprep.subr.mxu0 0.0
    %157 = vmatpush1.msra.mxu0 0.0
    %158 = vmatprep.subr.mxu0 0.0
    %159 = vmatpush1.msra.mxu0 0.0
    %160 = vmatprep.subr.mxu0 0.0
    %161 = vmatpush1.msra.mxu0 0.0
    %162 = vmatprep.mubr.f32.mxu0 0.0
    %163 = vmatmul.mubr.f32.gmra.mrb[0].mxu0 %v85
    %v164 = vpop.f32.mrb[0].mxu0
    %v165 = vadd.f32 0.0, %v164
    %v166 = vpop.f32.mrb[0].mxu0
    %v167 = vadd.f32 0.0, %v166
    %168 = vmatprep.mubr.f32.mxu0 0.0
    %169 = vmatmul.mubr.f32.gmra.mrb[0].mxu0 %v87
    %v170 = vpop.f32.mrb[0].mxu0
    %v171 = vadd.f32 0.0, %v170
    %v172 = vpop.f32.mrb[0].mxu0
    %v173 = vadd.f32 0.0, %v172
    %174 = vmatprep.mubr.f32.mxu0 0.0
    %175 = vmatmul.mubr.f32.gmra.mrb[0].mxu0 %v89
    %v176 = vpop.f32.mrb[0].mxu0
    %v177 = vadd.f32 0.0, %v176
    %v178 = vpop.f32.mrb[0].mxu0
    %v179 = vadd.f32 0.0, %v178
    %180 = vdwg.mxu0
    %v181 = vsel %vm84, %v51, 0
    %v183 = vsel %vm84, %v52, 0
    %v185 = vsel %vm84, %v53, 0
    %v188 = vsel %vm91, %v61, 0
    %v191 = vsel %vm91, %v62, 0
    %193 = vmatprep.subr.mxu0 %v56
    %194 = vmatpush1.msra.mxu0 %v55
    %195 = vmatprep.subr.mxu0 %v58
    %196 = vmatpush1.msra.mxu0 %v57
    %197 = vmatprep.subr.mxu0 %v60
    %198 = vmatpush1.msra.mxu0 %v59
    %199 = vmatprep.subr.mxu0 %v191
    %200 = vmatpush1.msra.mxu0 %v188
    %201 = vmatprep.subr.mxu0 0.0
    %202 = vmatpush1.msra.mxu0 0.0
    %203 = vmatprep.subr.mxu0 0.0
    %204 = vmatpush1.msra.mxu0 0.0
    %205 = vmatprep.subr.mxu0 0.0
    %206 = vmatpush1.msra.mxu0 0.0
    %207 = vmatprep.subr.mxu0 0.0
    %208 = vmatpush1.msra.mxu0 0.0
    %209 = vmatprep.subr.mxu0 0.0
    %210 = vmatpush1.msra.mxu0 0.0
    %211 = vmatprep.subr.mxu0 0.0
    %212 = vmatpush1.msra.mxu0 0.0
    %213 = vmatprep.subr.mxu0 0.0
    %214 = vmatpush1.msra.mxu0 0.0
    %215 = vmatprep.subr.mxu0 0.0
    %216 = vmatpush1.msra.mxu0 0.0
    %217 = vmatprep.subr.mxu0 0.0
    %218 = vmatpush1.msra.mxu0 0.0
    %219 = vmatprep.subr.mxu0 0.0
    %220 = vmatpush1.msra.mxu0 0.0
    %221 = vmatprep.subr.mxu0 0.0
    %222 = vmatpush1.msra.mxu0 0.0
    %223 = vmatprep.subr.mxu0 0.0
    %224 = vmatpush1.msra.mxu0 0.0
    %225 = vmatprep.subr.mxu0 0.0
    %226 = vmatpush1.msra.mxu0 0.0
    %227 = vmatprep.subr.mxu0 0.0
    %228 = vmatpush1.msra.mxu0 0.0
    %229 = vmatprep.subr.mxu0 0.0
    %230 = vmatpush1.msra.mxu0 0.0
    %231 = vmatprep.subr.mxu0 0.0
    %232 = vmatpush1.msra.mxu0 0.0
    %233 = vmatprep.subr.mxu0 0.0
    %234 = vmatpush1.msra.mxu0 0.0
    %235 = vmatprep.subr.mxu0 0.0
    %236 = vmatpush1.msra.mxu0 0.0
    %237 = vmatprep.subr.mxu0 0.0
    %238 = vmatpush1.msra.mxu0 0.0
    %239 = vmatprep.subr.mxu0 0.0
    %240 = vmatpush1.msra.mxu0 0.0
    %241 = vmatprep.subr.mxu0 0.0
    %242 = vmatpush1.msra.mxu0 0.0
    %243 = vmatprep.subr.mxu0 0.0
    %244 = vmatpush1.msra.mxu0 0.0
    %245 = vmatprep.subr.mxu0 0.0
    %246 = vmatpush1.msra.mxu0 0.0
    %247 = vmatprep.subr.mxu0 0.0
    %248 = vmatpush1.msra.mxu0 0.0
    %249 = vmatprep.subr.mxu0 0.0
    %250 = vmatpush1.msra.mxu0 0.0
    %251 = vmatprep.subr.mxu0 0.0
    %252 = vmatpush1.msra.mxu0 0.0
    %253 = vmatprep.subr.mxu0 0.0
    %254 = vmatpush1.msra.mxu0 0.0
    %255 = vmatprep.subr.mxu0 0.0
    %256 = vmatpush1.msra.mxu0 0.0
    %257 = vmatprep.mubr.f32.mxu0 0.0
    %258 = vmatmul.mubr.f32.gmra.mrb[0].mxu0 %v181
    %v259 = vpop.f32.mrb[0].mxu0
    %v260 = vadd.f32 %v165, %v259
    %v261 = vpop.f32.mrb[0].mxu0
    %v262 = vadd.f32 %v167, %v261
    %263 = vmatprep.mubr.f32.mxu0 0.0
    %264 = vmatmul.mubr.f32.gmra.mrb[0].mxu0 %v183
    %v265 = vpop.f32.mrb[0].mxu0
    %v266 = vadd.f32 %v171, %v265
    %v267 = vpop.f32.mrb[0].mxu0
    %v268 = vadd.f32 %v173, %v267
    %269 = vmatprep.mubr.f32.mxu0 0.0
    %270 = vmatmul.mubr.f32.gmra.mrb[0].mxu0 %v185
    %v271 = vpop.f32.mrb[0].mxu0
    %v272 = vadd.f32 %v177, %v271
    %v273 = vpop.f32.mrb[0].mxu0
    %v274 = vadd.f32 %v179, %v273
    %275 = vdwg.mxu0
    %s276 = scalar_lea.vmem %s1, 128
    %v277 = vld [vmem:[%s276] sm:$0xff]
    %v278 = vld [vmem:[%s276 + $0x8] sm:$0xff]
    %v279 = vld [vmem:[%s276 + $0x10] sm:$0xff]
    %v280 = vld [vmem:[%s276 + $0x18] sm:$0xff]
    %v281 = vld [vmem:[%s276 + $0x20] sm:$0xff]
    %v282 = vld [vmem:[%s276 + $0x28] sm:$0xff]
    %v283 = vld [vmem:[%s276 + $0x30] sm:$0xf]
    %v284 = vld [vmem:[%s276 + $0x38] sm:$0xf]
    %vm285 = vcmask 1045504
    %v286 = vrot.slane %v51, 2
    %v287 = vrot.slane %v52, 2
    %v288 = vsel %vm285, %v286, %v287
    %v289 = vrot.slane %v53, 2
    %v290 = vsel %vm285, %v287, %v289
    %v291 = vrot.slane %v54, 2
    %v292 = vsel %vm285, %v289, %v291
    %v293 = vsel %vm84, %v288, 0
    %v295 = vsel %vm84, %v290, 0
    %v297 = vsel %vm84, %v292, 0
    %v300 = vsel %vm91, %v283, 0
    %v303 = vsel %vm91, %v284, 0
    %305 = vmatprep.subr.mxu0 %v278
    %306 = vmatpush1.msra.mxu0 %v277
    %307 = vmatprep.subr.mxu0 %v280
    %308 = vmatpush1.msra.mxu0 %v279
    %309 = vmatprep.subr.mxu0 %v282
    %310 = vmatpush1.msra.mxu0 %v281
    %311 = vmatprep.subr.mxu0 %v303
    %312 = vmatpush1.msra.mxu0 %v300
    %313 = vmatprep.subr.mxu0 0.0
    %314 = vmatpush1.msra.mxu0 0.0
    %315 = vmatprep.subr.mxu0 0.0
    %316 = vmatpush1.msra.mxu0 0.0
    %317 = vmatprep.subr.mxu0 0.0
    %318 = vmatpush1.msra.mxu0 0.0
    %319 = vmatprep.subr.mxu0 0.0
    %320 = vmatpush1.msra.mxu0 0.0
    %321 = vmatprep.subr.mxu0 0.0
    %322 = vmatpush1.msra.mxu0 0.0
    %323 = vmatprep.subr.mxu0 0.0
    %324 = vmatpush1.msra.mxu0 0.0
    %325 = vmatprep.subr.mxu0 0.0
    %326 = vmatpush1.msra.mxu0 0.0
    %327 = vmatprep.subr.mxu0 0.0
    %328 = vmatpush1.msra.mxu0 0.0
    %329 = vmatprep.subr.mxu0 0.0
    %330 = vmatpush1.msra.mxu0 0.0
    %331 = vmatprep.subr.mxu0 0.0
    %332 = vmatpush1.msra.mxu0 0.0
    %333 = vmatprep.subr.mxu0 0.0
    %334 = vmatpush1.msra.mxu0 0.0
    %335 = vmatprep.subr.mxu0 0.0
    %336 = vmatpush1.msra.mxu0 0.0
    %337 = vmatprep.subr.mxu0 0.0
    %338 = vmatpush1.msra.mxu0 0.0
    %339 = vmatprep.subr.mxu0 0.0
    %340 = vmatpush1.msra.mxu0 0.0
    %341 = vmatprep.subr.mxu0 0.0
    %342 = vmatpush1.msra.mxu0 0.0
    %343 = vmatprep.subr.mxu0 0.0
    %344 = vmatpush1.msra.mxu0 0.0
    %345 = vmatprep.subr.mxu0 0.0
    %346 = vmatpush1.msra.mxu0 0.0
    %347 = vmatprep.subr.mxu0 0.0
    %348 = vmatpush1.msra.mxu0 0.0
    %349 = vmatprep.subr.mxu0 0.0
    %350 = vmatpush1.msra.mxu0 0.0
    %351 = vmatprep.subr.mxu0 0.0
    %352 = vmatpush1.msra.mxu0 0.0
    %353 = vmatprep.subr.mxu0 0.0
    %354 = vmatpush1.msra.mxu0 0.0
    %355 = vmatprep.subr.mxu0 0.0
    %356 = vmatpush1.msra.mxu0 0.0
    %357 = vmatprep.subr.mxu0 0.0
    %358 = vmatpush1.msra.mxu0 0.0
    %359 = vmatprep.subr.mxu0 0.0
    %360 = vmatpush1.msra.mxu0 0.0
    %361 = vmatprep.subr.mxu0 0.0
    %362 = vmatpush1.msra.mxu0 0.0
    %363 = vmatprep.subr.mxu0 0.0
    %364 = vmatpush1.msra.mxu0 0.0
    %365 = vmatprep.subr.mxu0 0.0
    %366 = vmatpush1.msra.mxu0 0.0
    %367 = vmatprep.subr.mxu0 0.0
    %368 = vmatpush1.msra.mxu0 0.0
    %369 = vmatprep.mubr.f32.mxu0 0.0
    %370 = vmatmul.mubr.f32.gmra.mrb[0].mxu0 %v293
    %v371 = vpop.f32.mrb[0].mxu0
    %v372 = vadd.f32 0.0, %v371
    %v373 = vpop.f32.mrb[0].mxu0
    %v374 = vadd.f32 0.0, %v373
    %375 = vmatprep.mubr.f32.mxu0 0.0
    %376 = vmatmul.mubr.f32.gmra.mrb[0].mxu0 %v295
    %v377 = vpop.f32.mrb[0].mxu0
    %v378 = vadd.f32 0.0, %v377
    %v379 = vpop.f32.mrb[0].mxu0
    %v380 = vadd.f32 0.0, %v379
    %381 = vmatprep.mubr.f32.mxu0 0.0
    %382 = vmatmul.mubr.f32.gmra.mrb[0].mxu0 %v297
    %v383 = vpop.f32.mrb[0].mxu0
    %v384 = vadd.f32 0.0, %v383
    %v385 = vpop.f32.mrb[0].mxu0
    %v386 = vadd.f32 0.0, %v385
    %387 = vdwg.mxu0
    %v388 = vadd.f32 %v260, %v372
    %v389 = vadd.f32 %v262, %v374
    %v390 = vadd.f32 %v266, %v378
    %v391 = vadd.f32 %v268, %v380
    %v392 = vadd.f32 %v272, %v384
    %v393 = vadd.f32 %v274, %v386
    %s394 = scalar_lea.vmem %s1, 192
    %v395 = vld [vmem:[%s394] sm:$0xff]
    %v396 = vld [vmem:[%s394 + $0x8] sm:$0xff]
    %v397 = vld [vmem:[%s394 + $0x10] sm:$0xff]
    %v398 = vld [vmem:[%s394 + $0x18] sm:$0xff]
    %v399 = vld [vmem:[%s394 + $0x20] sm:$0xff]
    %v400 = vld [vmem:[%s394 + $0x28] sm:$0xff]
    %v401 = vld [vmem:[%s394 + $0x30] sm:$0xf]
    %v402 = vld [vmem:[%s394 + $0x38] sm:$0xf]
    %vm403 = vcmask 1044480
    %v404 = vrot.slane %v51, 3
    %v405 = vrot.slane %v52, 3
    %v406 = vsel %vm403, %v404, %v405
    %v407 = vrot.slane %v53, 3
    %v408 = vsel %vm403, %v405, %v407
    %v409 = vrot.slane %v54, 3
    %v410 = vsel %vm403, %v407, %v409
    %v411 = vsel %vm84, %v406, 0
    %v413 = vsel %vm84, %v408, 0
    %v415 = vsel %vm84, %v410, 0
    %v418 = vsel %vm91, %v401, 0
    %v421 = vsel %vm91, %v402, 0
    %423 = vmatprep.subr.mxu0 %v396
    %424 = vmatpush1.msra.mxu0 %v395
    %425 = vmatprep.subr.mxu0 %v398
    %426 = vmatpush1.msra.mxu0 %v397
    %427 = vmatprep.subr.mxu0 %v400
    %428 = vmatpush1.msra.mxu0 %v399
    %429 = vmatprep.subr.mxu0 %v421
    %430 = vmatpush1.msra.mxu0 %v418
    %431 = vmatprep.subr.mxu0 0.0
    %432 = vmatpush1.msra.mxu0 0.0
    %433 = vmatprep.subr.mxu0 0.0
    %434 = vmatpush1.msra.mxu0 0.0
    %435 = vmatprep.subr.mxu0 0.0
    %436 = vmatpush1.msra.mxu0 0.0
    %437 = vmatprep.subr.mxu0 0.0
    %438 = vmatpush1.msra.mxu0 0.0
    %439 = vmatprep.subr.mxu0 0.0
    %440 = vmatpush1.msra.mxu0 0.0
    %441 = vmatprep.subr.mxu0 0.0
    %442 = vmatpush1.msra.mxu0 0.0
    %443 = vmatprep.subr.mxu0 0.0
    %444 = vmatpush1.msra.mxu0 0.0
    %445 = vmatprep.subr.mxu0 0.0
    %446 = vmatpush1.msra.mxu0 0.0
    %447 = vmatprep.subr.mxu0 0.0
    %448 = vmatpush1.msra.mxu0 0.0
    %449 = vmatprep.subr.mxu0 0.0
    %450 = vmatpush1.msra.mxu0 0.0
    %451 = vmatprep.subr.mxu0 0.0
    %452 = vmatpush1.msra.mxu0 0.0
    %453 = vmatprep.subr.mxu0 0.0
    %454 = vmatpush1.msra.mxu0 0.0
    %455 = vmatprep.subr.mxu0 0.0
    %456 = vmatpush1.msra.mxu0 0.0
    %457 = vmatprep.subr.mxu0 0.0
    %458 = vmatpush1.msra.mxu0 0.0
    %459 = vmatprep.subr.mxu0 0.0
    %460 = vmatpush1.msra.mxu0 0.0
    %461 = vmatprep.subr.mxu0 0.0
    %462 = vmatpush1.msra.mxu0 0.0
    %463 = vmatprep.subr.mxu0 0.0
    %464 = vmatpush1.msra.mxu0 0.0
    %465 = vmatprep.subr.mxu0 0.0
    %466 = vmatpush1.msra.mxu0 0.0
    %467 = vmatprep.subr.mxu0 0.0
    %468 = vmatpush1.msra.mxu0 0.0
    %469 = vmatprep.subr.mxu0 0.0
    %470 = vmatpush1.msra.mxu0 0.0
    %471 = vmatprep.subr.mxu0 0.0
    %472 = vmatpush1.msra.mxu0 0.0
    %473 = vmatprep.subr.mxu0 0.0
    %474 = vmatpush1.msra.mxu0 0.0
    %475 = vmatprep.subr.mxu0 0.0
    %476 = vmatpush1.msra.mxu0 0.0
    %477 = vmatprep.subr.mxu0 0.0
    %478 = vmatpush1.msra.mxu0 0.0
    %479 = vmatprep.subr.mxu0 0.0
    %480 = vmatpush1.msra.mxu0 0.0
    %481 = vmatprep.subr.mxu0 0.0
    %482 = vmatpush1.msra.mxu0 0.0
    %483 = vmatprep.subr.mxu0 0.0
    %484 = vmatpush1.msra.mxu0 0.0
    %485 = vmatprep.subr.mxu0 0.0
    %486 = vmatpush1.msra.mxu0 0.0
    %487 = vmatprep.mubr.f32.mxu0 0.0
    %488 = vmatmul.mubr.f32.gmra.mrb[0].mxu0 %v411
    %v489 = vpop.f32.mrb[0].mxu0
    %v490 = vadd.f32 0.0, %v489
    %v491 = vpop.f32.mrb[0].mxu0
    %v492 = vadd.f32 0.0, %v491
    %493 = vmatprep.mubr.f32.mxu0 0.0
    %494 = vmatmul.mubr.f32.gmra.mrb[0].mxu0 %v413
    %v495 = vpop.f32.mrb[0].mxu0
    %v496 = vadd.f32 0.0, %v495
    %v497 = vpop.f32.mrb[0].mxu0
    %v498 = vadd.f32 0.0, %v497
    %499 = vmatprep.mubr.f32.mxu0 0.0
    %500 = vmatmul.mubr.f32.gmra.mrb[0].mxu0 %v415
    %v501 = vpop.f32.mrb[0].mxu0
    %v502 = vadd.f32 0.0, %v501
    %v503 = vpop.f32.mrb[0].mxu0
    %v504 = vadd.f32 0.0, %v503
    %505 = vdwg.mxu0
    %v506 = vadd.f32 %v388, %v490
    %v507 = vadd.f32 %v389, %v492
    %v508 = vadd.f32 %v390, %v496
    %v509 = vadd.f32 %v391, %v498
    %v510 = vadd.f32 %v392, %v502
    %v511 = vadd.f32 %v393, %v504
    %s512 = scalar_lea.vmem %s1, 256
    %v513 = vld [vmem:[%s512] sm:$0xff]
    %v514 = vld [vmem:[%s512 + $0x8] sm:$0xff]
    %v515 = vld [vmem:[%s512 + $0x10] sm:$0xff]
    %v516 = vld [vmem:[%s512 + $0x18] sm:$0xff]
    %v517 = vld [vmem:[%s512 + $0x20] sm:$0xff]
    %v518 = vld [vmem:[%s512 + $0x28] sm:$0xff]
    %v519 = vld [vmem:[%s512 + $0x30] sm:$0xf]
    %v520 = vld [vmem:[%s512 + $0x38] sm:$0xf]
    %v521 = vrot.slane %v51, 4
    %v522 = vrot.slane %v52, 4
    %v523 = vsel %vm91, %v521, %v522
    %v524 = vrot.slane %v53, 4
    %v525 = vsel %vm91, %v522, %v524
    %v526 = vrot.slane %v54, 4
    %v527 = vsel %vm91, %v524, %v526
    %v528 = vsel %vm84, %v523, 0
    %v530 = vsel %vm84, %v525, 0
    %v532 = vsel %vm84, %v527, 0
    %v535 = vsel %vm91, %v519, 0
    %v538 = vsel %vm91, %v520, 0
    %540 = vmatprep.subr.mxu0 %v514
    %541 = vmatpush1.msra.mxu0 %v513
    %542 = vmatprep.subr.mxu0 %v516
    %543 = vmatpush1.msra.mxu0 %v515
    %544 = vmatprep.subr.mxu0 %v518
    %545 = vmatpush1.msra.mxu0 %v517
    %546 = vmatprep.subr.mxu0 %v538
    %547 = vmatpush1.msra.mxu0 %v535
    %548 = vmatprep.subr.mxu0 0.0
    %549 = vmatpush1.msra.mxu0 0.0
    %550 = vmatprep.subr.mxu0 0.0
    %551 = vmatpush1.msra.mxu0 0.0
    %552 = vmatprep.subr.mxu0 0.0
    %553 = vmatpush1.msra.mxu0 0.0
    %554 = vmatprep.subr.mxu0 0.0
    %555 = vmatpush1.msra.mxu0 0.0
    %556 = vmatprep.subr.mxu0 0.0
    %557 = vmatpush1.msra.mxu0 0.0
    %558 = vmatprep.subr.mxu0 0.0
    %559 = vmatpush1.msra.mxu0 0.0
    %560 = vmatprep.subr.mxu0 0.0
    %561 = vmatpush1.msra.mxu0 0.0
    %562 = vmatprep.subr.mxu0 0.0
    %563 = vmatpush1.msra.mxu0 0.0
    %564 = vmatprep.subr.mxu0 0.0
    %565 = vmatpush1.msra.mxu0 0.0
    %566 = vmatprep.subr.mxu0 0.0
    %567 = vmatpush1.msra.mxu0 0.0
    %568 = vmatprep.subr.mxu0 0.0
    %569 = vmatpush1.msra.mxu0 0.0
    %570 = vmatprep.subr.mxu0 0.0
    %571 = vmatpush1.msra.mxu0 0.0
    %572 = vmatprep.subr.mxu0 0.0
    %573 = vmatpush1.msra.mxu0 0.0
    %574 = vmatprep.subr.mxu0 0.0
    %575 = vmatpush1.msra.mxu0 0.0
    %576 = vmatprep.subr.mxu0 0.0
    %577 = vmatpush1.msra.mxu0 0.0
    %578 = vmatprep.subr.mxu0 0.0
    %579 = vmatpush1.msra.mxu0 0.0
    %580 = vmatprep.subr.mxu0 0.0
    %581 = vmatpush1.msra.mxu0 0.0
    %582 = vmatprep.subr.mxu0 0.0
    %583 = vmatpush1.msra.mxu0 0.0
    %584 = vmatprep.subr.mxu0 0.0
    %585 = vmatpush1.msra.mxu0 0.0
    %586 = vmatprep.subr.mxu0 0.0
    %587 = vmatpush1.msra.mxu0 0.0
    %588 = vmatprep.subr.mxu0 0.0
    %589 = vmatpush1.msra.mxu0 0.0
    %590 = vmatprep.subr.mxu0 0.0
    %591 = vmatpush1.msra.mxu0 0.0
    %592 = vmatprep.subr.mxu0 0.0
    %593 = vmatpush1.msra.mxu0 0.0
    %594 = vmatprep.subr.mxu0 0.0
    %595 = vmatpush1.msra.mxu0 0.0
    %596 = vmatprep.subr.mxu0 0.0
    %597 = vmatpush1.msra.mxu0 0.0
    %598 = vmatprep.subr.mxu0 0.0
    %599 = vmatpush1.msra.mxu0 0.0
    %600 = vmatprep.subr.mxu0 0.0
    %601 = vmatpush1.msra.mxu0 0.0
    %602 = vmatprep.subr.mxu0 0.0
    %603 = vmatpush1.msra.mxu0 0.0
    %604 = vmatprep.mubr.f32.mxu0 0.0
    %605 = vmatmul.mubr.f32.gmra.mrb[0].mxu0 %v528
    %v606 = vpop.f32.mrb[0].mxu0
    %v607 = vadd.f32 0.0, %v606
    %v608 = vpop.f32.mrb[0].mxu0
    %v609 = vadd.f32 0.0, %v608
    %610 = vmatprep.mubr.f32.mxu0 0.0
    %611 = vmatmul.mubr.f32.gmra.mrb[0].mxu0 %v530
    %v612 = vpop.f32.mrb[0].mxu0
    %v613 = vadd.f32 0.0, %v612
    %v614 = vpop.f32.mrb[0].mxu0
    %v615 = vadd.f32 0.0, %v614
    %616 = vmatprep.mubr.f32.mxu0 0.0
    %617 = vmatmul.mubr.f32.gmra.mrb[0].mxu0 %v532
    %v618 = vpop.f32.mrb[0].mxu0
    %v619 = vadd.f32 0.0, %v618
    %v620 = vpop.f32.mrb[0].mxu0
    %v621 = vadd.f32 0.0, %v620
    %622 = vdwg.mxu0
    %v623 = vadd.f32 %v506, %v607
    %v624 = vadd.f32 %v507, %v609
    %v625 = vadd.f32 %v508, %v613
    %v626 = vadd.f32 %v509, %v615
    %v627 = vadd.f32 %v510, %v619
    %v628 = vadd.f32 %v511, %v621
    %v629 = vld [vmem:[%s2] sm:$0x3]
    %v631 = vlaneseq
    %v632 = vshrl.u32 %v631, 7
    %v633 = vsub.s32 0, %v632
    %v634 = vrot.slane %v629, %v633
    %v635 = vlaneseq
    %v636 = vshrl.u32 %v635, 7
    %v637 = vsub.s32 1, %v636
    %v638 = vrot.slane %v629, %v637
    %v641 = vadd.f32 %v623, %v634
    %v642 = vadd.f32 %v624, %v638
    %v643 = vadd.f32 %v625, %v634
    %v644 = vadd.f32 %v626, %v638
    %v645 = vadd.f32 %v627, %v634
    %v646 = vadd.f32 %v628, %v638
    %v647 = vmax.f32 %v641, 0.0
    %v648 = vmax.f32 %v642, 0.0
    %v649 = vmax.f32 %v643, 0.0
    %v650 = vmax.f32 %v644, 0.0
    %v651 = vmax.f32 %v645, 0.0
    %v652 = vmax.f32 %v646, 0.0
    %v653 = vld [vmem:[%s3] sm:$0xff]
    %v654 = vld [vmem:[%s3 + $0x8] sm:$0xff]
    %v655 = vld [vmem:[%s3 + $0x10] sm:$0xff]
    %v656 = vld [vmem:[%s3 + $0x18] sm:$0xff]
    %v657 = vld [vmem:[%s3 + $0x20] sm:$0xff]
    %v658 = vld [vmem:[%s3 + $0x28] sm:$0xff]
    %v659 = vld [vmem:[%s3 + $0x30] sm:$0xff]
    %v660 = vld [vmem:[%s3 + $0x38] sm:$0xff]
    %v661 = vld [vmem:[%s3 + $0x40] sm:$0xff]
    %v662 = vld [vmem:[%s3 + $0x48] sm:$0xff]
    %v663 = vld [vmem:[%s3 + $0x50] sm:$0xff]
    %v664 = vld [vmem:[%s3 + $0x58] sm:$0xff]
    %v665 = vld [vmem:[%s3 + $0x60] sm:$0xff]
    %v666 = vld [vmem:[%s3 + $0x68] sm:$0xff]
    %v667 = vld [vmem:[%s3 + $0x70] sm:$0xff]
    %v668 = vld [vmem:[%s3 + $0x78] sm:$0xff]
    %v669 = vld [vmem:[%s3 + $0x80] sm:$0xff]
    %v670 = vld [vmem:[%s3 + $0x88] sm:$0xff]
    %vm671 = vcmask 130048
    %v673 = vsel %vm671, %v648, 0
    %v676 = vsel %vm671, %v650, 0
    %v679 = vsel %vm671, %v652, 0
    %681 = vmatprep.subr.mxu0 0.0
    %682 = vmatpush1.msra.mxu0 %v653
    %683 = vmatprep.subr.mxu0 0.0
    %684 = vmatpush1.msra.mxu0 %v654
    %685 = vmatprep.subr.mxu0 0.0
    %686 = vmatpush1.msra.mxu0 %v655
    %687 = vmatprep.subr.mxu0 0.0
    %688 = vmatpush1.msra.mxu0 %v656
    %689 = vmatprep.subr.mxu0 0.0
    %690 = vmatpush1.msra.mxu0 %v657
    %691 = vmatprep.subr.mxu0 0.0
    %692 = vmatpush1.msra.mxu0 %v658
    %693 = vmatprep.subr.mxu0 0.0
    %694 = vmatpush1.msra.mxu0 %v659
    %695 = vmatprep.subr.mxu0 0.0
    %696 = vmatpush1.msra.mxu0 %v660
    %697 = vmatprep.subr.mxu0 0.0
    %698 = vmatpush1.msra.mxu0 %v661
    %699 = vmatprep.subr.mxu0 0.0
    %700 = vmatpush1.msra.mxu0 %v662
    %701 = vmatprep.subr.mxu0 0.0
    %702 = vmatpush1.msra.mxu0 %v663
    %703 = vmatprep.subr.mxu0 0.0
    %704 = vmatpush1.msra.mxu0 %v664
    %705 = vmatprep.subr.mxu0 0.0
    %706 = vmatpush1.msra.mxu0 %v665
    %707 = vmatprep.subr.mxu0 0.0
    %708 = vmatpush1.msra.mxu0 %v666
    %709 = vmatprep.subr.mxu0 0.0
    %710 = vmatpush1.msra.mxu0 %v667
    %711 = vmatprep.subr.mxu0 0.0
    %712 = vmatpush1.msra.mxu0 %v668
    %713 = vmatprep.subr.mxu0 0.0
    %714 = vmatpush1.msra.mxu0 %v669
    %715 = vmatprep.subr.mxu0 0.0
    %716 = vmatpush1.msra.mxu0 %v670
    %717 = vmatprep.subr.mxu0 0.0
    %718 = vmatpush1.msra.mxu0 0.0
    %719 = vmatprep.subr.mxu0 0.0
    %720 = vmatpush1.msra.mxu0 0.0
    %721 = vmatprep.subr.mxu0 0.0
    %722 = vmatpush1.msra.mxu0 0.0
    %723 = vmatprep.subr.mxu0 0.0
    %724 = vmatpush1.msra.mxu0 0.0
    %725 = vmatprep.subr.mxu0 0.0
    %726 = vmatpush1.msra.mxu0 0.0
    %727 = vmatprep.subr.mxu0 0.0
    %728 = vmatpush1.msra.mxu0 0.0
    %729 = vmatprep.subr.mxu0 0.0
    %730 = vmatpush1.msra.mxu0 0.0
    %731 = vmatprep.subr.mxu0 0.0
    %732 = vmatpush1.msra.mxu0 0.0
    %733 = vmatprep.subr.mxu0 0.0
    %734 = vmatpush1.msra.mxu0 0.0
    %735 = vmatprep.subr.mxu0 0.0
    %736 = vmatpush1.msra.mxu0 0.0
    %737 = vmatprep.subr.mxu0 0.0
    %738 = vmatpush1.msra.mxu0 0.0
    %739 = vmatprep.subr.mxu0 0.0
    %740 = vmatpush1.msra.mxu0 0.0
    %741 = vmatprep.subr.mxu0 0.0
    %742 = vmatpush1.msra.mxu0 0.0
    %743 = vmatprep.subr.mxu0 0.0
    %744 = vmatpush1.msra.mxu0 0.0
    %745 = vmatprep.mubr.f32.mxu0 %v673
    %746 = vmatmul.mubr.f32.gmra.mrb[0].mxu0 %v647
    %v747 = vpop.f32.mrb[0].mxu0
    %v748 = vadd.f32 0.0, %v747
    %v749 = vpop.f32.mrb[0].mxu0
    %750 = vmatprep.mubr.f32.mxu0 %v676
    %751 = vmatmul.mubr.f32.gmra.mrb[0].mxu0 %v649
    %v752 = vpop.f32.mrb[0].mxu0
    %v753 = vadd.f32 0.0, %v752
    %v754 = vpop.f32.mrb[0].mxu0
    %755 = vmatprep.mubr.f32.mxu0 %v679
    %756 = vmatmul.mubr.f32.gmra.mrb[0].mxu0 %v651
    %v757 = vpop.f32.mrb[0].mxu0
    %v758 = vadd.f32 0.0, %v757
    %v759 = vpop.f32.mrb[0].mxu0
    %760 = vdwg.mxu0
    %s761 = scalar_lea.vmem %s3, 144
    %v762 = vld [vmem:[%s761] sm:$0xff]
    %v763 = vld [vmem:[%s761 + $0x8] sm:$0xff]
    %v764 = vld [vmem:[%s761 + $0x10] sm:$0xff]
    %v765 = vld [vmem:[%s761 + $0x18] sm:$0xff]
    %v766 = vld [vmem:[%s761 + $0x20] sm:$0xff]
    %v767 = vld [vmem:[%s761 + $0x28] sm:$0xff]
    %v768 = vld [vmem:[%s761 + $0x30] sm:$0xff]
    %v769 = vld [vmem:[%s761 + $0x38] sm:$0xff]
    %v770 = vld [vmem:[%s761 + $0x40] sm:$0xff]
    %v771 = vld [vmem:[%s761 + $0x48] sm:$0xff]
    %v772 = vld [vmem:[%s761 + $0x50] sm:$0xff]
    %v773 = vld [vmem:[%s761 + $0x58] sm:$0xff]
    %v774 = vld [vmem:[%s761 + $0x60] sm:$0xff]
    %v775 = vld [vmem:[%s761 + $0x68] sm:$0xff]
    %v776 = vld [vmem:[%s761 + $0x70] sm:$0xff]
    %v777 = vld [vmem:[%s761 + $0x78] sm:$0xff]
    %v778 = vld [vmem:[%s761 + $0x80] sm:$0xff]
    %v779 = vld [vmem:[%s761 + $0x88] sm:$0xff]
    %780 = vmatprep.subr.mxu0 0.0
    %781 = vmatpush1.msra.mxu0 %v762
    %782 = vmatprep.subr.mxu0 0.0
    %783 = vmatpush1.msra.mxu0 %v763
    %784 = vmatprep.subr.mxu0 0.0
    %785 = vmatpush1.msra.mxu0 %v764
    %786 = vmatprep.subr.mxu0 0.0
    %787 = vmatpush1.msra.mxu0 %v765
    %788 = vmatprep.subr.mxu0 0.0
    %789 = vmatpush1.msra.mxu0 %v766
    %790 = vmatprep.subr.mxu0 0.0
    %791 = vmatpush1.msra.mxu0 %v767
    %792 = vmatprep.subr.mxu0 0.0
    %793 = vmatpush1.msra.mxu0 %v768
    %794 = vmatprep.subr.mxu0 0.0
    %795 = vmatpush1.msra.mxu0 %v769
    %796 = vmatprep.subr.mxu0 0.0
    %797 = vmatpush1.msra.mxu0 %v770
    %798 = vmatprep.subr.mxu0 0.0
    %799 = vmatpush1.msra.mxu0 %v771
    %800 = vmatprep.subr.mxu0 0.0
    %801 = vmatpush1.msra.mxu0 %v772
    %802 = vmatprep.subr.mxu0 0.0
    %803 = vmatpush1.msra.mxu0 %v773
    %804 = vmatprep.subr.mxu0 0.0
    %805 = vmatpush1.msra.mxu0 %v774
    %806 = vmatprep.subr.mxu0 0.0
    %807 = vmatpush1.msra.mxu0 %v775
    %808 = vmatprep.subr.mxu0 0.0
    %809 = vmatpush1.msra.mxu0 %v776
    %810 = vmatprep.subr.mxu0 0.0
    %811 = vmatpush1.msra.mxu0 %v777
    %812 = vmatprep.subr.mxu0 0.0
    %813 = vmatpush1.msra.mxu0 %v778
    %814 = vmatprep.subr.mxu0 0.0
    %815 = vmatpush1.msra.mxu0 %v779
    %816 = vmatprep.subr.mxu0 0.0
    %817 = vmatpush1.msra.mxu0 0.0
    %818 = vmatprep.subr.mxu0 0.0
    %819 = vmatpush1.msra.mxu0 0.0
    %820 = vmatprep.subr.mxu0 0.0
    %821 = vmatpush1.msra.mxu0 0.0
    %822 = vmatprep.subr.mxu0 0.0
    %823 = vmatpush1.msra.mxu0 0.0
    %824 = vmatprep.subr.mxu0 0.0
    %825 = vmatpush1.msra.mxu0 0.0
    %826 = vmatprep.subr.mxu0 0.0
    %827 = vmatpush1.msra.mxu0 0.0
    %828 = vmatprep.subr.mxu0 0.0
    %829 = vmatpush1.msra.mxu0 0.0
    %830 = vmatprep.subr.mxu0 0.0
    %831 = vmatpush1.msra.mxu0 0.0
    %832 = vmatprep.subr.mxu0 0.0
    %833 = vmatpush1.msra.mxu0 0.0
    %834 = vmatprep.subr.mxu0 0.0
    %835 = vmatpush1.msra.mxu0 0.0
    %836 = vmatprep.subr.mxu0 0.0
    %837 = vmatpush1.msra.mxu0 0.0
    %838 = vmatprep.subr.mxu0 0.0
    %839 = vmatpush1.msra.mxu0 0.0
    %840 = vmatprep.subr.mxu0 0.0
    %841 = vmatpush1.msra.mxu0 0.0
    %842 = vmatprep.subr.mxu0 0.0
    %843 = vmatpush1.msra.mxu0 0.0
    %844 = vmatprep.mubr.f32.mxu0 %v673
    %845 = vmatmul.mubr.f32.gmra.mrb[0].mxu0 %v647
    %v846 = vpop.f32.mrb[0].mxu0
    %v847 = vadd.f32 0.0, %v846
    %v848 = vpop.f32.mrb[0].mxu0
    %849 = vmatprep.mubr.f32.mxu0 %v676
    %850 = vmatmul.mubr.f32.gmra.mrb[0].mxu0 %v649
    %v851 = vpop.f32.mrb[0].mxu0
    %v852 = vadd.f32 0.0, %v851
    %v853 = vpop.f32.mrb[0].mxu0
    %854 = vmatprep.mubr.f32.mxu0 %v679
    %855 = vmatmul.mubr.f32.gmra.mrb[0].mxu0 %v651
    %v856 = vpop.f32.mrb[0].mxu0
    %v857 = vadd.f32 0.0, %v856
    %v858 = vpop.f32.mrb[0].mxu0
    %859 = vdwg.mxu0
    %v860 = vmax.f32 %v748, %v847
    %v861 = vmax.f32 %v753, %v852
    %v862 = vmax.f32 %v758, %v857
    %v863 = vld [vmem:[%s4] sm:$0xff]
    %v864 = vld [vmem:[%s4 + $0x8] sm:$0xf]
    %vm865 = vcmask 195584
    %v867 = vsel %vm865, %v863, 0
    %v870 = vsel %vm865, %v864, 0
    %872 = vmatprep.subr.mxu0 0.0
    %873 = vmatpush1.msra.mxu0 %v860
    %874 = vmatprep.subr.mxu0 0.0
    %875 = vmatpush1.msra.mxu0 %v861
    %876 = vmatprep.subr.mxu0 0.0
    %877 = vmatpush1.msra.mxu0 %v862
    %878 = vmatprep.subr.mxu0 0.0
    %879 = vmatpush1.msra.mxu0 0.0
    %880 = vmatprep.subr.mxu0 0.0
    %881 = vmatpush1.msra.mxu0 0.0
    %882 = vmatprep.subr.mxu0 0.0
    %883 = vmatpush1.msra.mxu0 0.0
    %884 = vmatprep.subr.mxu0 0.0
    %885 = vmatpush1.msra.mxu0 0.0
    %886 = vmatprep.subr.mxu0 0.0
    %887 = vmatpush1.msra.mxu0 0.0
    %888 = vmatprep.subr.mxu0 0.0
    %889 = vmatpush1.msra.mxu0 0.0
    %890 = vmatprep.subr.mxu0 0.0
    %891 = vmatpush1.msra.mxu0 0.0
    %892 = vmatprep.subr.mxu0 0.0
    %893 = vmatpush1.msra.mxu0 0.0
    %894 = vmatprep.subr.mxu0 0.0
    %895 = vmatpush1.msra.mxu0 0.0
    %896 = vmatprep.subr.mxu0 0.0
    %897 = vmatpush1.msra.mxu0 0.0
    %898 = vmatprep.subr.mxu0 0.0
    %899 = vmatpush1.msra.mxu0 0.0
    %900 = vmatprep.subr.mxu0 0.0
    %901 = vmatpush1.msra.mxu0 0.0
    %902 = vmatprep.subr.mxu0 0.0
    %903 = vmatpush1.msra.mxu0 0.0
    %904 = vmatprep.subr.mxu0 0.0
    %905 = vmatpush1.msra.mxu0 0.0
    %906 = vmatprep.subr.mxu0 0.0
    %907 = vmatpush1.msra.mxu0 0.0
    %908 = vmatprep.subr.mxu0 0.0
    %909 = vmatpush1.msra.mxu0 0.0
    %910 = vmatprep.subr.mxu0 0.0
    %911 = vmatpush1.msra.mxu0 0.0
    %912 = vmatprep.subr.mxu0 0.0
    %913 = vmatpush1.msra.mxu0 0.0
    %914 = vmatprep.subr.mxu0 0.0
    %915 = vmatpush1.msra.mxu0 0.0
    %916 = vmatprep.subr.mxu0 0.0
    %917 = vmatpush1.msra.mxu0 0.0
    %918 = vmatprep.subr.mxu0 0.0
    %919 = vmatpush1.msra.mxu0 0.0
    %920 = vmatprep.subr.mxu0 0.0
    %921 = vmatpush1.msra.mxu0 0.0
    %922 = vmatprep.subr.mxu0 0.0
    %923 = vmatpush1.msra.mxu0 0.0
    %924 = vmatprep.subr.mxu0 0.0
    %925 = vmatpush1.msra.mxu0 0.0
    %926 = vmatprep.subr.mxu0 0.0
    %927 = vmatpush1.msra.mxu0 0.0
    %928 = vmatprep.subr.mxu0 0.0
    %929 = vmatpush1.msra.mxu0 0.0
    %930 = vmatprep.subr.mxu0 0.0
    %931 = vmatpush1.msra.mxu0 0.0
    %932 = vmatprep.subr.mxu0 0.0
    %933 = vmatpush1.msra.mxu0 0.0
    %934 = vmatprep.subr.mxu0 0.0
    %935 = vmatpush1.msra.mxu0 0.0
    %936 = vmatprep.mubr.f32.mxu0 0.0
    %937 = vmatmul.mubr.f32.gmra.mrb[0].mxu0 %v867
    %v938 = vpop.f32.mrb[0].mxu0
    %v939 = vadd.f32 0.0, %v938
    %v940 = vpop.f32.mrb[0].mxu0
    %941 = vmatprep.mubr.f32.mxu0 0.0
    %942 = vmatmul.mubr.f32.gmra.mrb[0].mxu0 %v870
    %v943 = vpop.f32.mrb[0].mxu0
    %v944 = vadd.f32 0.0, %v943
    %v945 = vpop.f32.mrb[0].mxu0
    %946 = vdwg.mxu0
    %s947 = scalar_lea.vmem %s4, 16
    %v948 = vld [vmem:[%s947] sm:$0xff]
    %v949 = vld [vmem:[%s947 + $0x8] sm:$0xf]
    %v951 = vsel %vm865, %v948, 0
    %v954 = vsel %vm865, %v949, 0
    %956 = vmatprep.subr.mxu0 0.0
    %957 = vmatpush1.msra.mxu0 %v860
    %958 = vmatprep.subr.mxu0 0.0
    %959 = vmatpush1.msra.mxu0 %v861
    %960 = vmatprep.subr.mxu0 0.0
    %961 = vmatpush1.msra.mxu0 %v862
    %962 = vmatprep.subr.mxu0 0.0
    %963 = vmatpush1.msra.mxu0 0.0
    %964 = vmatprep.subr.mxu0 0.0
    %965 = vmatpush1.msra.mxu0 0.0
    %966 = vmatprep.subr.mxu0 0.0
    %967 = vmatpush1.msra.mxu0 0.0
    %968 = vmatprep.subr.mxu0 0.0
    %969 = vmatpush1.msra.mxu0 0.0
    %970 = vmatprep.subr.mxu0 0.0
    %971 = vmatpush1.msra.mxu0 0.0
    %972 = vmatprep.subr.mxu0 0.0
    %973 = vmatpush1.msra.mxu0 0.0
    %974 = vmatprep.subr.mxu0 0.0
    %975 = vmatpush1.msra.mxu0 0.0
    %976 = vmatprep.subr.mxu0 0.0
    %977 = vmatpush1.msra.mxu0 0.0
    %978 = vmatprep.subr.mxu0 0.0
    %979 = vmatpush1.msra.mxu0 0.0
    %980 = vmatprep.subr.mxu0 0.0
    %981 = vmatpush1.msra.mxu0 0.0
    %982 = vmatprep.subr.mxu0 0.0
    %983 = vmatpush1.msra.mxu0 0.0
    %984 = vmatprep.subr.mxu0 0.0
    %985 = vmatpush1.msra.mxu0 0.0
    %986 = vmatprep.subr.mxu0 0.0
    %987 = vmatpush1.msra.mxu0 0.0
    %988 = vmatprep.subr.mxu0 0.0
    %989 = vmatpush1.msra.mxu0 0.0
    %990 = vmatprep.subr.mxu0 0.0
    %991 = vmatpush1.msra.mxu0 0.0
    %992 = vmatprep.subr.mxu0 0.0
    %993 = vmatpush1.msra.mxu0 0.0
    %994 = vmatprep.subr.mxu0 0.0
    %995 = vmatpush1.msra.mxu0 0.0
    %996 = vmatprep.subr.mxu0 0.0
    %997 = vmatpush1.msra.mxu0 0.0
    %998 = vmatprep.subr.mxu0 0.0
    %999 = vmatpush1.msra.mxu0 0.0
    %1000 = vmatprep.subr.mxu0 0.0
    %1001 = vmatpush1.msra.mxu0 0.0
    %1002 = vmatprep.subr.mxu0 0.0
    %1003 = vmatpush1.msra.mxu0 0.0
    %1004 = vmatprep.subr.mxu0 0.0
    %1005 = vmatpush1.msra.mxu0 0.0
    %1006 = vmatprep.subr.mxu0 0.0
    %1007 = vmatpush1.msra.mxu0 0.0
    %1008 = vmatprep.subr.mxu0 0.0
    %1009 = vmatpush1.msra.mxu0 0.0
    %1010 = vmatprep.subr.mxu0 0.0
    %1011 = vmatpush1.msra.mxu0 0.0
    %1012 = vmatprep.subr.mxu0 0.0
    %1013 = vmatpush1.msra.mxu0 0.0
    %1014 = vmatprep.subr.mxu0 0.0
    %1015 = vmatpush1.msra.mxu0 0.0
    %1016 = vmatprep.subr.mxu0 0.0
    %1017 = vmatpush1.msra.mxu0 0.0
    %1018 = vmatprep.subr.mxu0 0.0
    %1019 = vmatpush1.msra.mxu0 0.0
    %1020 = vmatprep.mubr.f32.mxu0 0.0
    %1021 = vmatmul.mubr.f32.gmra.mrb[0].mxu0 %v951
    %v1022 = vpop.f32.mrb[0].mxu0
    %v1023 = vadd.f32 0.0, %v1022
    %v1024 = vpop.f32.mrb[0].mxu0
    %1025 = vmatprep.mubr.f32.mxu0 0.0
    %1026 = vmatmul.mubr.f32.gmra.mrb[0].mxu0 %v954
    %v1027 = vpop.f32.mrb[0].mxu0
    %v1028 = vadd.f32 0.0, %v1027
    %v1029 = vpop.f32.mrb[0].mxu0
    %1030 = vdwg.mxu0
    %v1031 = vmax.f32 %v939, %v1023
    %v1032 = vmax.f32 %v944, %v1028
    %v1033 = vld [vmem:[%s5] sm:$0xff]
    %v1034 = vld [vmem:[%s5 + $0x8] sm:$0xff]
    %v1035 = vld [vmem:[%s5 + $0x10] sm:$0xff]
    %v1036 = vld [vmem:[%s5 + $0x18] sm:$0xff]
    %v1037 = vld [vmem:[%s5 + $0x20] sm:$0xff]
    %v1038 = vld [vmem:[%s5 + $0x28] sm:$0xff]
    %v1039 = vld [vmem:[%s5 + $0x30] sm:$0xff]
    %v1040 = vld [vmem:[%s5 + $0x38] sm:$0xff]
    %v1041 = vld [vmem:[%s5 + $0x40] sm:$0xff]
    %s1042 = scalar_lea.vmem %s5, 72
    %v1043 = vld [vmem:[%s1042] sm:$0xff]
    %v1044 = vld [vmem:[%s1042 + $0x8] sm:$0xff]
    %v1045 = vld [vmem:[%s1042 + $0x10] sm:$0xff]
    %v1046 = vld [vmem:[%s1042 + $0x18] sm:$0xff]
    %v1047 = vld [vmem:[%s1042 + $0x20] sm:$0xff]
    %v1048 = vld [vmem:[%s1042 + $0x28] sm:$0xff]
    %v1049 = vld [vmem:[%s1042 + $0x30] sm:$0xff]
    %v1050 = vld [vmem:[%s1042 + $0x38] sm:$0xff]
    %v1051 = vld [vmem:[%s1042 + $0x40] sm:$0xff]
    %v1054 = vrot.slane %v1031, 1
    %v1055 = vrot.slane %v1032, 1
    %v1056 = vsel %vm76, %v1054, %v1055
    %vm1057 = vcmask 588800
    %v1058 = vsel %vm1057, %v1056, 0
    %1060 = vmatprep.subr.mxu0 0.0
    %1061 = vmatpush1.msra.mxu0 %v1043
    %1062 = vmatprep.subr.mxu0 0.0
    %1063 = vmatpush1.msra.mxu0 %v1044
    %1064 = vmatprep.subr.mxu0 0.0
    %1065 = vmatpush1.msra.mxu0 %v1045
    %1066 = vmatprep.subr.mxu0 0.0
    %1067 = vmatpush1.msra.mxu0 %v1046
    %1068 = vmatprep.subr.mxu0 0.0
    %1069 = vmatpush1.msra.mxu0 %v1047
    %1070 = vmatprep.subr.mxu0 0.0
    %1071 = vmatpush1.msra.mxu0 %v1048
    %1072 = vmatprep.subr.mxu0 0.0
    %1073 = vmatpush1.msra.mxu0 %v1049
    %1074 = vmatprep.subr.mxu0 0.0
    %1075 = vmatpush1.msra.mxu0 %v1050
    %1076 = vmatprep.subr.mxu0 0.0
    %1077 = vmatpush1.msra.mxu0 %v1051
    %1078 = vmatprep.subr.mxu0 0.0
    %1079 = vmatpush1.msra.mxu0 0.0
    %1080 = vmatprep.subr.mxu0 0.0
    %1081 = vmatpush1.msra.mxu0 0.0
    %1082 = vmatprep.subr.mxu0 0.0
    %1083 = vmatpush1.msra.mxu0 0.0
    %1084 = vmatprep.subr.mxu0 0.0
    %1085 = vmatpush1.msra.mxu0 0.0
    %1086 = vmatprep.subr.mxu0 0.0
    %1087 = vmatpush1.msra.mxu0 0.0
    %1088 = vmatprep.subr.mxu0 0.0
    %1089 = vmatpush1.msra.mxu0 0.0
    %1090 = vmatprep.subr.mxu0 0.0
    %1091 = vmatpush1.msra.mxu0 0.0
    %1092 = vmatprep.subr.mxu0 0.0
    %1093 = vmatpush1.msra.mxu0 0.0
    %1094 = vmatprep.subr.mxu0 0.0
    %1095 = vmatpush1.msra.mxu0 0.0
    %1096 = vmatprep.subr.mxu0 0.0
    %1097 = vmatpush1.msra.mxu0 0.0
    %1098 = vmatprep.subr.mxu0 0.0
    %1099 = vmatpush1.msra.mxu0 0.0
    %1100 = vmatprep.subr.mxu0 0.0
    %1101 = vmatpush1.msra.mxu0 0.0
    %1102 = vmatprep.subr.mxu0 0.0
    %1103 = vmatpush1.msra.mxu0 0.0
    %1104 = vmatprep.subr.mxu0 0.0
    %1105 = vmatpush1.msra.mxu0 0.0
    %1106 = vmatprep.subr.mxu0 0.0
    %1107 = vmatpush1.msra.mxu0 0.0
    %1108 = vmatprep.subr.mxu0 0.0
    %1109 = vmatpush1.msra.mxu0 0.0
    %1110 = vmatprep.subr.mxu0 0.0
    %1111 = vmatpush1.msra.mxu0 0.0
    %1112 = vmatprep.subr.mxu0 0.0
    %1113 = vmatpush1.msra.mxu0 0.0
    %1114 = vmatprep.subr.mxu0 0.0
    %1115 = vmatpush1.msra.mxu0 0.0
    %1116 = vmatprep.subr.mxu0 0.0
    %1117 = vmatpush1.msra.mxu0 0.0
    %1118 = vmatprep.subr.mxu0 0.0
    %1119 = vmatpush1.msra.mxu0 0.0
    %1120 = vmatprep.subr.mxu0 0.0
    %1121 = vmatpush1.msra.mxu0 0.0
    %1122 = vmatprep.subr.mxu0 0.0
    %1123 = vmatpush1.msra.mxu0 0.0
    %1124 = vmatprep.mubr.f32.mxu0 0.0
    %1125 = vmatmul.mubr.f32.gmra.mrb[0].mxu0 %v1058
    %v1126 = vpop.f32.mrb[0].mxu0
    %v1127 = vadd.f32 0.0, %v1126
    %v1128 = vpop.f32.mrb[0].mxu0
    %1129 = vdwg.mxu0
    %v1130 = vsel %vm1057, %v1031, 0
    %1132 = vmatprep.subr.mxu0 0.0
    %1133 = vmatpush1.msra.mxu0 %v1033
    %1134 = vmatprep.subr.mxu0 0.0
    %1135 = vmatpush1.msra.mxu0 %v1034
    %1136 = vmatprep.subr.mxu0 0.0
    %1137 = vmatpush1.msra.mxu0 %v1035
    %1138 = vmatprep.subr.mxu0 0.0
    %1139 = vmatpush1.msra.mxu0 %v1036
    %1140 = vmatprep.subr.mxu0 0.0
    %1141 = vmatpush1.msra.mxu0 %v1037
    %1142 = vmatprep.subr.mxu0 0.0
    %1143 = vmatpush1.msra.mxu0 %v1038
    %1144 = vmatprep.subr.mxu0 0.0
    %1145 = vmatpush1.msra.mxu0 %v1039
    %1146 = vmatprep.subr.mxu0 0.0
    %1147 = vmatpush1.msra.mxu0 %v1040
    %1148 = vmatprep.subr.mxu0 0.0
    %1149 = vmatpush1.msra.mxu0 %v1041
    %1150 = vmatprep.subr.mxu0 0.0
    %1151 = vmatpush1.msra.mxu0 0.0
    %1152 = vmatprep.subr.mxu0 0.0
    %1153 = vmatpush1.msra.mxu0 0.0
    %1154 = vmatprep.subr.mxu0 0.0
    %1155 = vmatpush1.msra.mxu0 0.0
    %1156 = vmatprep.subr.mxu0 0.0
    %1157 = vmatpush1.msra.mxu0 0.0
    %1158 = vmatprep.subr.mxu0 0.0
    %1159 = vmatpush1.msra.mxu0 0.0
    %1160 = vmatprep.subr.mxu0 0.0
    %1161 = vmatpush1.msra.mxu0 0.0
    %1162 = vmatprep.subr.mxu0 0.0
    %1163 = vmatpush1.msra.mxu0 0.0
    %1164 = vmatprep.subr.mxu0 0.0
    %1165 = vmatpush1.msra.mxu0 0.0
    %1166 = vmatprep.subr.mxu0 0.0
    %1167 = vmatpush1.msra.mxu0 0.0
    %1168 = vmatprep.subr.mxu0 0.0
    %1169 = vmatpush1.msra.mxu0 0.0
    %1170 = vmatprep.subr.mxu0 0.0
    %1171 = vmatpush1.msra.mxu0 0.0
    %1172 = vmatprep.subr.mxu0 0.0
    %1173 = vmatpush1.msra.mxu0 0.0
    %1174 = vmatprep.subr.mxu0 0.0
    %1175 = vmatpush1.msra.mxu0 0.0
    %1176 = vmatprep.subr.mxu0 0.0
    %1177 = vmatpush1.msra.mxu0 0.0
    %1178 = vmatprep.subr.mxu0 0.0
    %1179 = vmatpush1.msra.mxu0 0.0
    %1180 = vmatprep.subr.mxu0 0.0
    %1181 = vmatpush1.msra.mxu0 0.0
    %1182 = vmatprep.subr.mxu0 0.0
    %1183 = vmatpush1.msra.mxu0 0.0
    %1184 = vmatprep.subr.mxu0 0.0
    %1185 = vmatpush1.msra.mxu0 0.0
    %1186 = vmatprep.subr.mxu0 0.0
    %1187 = vmatpush1.msra.mxu0 0.0
    %1188 = vmatprep.subr.mxu0 0.0
    %1189 = vmatpush1.msra.mxu0 0.0
    %1190 = vmatprep.subr.mxu0 0.0
    %1191 = vmatpush1.msra.mxu0 0.0
    %1192 = vmatprep.subr.mxu0 0.0
    %1193 = vmatpush1.msra.mxu0 0.0
    %1194 = vmatprep.subr.mxu0 0.0
    %1195 = vmatpush1.msra.mxu0 0.0
    %1196 = vmatprep.mubr.f32.mxu0 0.0
    %1197 = vmatmul.mubr.f32.gmra.mrb[0].mxu0 %v1130
    %v1198 = vpop.f32.mrb[0].mxu0
    %v1199 = vadd.f32 %v1127, %v1198
    %v1200 = vpop.f32.mrb[0].mxu0
    %1201 = vdwg.mxu0
    %s1202 = scalar_lea.vmem %s5, 144
    %v1203 = vld [vmem:[%s1202] sm:$0xff]
    %v1204 = vld [vmem:[%s1202 + $0x8] sm:$0xff]
    %v1205 = vld [vmem:[%s1202 + $0x10] sm:$0xff]
    %v1206 = vld [vmem:[%s1202 + $0x18] sm:$0xff]
    %v1207 = vld [vmem:[%s1202 + $0x20] sm:$0xff]
    %v1208 = vld [vmem:[%s1202 + $0x28] sm:$0xff]
    %v1209 = vld [vmem:[%s1202 + $0x30] sm:$0xff]
    %v1210 = vld [vmem:[%s1202 + $0x38] sm:$0xff]
    %v1211 = vld [vmem:[%s1202 + $0x40] sm:$0xff]
    %v1212 = vrot.slane %v1031, 2
    %v1213 = vrot.slane %v1032, 2
    %v1214 = vsel %vm285, %v1212, %v1213
    %v1215 = vsel %vm1057, %v1214, 0
    %1217 = vmatprep.subr.mxu0 0.0
    %1218 = vmatpush1.msra.mxu0 %v1203
    %1219 = vmatprep.subr.mxu0 0.0
    %1220 = vmatpush1.msra.mxu0 %v1204
    %1221 = vmatprep.subr.mxu0 0.0
    %1222 = vmatpush1.msra.mxu0 %v1205
    %1223 = vmatprep.subr.mxu0 0.0
    %1224 = vmatpush1.msra.mxu0 %v1206
    %1225 = vmatprep.subr.mxu0 0.0
    %1226 = vmatpush1.msra.mxu0 %v1207
    %1227 = vmatprep.subr.mxu0 0.0
    %1228 = vmatpush1.msra.mxu0 %v1208
    %1229 = vmatprep.subr.mxu0 0.0
    %1230 = vmatpush1.msra.mxu0 %v1209
    %1231 = vmatprep.subr.mxu0 0.0
    %1232 = vmatpush1.msra.mxu0 %v1210
    %1233 = vmatprep.subr.mxu0 0.0
    %1234 = vmatpush1.msra.mxu0 %v1211
    %1235 = vmatprep.subr.mxu0 0.0
    %1236 = vmatpush1.msra.mxu0 0.0
    %1237 = vmatprep.subr.mxu0 0.0
    %1238 = vmatpush1.msra.mxu0 0.0
    %1239 = vmatprep.subr.mxu0 0.0
    %1240 = vmatpush1.msra.mxu0 0.0
    %1241 = vmatprep.subr.mxu0 0.0
    %1242 = vmatpush1.msra.mxu0 0.0
    %1243 = vmatprep.subr.mxu0 0.0
    %1244 = vmatpush1.msra.mxu0 0.0
    %1245 = vmatprep.subr.mxu0 0.0
    %1246 = vmatpush1.msra.mxu0 0.0
    %1247 = vmatprep.subr.mxu0 0.0
    %1248 = vmatpush1.msra.mxu0 0.0
    %1249 = vmatprep.subr.mxu0 0.0
    %1250 = vmatpush1.msra.mxu0 0.0
    %1251 = vmatprep.subr.mxu0 0.0
    %1252 = vmatpush1.msra.mxu0 0.0
    %1253 = vmatprep.subr.mxu0 0.0
    %1254 = vmatpush1.msra.mxu0 0.0
    %1255 = vmatprep.subr.mxu0 0.0
    %1256 = vmatpush1.msra.mxu0 0.0
    %1257 = vmatprep.subr.mxu0 0.0
    %1258 = vmatpush1.msra.mxu0 0.0
    %1259 = vmatprep.subr.mxu0 0.0
    %1260 = vmatpush1.msra.mxu0 0.0
    %1261 = vmatprep.subr.mxu0 0.0
    %1262 = vmatpush1.msra.mxu0 0.0
    %1263 = vmatprep.subr.mxu0 0.0
    %1264 = vmatpush1.msra.mxu0 0.0
    %1265 = vmatprep.subr.mxu0 0.0
    %1266 = vmatpush1.msra.mxu0 0.0
    %1267 = vmatprep.subr.mxu0 0.0
    %1268 = vmatpush1.msra.mxu0 0.0
    %1269 = vmatprep.subr.mxu0 0.0
    %1270 = vmatpush1.msra.mxu0 0.0
    %1271 = vmatprep.subr.mxu0 0.0
    %1272 = vmatpush1.msra.mxu0 0.0
    %1273 = vmatprep.subr.mxu0 0.0
    %1274 = vmatpush1.msra.mxu0 0.0
    %1275 = vmatprep.subr.mxu0 0.0
    %1276 = vmatpush1.msra.mxu0 0.0
    %1277 = vmatprep.subr.mxu0 0.0
    %1278 = vmatpush1.msra.mxu0 0.0
    %1279 = vmatprep.subr.mxu0 0.0
    %1280 = vmatpush1.msra.mxu0 0.0
    %1281 = vmatprep.mubr.f32.mxu0 0.0
    %1282 = vmatmul.mubr.f32.gmra.mrb[0].mxu0 %v1215
    %v1283 = vpop.f32.mrb[0].mxu0
    %v1284 = vadd.f32 0.0, %v1283
    %v1285 = vpop.f32.mrb[0].mxu0
    %1286 = vdwg.mxu0
    %v1287 = vadd.f32 %v1199, %v1284
    %s1288 = scalar_lea.vmem %s5, 216
    %v1289 = vld [vmem:[%s1288] sm:$0xff]
    %v1290 = vld [vmem:[%s1288 + $0x8] sm:$0xff]
    %v1291 = vld [vmem:[%s1288 + $0x10] sm:$0xff]
    %v1292 = vld [vmem:[%s1288 + $0x18] sm:$0xff]
    %v1293 = vld [vmem:[%s1288 + $0x20] sm:$0xff]
    %v1294 = vld [vmem:[%s1288 + $0x28] sm:$0xff]
    %v1295 = vld [vmem:[%s1288 + $0x30] sm:$0xff]
    %v1296 = vld [vmem:[%s1288 + $0x38] sm:$0xff]
    %v1297 = vld [vmem:[%s1288 + $0x40] sm:$0xff]
    %v1298 = vrot.slane %v1031, 3
    %v1299 = vrot.slane %v1032, 3
    %v1300 = vsel %vm403, %v1298, %v1299
    %v1301 = vsel %vm1057, %v1300, 0
    %1303 = vmatprep.subr.mxu0 0.0
    %1304 = vmatpush1.msra.mxu0 %v1289
    %1305 = vmatprep.subr.mxu0 0.0
    %1306 = vmatpush1.msra.mxu0 %v1290
    %1307 = vmatprep.subr.mxu0 0.0
    %1308 = vmatpush1.msra.mxu0 %v1291
    %1309 = vmatprep.subr.mxu0 0.0
    %1310 = vmatpush1.msra.mxu0 %v1292
    %1311 = vmatprep.subr.mxu0 0.0
    %1312 = vmatpush1.msra.mxu0 %v1293
    %1313 = vmatprep.subr.mxu0 0.0
    %1314 = vmatpush1.msra.mxu0 %v1294
    %1315 = vmatprep.subr.mxu0 0.0
    %1316 = vmatpush1.msra.mxu0 %v1295
    %1317 = vmatprep.subr.mxu0 0.0
    %1318 = vmatpush1.msra.mxu0 %v1296
    %1319 = vmatprep.subr.mxu0 0.0
    %1320 = vmatpush1.msra.mxu0 %v1297
    %1321 = vmatprep.subr.mxu0 0.0
    %1322 = vmatpush1.msra.mxu0 0.0
    %1323 = vmatprep.subr.mxu0 0.0
    %1324 = vmatpush1.msra.mxu0 0.0
    %1325 = vmatprep.subr.mxu0 0.0
    %1326 = vmatpush1.msra.mxu0 0.0
    %1327 = vmatprep.subr.mxu0 0.0
    %1328 = vmatpush1.msra.mxu0 0.0
    %1329 = vmatprep.subr.mxu0 0.0
    %1330 = vmatpush1.msra.mxu0 0.0
    %1331 = vmatprep.subr.mxu0 0.0
    %1332 = vmatpush1.msra.mxu0 0.0
    %1333 = vmatprep.subr.mxu0 0.0
    %1334 = vmatpush1.msra.mxu0 0.0
    %1335 = vmatprep.subr.mxu0 0.0
    %1336 = vmatpush1.msra.mxu0 0.0
    %1337 = vmatprep.subr.mxu0 0.0
    %1338 = vmatpush1.msra.mxu0 0.0
    %1339 = vmatprep.subr.mxu0 0.0
    %1340 = vmatpush1.msra.mxu0 0.0
    %1341 = vmatprep.subr.mxu0 0.0
    %1342 = vmatpush1.msra.mxu0 0.0
    %1343 = vmatprep.subr.mxu0 0.0
    %1344 = vmatpush1.msra.mxu0 0.0
    %1345 = vmatprep.subr.mxu0 0.0
    %1346 = vmatpush1.msra.mxu0 0.0
    %1347 = vmatprep.subr.mxu0 0.0
    %1348 = vmatpush1.msra.mxu0 0.0
    %1349 = vmatprep.subr.mxu0 0.0
    %1350 = vmatpush1.msra.mxu0 0.0
    %1351 = vmatprep.subr.mxu0 0.0
    %1352 = vmatpush1.msra.mxu0 0.0
    %1353 = vmatprep.subr.mxu0 0.0
    %1354 = vmatpush1.msra.mxu0 0.0
    %1355 = vmatprep.subr.mxu0 0.0
    %1356 = vmatpush1.msra.mxu0 0.0
    %1357 = vmatprep.subr.mxu0 0.0
    %1358 = vmatpush1.msra.mxu0 0.0
    %1359 = vmatprep.subr.mxu0 0.0
    %1360 = vmatpush1.msra.mxu0 0.0
    %1361 = vmatprep.subr.mxu0 0.0
    %1362 = vmatpush1.msra.mxu0 0.0
    %1363 = vmatprep.subr.mxu0 0.0
    %1364 = vmatpush1.msra.mxu0 0.0
    %1365 = vmatprep.subr.mxu0 0.0
    %1366 = vmatpush1.msra.mxu0 0.0
    %1367 = vmatprep.mubr.f32.mxu0 0.0
    %1368 = vmatmul.mubr.f32.gmra.mrb[0].mxu0 %v1301
    %v1369 = vpop.f32.mrb[0].mxu0
    %v1370 = vadd.f32 0.0, %v1369
    %v1371 = vpop.f32.mrb[0].mxu0
    %1372 = vdwg.mxu0
    %v1373 = vadd.f32 %v1287, %v1370
    %s1374 = scalar_lea.vmem %s5, 288
    %v1375 = vld [vmem:[%s1374] sm:$0xff]
    %v1376 = vld [vmem:[%s1374 + $0x8] sm:$0xff]
    %v1377 = vld [vmem:[%s1374 + $0x10] sm:$0xff]
    %v1378 = vld [vmem:[%s1374 + $0x18] sm:$0xff]
    %v1379 = vld [vmem:[%s1374 + $0x20] sm:$0xff]
    %v1380 = vld [vmem:[%s1374 + $0x28] sm:$0xff]
    %v1381 = vld [vmem:[%s1374 + $0x30] sm:$0xff]
    %v1382 = vld [vmem:[%s1374 + $0x38] sm:$0xff]
    %v1383 = vld [vmem:[%s1374 + $0x40] sm:$0xff]
    %v1384 = vrot.slane %v1031, 4
    %v1385 = vrot.slane %v1032, 4
    %v1386 = vsel %vm91, %v1384, %v1385
    %v1387 = vsel %vm1057, %v1386, 0
    %1389 = vmatprep.subr.mxu0 0.0
    %1390 = vmatpush1.msra.mxu0 %v1375
    %1391 = vmatprep.subr.mxu0 0.0
    %1392 = vmatpush1.msra.mxu0 %v1376
    %1393 = vmatprep.subr.mxu0 0.0
    %1394 = vmatpush1.msra.mxu0 %v1377
    %1395 = vmatprep.subr.mxu0 0.0
    %1396 = vmatpush1.msra.mxu0 %v1378
    %1397 = vmatprep.subr.mxu0 0.0
    %1398 = vmatpush1.msra.mxu0 %v1379
    %1399 = vmatprep.subr.mxu0 0.0
    %1400 = vmatpush1.msra.mxu0 %v1380
    %1401 = vmatprep.subr.mxu0 0.0
    %1402 = vmatpush1.msra.mxu0 %v1381
    %1403 = vmatprep.subr.mxu0 0.0
    %1404 = vmatpush1.msra.mxu0 %v1382
    %1405 = vmatprep.subr.mxu0 0.0
    %1406 = vmatpush1.msra.mxu0 %v1383
    %1407 = vmatprep.subr.mxu0 0.0
    %1408 = vmatpush1.msra.mxu0 0.0
    %1409 = vmatprep.subr.mxu0 0.0
    %1410 = vmatpush1.msra.mxu0 0.0
    %1411 = vmatprep.subr.mxu0 0.0
    %1412 = vmatpush1.msra.mxu0 0.0
    %1413 = vmatprep.subr.mxu0 0.0
    %1414 = vmatpush1.msra.mxu0 0.0
    %1415 = vmatprep.subr.mxu0 0.0
    %1416 = vmatpush1.msra.mxu0 0.0
    %1417 = vmatprep.subr.mxu0 0.0
    %1418 = vmatpush1.msra.mxu0 0.0
    %1419 = vmatprep.subr.mxu0 0.0
    %1420 = vmatpush1.msra.mxu0 0.0
    %1421 = vmatprep.subr.mxu0 0.0
    %1422 = vmatpush1.msra.mxu0 0.0
    %1423 = vmatprep.subr.mxu0 0.0
    %1424 = vmatpush1.msra.mxu0 0.0
    %1425 = vmatprep.subr.mxu0 0.0
    %1426 = vmatpush1.msra.mxu0 0.0
    %1427 = vmatprep.subr.mxu0 0.0
    %1428 = vmatpush1.msra.mxu0 0.0
    %1429 = vmatprep.subr.mxu0 0.0
    %1430 = vmatpush1.msra.mxu0 0.0
    %1431 = vmatprep.subr.mxu0 0.0
    %1432 = vmatpush1.msra.mxu0 0.0
    %1433 = vmatprep.subr.mxu0 0.0
    %1434 = vmatpush1.msra.mxu0 0.0
    %1435 = vmatprep.subr.mxu0 0.0
    %1436 = vmatpush1.msra.mxu0 0.0
    %1437 = vmatprep.subr.mxu0 0.0
    %1438 = vmatpush1.msra.mxu0 0.0
    %1439 = vmatprep.subr.mxu0 0.0
    %1440 = vmatpush1.msra.mxu0 0.0
    %1441 = vmatprep.subr.mxu0 0.0
    %1442 = vmatpush1.msra.mxu0 0.0
    %1443 = vmatprep.subr.mxu0 0.0
    %1444 = vmatpush1.msra.mxu0 0.0
    %1445 = vmatprep.subr.mxu0 0.0
    %1446 = vmatpush1.msra.mxu0 0.0
    %1447 = vmatprep.subr.mxu0 0.0
    %1448 = vmatpush1.msra.mxu0 0.0
    %1449 = vmatprep.subr.mxu0 0.0
    %1450 = vmatpush1.msra.mxu0 0.0
    %1451 = vmatprep.subr.mxu0 0.0
    %1452 = vmatpush1.msra.mxu0 0.0
    %1453 = vmatprep.mubr.f32.mxu0 0.0
    %1454 = vmatmul.mubr.f32.gmra.mrb[0].mxu0 %v1387
    %v1455 = vpop.f32.mrb[0].mxu0
    %v1456 = vadd.f32 0.0, %v1455
    %v1457 = vpop.f32.mrb[0].mxu0
    %1458 = vdwg.mxu0
    %v1459 = vadd.f32 %v1373, %v1456
    %v1460 = vld [vmem:[%s6] sm:$0x1]
    %v1462 = vlaneseq
    %v1463 = vshrl.u32 %v1462, 7
    %v1464 = vsub.s32 0, %v1463
    %v1465 = vrot.slane %v1460, %v1464
    %v1467 = vadd.f32 %v1459, %v1465
    %v1468 = vmax.f32 %v1467, 0.0
    %v1469 = vld [vmem:[%s7] sm:$0xff]
    %v1470 = vld [vmem:[%s7 + $0x8] sm:$0xff]
    %v1471 = vld [vmem:[%s7 + $0x10] sm:$0xff]
    %v1472 = vld [vmem:[%s7 + $0x18] sm:$0xff]
    %v1473 = vld [vmem:[%s7 + $0x20] sm:$0xff]
    %v1474 = vld [vmem:[%s7 + $0x28] sm:$0xff]
    %v1475 = vld [vmem:[%s7 + $0x30] sm:$0xff]
    %v1476 = vld [vmem:[%s7 + $0x38] sm:$0xff]
    %v1477 = vld [vmem:[%s7 + $0x40] sm:$0xff]
    %v1478 = vld [vmem:[%s7 + $0x48] sm:$0xff]
    %v1479 = vld [vmem:[%s7 + $0x50] sm:$0xff]
    %v1480 = vld [vmem:[%s7 + $0x58] sm:$0xff]
    %vm1481 = vcmask 785408
    %v1483 = vsel %vm1481, %v1468, 0
    %1485 = vmatprep.subr.mxu0 0.0
    %1486 = vmatpush1.msra.mxu0 %v1469
    %1487 = vmatprep.subr.mxu0 0.0
    %1488 = vmatpush1.msra.mxu0 %v1470
    %1489 = vmatprep.subr.mxu0 0.0
    %1490 = vmatpush1.msra.mxu0 %v1471
    %1491 = vmatprep.subr.mxu0 0.0
    %1492 = vmatpush1.msra.mxu0 %v1472
    %1493 = vmatprep.subr.mxu0 0.0
    %1494 = vmatpush1.msra.mxu0 %v1473
    %1495 = vmatprep.subr.mxu0 0.0
    %1496 = vmatpush1.msra.mxu0 %v1474
    %1497 = vmatprep.subr.mxu0 0.0
    %1498 = vmatpush1.msra.mxu0 %v1475
    %1499 = vmatprep.subr.mxu0 0.0
    %1500 = vmatpush1.msra.mxu0 %v1476
    %1501 = vmatprep.subr.mxu0 0.0
    %1502 = vmatpush1.msra.mxu0 %v1477
    %1503 = vmatprep.subr.mxu0 0.0
    %1504 = vmatpush1.msra.mxu0 %v1478
    %1505 = vmatprep.subr.mxu0 0.0
    %1506 = vmatpush1.msra.mxu0 %v1479
    %1507 = vmatprep.subr.mxu0 0.0
    %1508 = vmatpush1.msra.mxu0 %v1480
    %1509 = vmatprep.subr.mxu0 0.0
    %1510 = vmatpush1.msra.mxu0 0.0
    %1511 = vmatprep.subr.mxu0 0.0
    %1512 = vmatpush1.msra.mxu0 0.0
    %1513 = vmatprep.subr.mxu0 0.0
    %1514 = vmatpush1.msra.mxu0 0.0
    %1515 = vmatprep.subr.mxu0 0.0
    %1516 = vmatpush1.msra.mxu0 0.0
    %1517 = vmatprep.subr.mxu0 0.0
    %1518 = vmatpush1.msra.mxu0 0.0
    %1519 = vmatprep.subr.mxu0 0.0
    %1520 = vmatpush1.msra.mxu0 0.0
    %1521 = vmatprep.subr.mxu0 0.0
    %1522 = vmatpush1.msra.mxu0 0.0
    %1523 = vmatprep.subr.mxu0 0.0
    %1524 = vmatpush1.msra.mxu0 0.0
    %1525 = vmatprep.subr.mxu0 0.0
    %1526 = vmatpush1.msra.mxu0 0.0
    %1527 = vmatprep.subr.mxu0 0.0
    %1528 = vmatpush1.msra.mxu0 0.0
    %1529 = vmatprep.subr.mxu0 0.0
    %1530 = vmatpush1.msra.mxu0 0.0
    %1531 = vmatprep.subr.mxu0 0.0
    %1532 = vmatpush1.msra.mxu0 0.0
    %1533 = vmatprep.subr.mxu0 0.0
    %1534 = vmatpush1.msra.mxu0 0.0
    %1535 = vmatprep.subr.mxu0 0.0
    %1536 = vmatpush1.msra.mxu0 0.0
    %1537 = vmatprep.subr.mxu0 0.0
    %1538 = vmatpush1.msra.mxu0 0.0
    %1539 = vmatprep.subr.mxu0 0.0
    %1540 = vmatpush1.msra.mxu0 0.0
    %1541 = vmatprep.subr.mxu0 0.0
    %1542 = vmatpush1.msra.mxu0 0.0
    %1543 = vmatprep.subr.mxu0 0.0
    %1544 = vmatpush1.msra.mxu0 0.0
    %1545 = vmatprep.subr.mxu0 0.0
    %1546 = vmatpush1.msra.mxu0 0.0
    %1547 = vmatprep.subr.mxu0 0.0
    %1548 = vmatpush1.msra.mxu0 0.0
    %1549 = vmatprep.mubr.f32.mxu0 0.0
    %1550 = vmatmul.mubr.f32.gmra.mrb[0].mxu0 %v1483
    %v1551 = vpop.f32.mrb[0].mxu0
    %v1552 = vadd.f32 0.0, %v1551
    %v1553 = vpop.f32.mrb[0].mxu0
    %1554 = vdwg.mxu0
    %s1555 = scalar_lea.vmem %s7, 96
    %v1556 = vld [vmem:[%s1555] sm:$0xff]
    %v1557 = vld [vmem:[%s1555 + $0x8] sm:$0xff]
    %v1558 = vld [vmem:[%s1555 + $0x10] sm:$0xff]
    %v1559 = vld [vmem:[%s1555 + $0x18] sm:$0xff]
    %v1560 = vld [vmem:[%s1555 + $0x20] sm:$0xff]
    %v1561 = vld [vmem:[%s1555 + $0x28] sm:$0xff]
    %v1562 = vld [vmem:[%s1555 + $0x30] sm:$0xff]
    %v1563 = vld [vmem:[%s1555 + $0x38] sm:$0xff]
    %v1564 = vld [vmem:[%s1555 + $0x40] sm:$0xff]
    %v1565 = vld [vmem:[%s1555 + $0x48] sm:$0xff]
    %v1566 = vld [vmem:[%s1555 + $0x50] sm:$0xff]
    %v1567 = vld [vmem:[%s1555 + $0x58] sm:$0xff]
    %1568 = vmatprep.subr.mxu0 0.0
    %1569 = vmatpush1.msra.mxu0 %v1556
    %1570 = vmatprep.subr.mxu0 0.0
    %1571 = vmatpush1.msra.mxu0 %v1557
    %1572 = vmatprep.subr.mxu0 0.0
    %1573 = vmatpush1.msra.mxu0 %v1558
    %1574 = vmatprep.subr.mxu0 0.0
    %1575 = vmatpush1.msra.mxu0 %v1559
    %1576 = vmatprep.subr.mxu0 0.0
    %1577 = vmatpush1.msra.mxu0 %v1560
    %1578 = vmatprep.subr.mxu0 0.0
    %1579 = vmatpush1.msra.mxu0 %v1561
    %1580 = vmatprep.subr.mxu0 0.0
    %1581 = vmatpush1.msra.mxu0 %v1562
    %1582 = vmatprep.subr.mxu0 0.0
    %1583 = vmatpush1.msra.mxu0 %v1563
    %1584 = vmatprep.subr.mxu0 0.0
    %1585 = vmatpush1.msra.mxu0 %v1564
    %1586 = vmatprep.subr.mxu0 0.0
    %1587 = vmatpush1.msra.mxu0 %v1565
    %1588 = vmatprep.subr.mxu0 0.0
    %1589 = vmatpush1.msra.mxu0 %v1566
    %1590 = vmatprep.subr.mxu0 0.0
    %1591 = vmatpush1.msra.mxu0 %v1567
    %1592 = vmatprep.subr.mxu0 0.0
    %1593 = vmatpush1.msra.mxu0 0.0
    %1594 = vmatprep.subr.mxu0 0.0
    %1595 = vmatpush1.msra.mxu0 0.0
    %1596 = vmatprep.subr.mxu0 0.0
    %1597 = vmatpush1.msra.mxu0 0.0
    %1598 = vmatprep.subr.mxu0 0.0
    %1599 = vmatpush1.msra.mxu0 0.0
    %1600 = vmatprep.subr.mxu0 0.0
    %1601 = vmatpush1.msra.mxu0 0.0
    %1602 = vmatprep.subr.mxu0 0.0
    %1603 = vmatpush1.msra.mxu0 0.0
    %1604 = vmatprep.subr.mxu0 0.0
    %1605 = vmatpush1.msra.mxu0 0.0
    %1606 = vmatprep.subr.mxu0 0.0
    %1607 = vmatpush1.msra.mxu0 0.0
    %1608 = vmatprep.subr.mxu0 0.0
    %1609 = vmatpush1.msra.mxu0 0.0
    %1610 = vmatprep.subr.mxu0 0.0
    %1611 = vmatpush1.msra.mxu0 0.0
    %1612 = vmatprep.subr.mxu0 0.0
    %1613 = vmatpush1.msra.mxu0 0.0
    %1614 = vmatprep.subr.mxu0 0.0
    %1615 = vmatpush1.msra.mxu0 0.0
    %1616 = vmatprep.subr.mxu0 0.0
    %1617 = vmatpush1.msra.mxu0 0.0
    %1618 = vmatprep.subr.mxu0 0.0
    %1619 = vmatpush1.msra.mxu0 0.0
    %1620 = vmatprep.subr.mxu0 0.0
    %1621 = vmatpush1.msra.mxu0 0.0
    %1622 = vmatprep.subr.mxu0 0.0
    %1623 = vmatpush1.msra.mxu0 0.0
    %1624 = vmatprep.subr.mxu0 0.0
    %1625 = vmatpush1.msra.mxu0 0.0
    %1626 = vmatprep.subr.mxu0 0.0
    %1627 = vmatpush1.msra.mxu0 0.0
    %1628 = vmatprep.subr.mxu0 0.0
    %1629 = vmatpush1.msra.mxu0 0.0
    %1630 = vmatprep.subr.mxu0 0.0
    %1631 = vmatpush1.msra.mxu0 0.0
    %1632 = vmatprep.mubr.f32.mxu0 0.0
    %1633 = vmatmul.mubr.f32.gmra.mrb[0].mxu0 %v1483
    %v1634 = vpop.f32.mrb[0].mxu0
    %v1635 = vadd.f32 0.0, %v1634
    %v1636 = vpop.f32.mrb[0].mxu0
    %1637 = vdwg.mxu0
    %v1638 = vmax.f32 %v1552, %v1635
    %v1639 = vld [vmem:[%s8] sm:$0xf]
    %vm1640 = vcmask 64512
    %v1642 = vsel %vm1640, %v1639, 0
    %1644 = vmatprep.subr.mxu0 0.0
    %1645 = vmatpush1.msra.mxu0 %v1638
    %1646 = vmatprep.subr.mxu0 0.0
    %1647 = vmatpush1.msra.mxu0 0.0
    %1648 = vmatprep.subr.mxu0 0.0
    %1649 = vmatpush1.msra.mxu0 0.0
    %1650 = vmatprep.subr.mxu0 0.0
    %1651 = vmatpush1.msra.mxu0 0.0
    %1652 = vmatprep.subr.mxu0 0.0
    %1653 = vmatpush1.msra.mxu0 0.0
    %1654 = vmatprep.subr.mxu0 0.0
    %1655 = vmatpush1.msra.mxu0 0.0
    %1656 = vmatprep.subr.mxu0 0.0
    %1657 = vmatpush1.msra.mxu0 0.0
    %1658 = vmatprep.subr.mxu0 0.0
    %1659 = vmatpush1.msra.mxu0 0.0
    %1660 = vmatprep.subr.mxu0 0.0
    %1661 = vmatpush1.msra.mxu0 0.0
    %1662 = vmatprep.subr.mxu0 0.0
    %1663 = vmatpush1.msra.mxu0 0.0
    %1664 = vmatprep.subr.mxu0 0.0
    %1665 = vmatpush1.msra.mxu0 0.0
    %1666 = vmatprep.subr.mxu0 0.0
    %1667 = vmatpush1.msra.mxu0 0.0
    %1668 = vmatprep.subr.mxu0 0.0
    %1669 = vmatpush1.msra.mxu0 0.0
    %1670 = vmatprep.subr.mxu0 0.0
    %1671 = vmatpush1.msra.mxu0 0.0
    %1672 = vmatprep.subr.mxu0 0.0
    %1673 = vmatpush1.msra.mxu0 0.0
    %1674 = vmatprep.subr.mxu0 0.0
    %1675 = vmatpush1.msra.mxu0 0.0
    %1676 = vmatprep.subr.mxu0 0.0
    %1677 = vmatpush1.msra.mxu0 0.0
    %1678 = vmatprep.subr.mxu0 0.0
    %1679 = vmatpush1.msra.mxu0 0.0
    %1680 = vmatprep.subr.mxu0 0.0
    %1681 = vmatpush1.msra.mxu0 0.0
    %1682 = vmatprep.subr.mxu0 0.0
    %1683 = vmatpush1.msra.mxu0 0.0
    %1684 = vmatprep.subr.mxu0 0.0
    %1685 = vmatpush1.msra.mxu0 0.0
    %1686 = vmatprep.subr.mxu0 0.0
    %1687 = vmatpush1.msra.mxu0 0.0
    %1688 = vmatprep.subr.mxu0 0.0
    %1689 = vmatpush1.msra.mxu0 0.0
    %1690 = vmatprep.subr.mxu0 0.0
    %1691 = vmatpush1.msra.mxu0 0.0
    %1692 = vmatprep.subr.mxu0 0.0
    %1693 = vmatpush1.msra.mxu0 0.0
    %1694 = vmatprep.subr.mxu0 0.0
    %1695 = vmatpush1.msra.mxu0 0.0
    %1696 = vmatprep.subr.mxu0 0.0
    %1697 = vmatpush1.msra.mxu0 0.0
    %1698 = vmatprep.subr.mxu0 0.0
    %1699 = vmatpush1.msra.mxu0 0.0
    %1700 = vmatprep.subr.mxu0 0.0
    %1701 = vmatpush1.msra.mxu0 0.0
    %1702 = vmatprep.subr.mxu0 0.0
    %1703 = vmatpush1.msra.mxu0 0.0
    %1704 = vmatprep.subr.mxu0 0.0
    %1705 = vmatpush1.msra.mxu0 0.0
    %1706 = vmatprep.subr.mxu0 0.0
    %1707 = vmatpush1.msra.mxu0 0.0
    %1708 = vmatprep.mubr.f32.mxu0 0.0
    %1709 = vmatmul.mubr.f32.gmra.mrb[0].mxu0 %v1642
    %v1710 = vpop.f32.mrb[0].mxu0
    %v1711 = vadd.f32 0.0, %v1710
    %v1712 = vpop.f32.mrb[0].mxu0
    %1713 = vdwg.mxu0
    %s1714 = scalar_lea.vmem %s8, 4
    %v1715 = vld [vmem:[%s1714] sm:$0xf]
    %v1717 = vsel %vm1640, %v1715, 0
    %1719 = vmatprep.subr.mxu0 0.0
    %1720 = vmatpush1.msra.mxu0 %v1638
    %1721 = vmatprep.subr.mxu0 0.0
    %1722 = vmatpush1.msra.mxu0 0.0
    %1723 = vmatprep.subr.mxu0 0.0
    %1724 = vmatpush1.msra.mxu0 0.0
    %1725 = vmatprep.subr.mxu0 0.0
    %1726 = vmatpush1.msra.mxu0 0.0
    %1727 = vmatprep.subr.mxu0 0.0
    %1728 = vmatpush1.msra.mxu0 0.0
    %1729 = vmatprep.subr.mxu0 0.0
    %1730 = vmatpush1.msra.mxu0 0.0
    %1731 = vmatprep.subr.mxu0 0.0
    %1732 = vmatpush1.msra.mxu0 0.0
    %1733 = vmatprep.subr.mxu0 0.0
    %1734 = vmatpush1.msra.mxu0 0.0
    %1735 = vmatprep.subr.mxu0 0.0
    %1736 = vmatpush1.msra.mxu0 0.0
    %1737 = vmatprep.subr.mxu0 0.0
    %1738 = vmatpush1.msra.mxu0 0.0
    %1739 = vmatprep.subr.mxu0 0.0
    %1740 = vmatpush1.msra.mxu0 0.0
    %1741 = vmatprep.subr.mxu0 0.0
    %1742 = vmatpush1.msra.mxu0 0.0
    %1743 = vmatprep.subr.mxu0 0.0
    %1744 = vmatpush1.msra.mxu0 0.0
    %1745 = vmatprep.subr.mxu0 0.0
    %1746 = vmatpush1.msra.mxu0 0.0
    %1747 = vmatprep.subr.mxu0 0.0
    %1748 = vmatpush1.msra.mxu0 0.0
    %1749 = vmatprep.subr.mxu0 0.0
    %1750 = vmatpush1.msra.mxu0 0.0
    %1751 = vmatprep.subr.mxu0 0.0
    %1752 = vmatpush1.msra.mxu0 0.0
    %1753 = vmatprep.subr.mxu0 0.0
    %1754 = vmatpush1.msra.mxu0 0.0
    %1755 = vmatprep.subr.mxu0 0.0
    %1756 = vmatpush1.msra.mxu0 0.0
    %1757 = vmatprep.subr.mxu0 0.0
    %1758 = vmatpush1.msra.mxu0 0.0
    %1759 = vmatprep.subr.mxu0 0.0
    %1760 = vmatpush1.msra.mxu0 0.0
    %1761 = vmatprep.subr.mxu0 0.0
    %1762 = vmatpush1.msra.mxu0 0.0
    %1763 = vmatprep.subr.mxu0 0.0
    %1764 = vmatpush1.msra.mxu0 0.0
    %1765 = vmatprep.subr.mxu0 0.0
    %1766 = vmatpush1.msra.mxu0 0.0
    %1767 = vmatprep.subr.mxu0 0.0
    %1768 = vmatpush1.msra.mxu0 0.0
    %1769 = vmatprep.subr.mxu0 0.0
    %1770 = vmatpush1.msra.mxu0 0.0
    %1771 = vmatprep.subr.mxu0 0.0
    %1772 = vmatpush1.msra.mxu0 0.0
    %1773 = vmatprep.subr.mxu0 0.0
    %1774 = vmatpush1.msra.mxu0 0.0
    %1775 = vmatprep.subr.mxu0 0.0
    %1776 = vmatpush1.msra.mxu0 0.0
    %1777 = vmatprep.subr.mxu0 0.0
    %1778 = vmatpush1.msra.mxu0 0.0
    %1779 = vmatprep.subr.mxu0 0.0
    %1780 = vmatpush1.msra.mxu0 0.0
    %1781 = vmatprep.subr.mxu0 0.0
    %1782 = vmatpush1.msra.mxu0 0.0
    %1783 = vmatprep.mubr.f32.mxu0 0.0
    %1784 = vmatmul.mubr.f32.gmra.mrb[0].mxu0 %v1717
    %v1785 = vpop.f32.mrb[0].mxu0
    %v1786 = vadd.f32 0.0, %v1785
    %v1787 = vpop.f32.mrb[0].mxu0
    %1788 = vdwg.mxu0
    %v1789 = vmax.f32 %v1711, %v1786
    %v1790 = vld [vmem:[%s9] sm:$0xff]
    %v1791 = vld [vmem:[%s9 + $0x8] sm:$0xff]
    %v1792 = vld [vmem:[%s9 + $0x10] sm:$0xff]
    %v1793 = vld [vmem:[%s9 + $0x18] sm:$0xff]
    %v1794 = vld [vmem:[%s9 + $0x20] sm:$0xff]
    %v1795 = vld [vmem:[%s9 + $0x28] sm:$0xff]
    %s1796 = scalar_lea.vmem %s9, 48
    %v1797 = vld [vmem:[%s1796] sm:$0xff]
    %v1798 = vld [vmem:[%s1796 + $0x8] sm:$0xff]
    %v1799 = vld [vmem:[%s1796 + $0x10] sm:$0xff]
    %v1800 = vld [vmem:[%s1796 + $0x18] sm:$0xff]
    %v1801 = vld [vmem:[%s1796 + $0x20] sm:$0xff]
    %v1802 = vld [vmem:[%s1796 + $0x28] sm:$0xff]
    %v1804 = vrot.slane %v1789, 1
    %vm1805 = vcmask 392192
    %v1806 = vsel %vm1805, %v1804, 0
    %1808 = vmatprep.subr.mxu0 0.0
    %1809 = vmatpush1.msra.mxu0 %v1797
    %1810 = vmatprep.subr.mxu0 0.0
    %1811 = vmatpush1.msra.mxu0 %v1798
    %1812 = vmatprep.subr.mxu0 0.0
    %1813 = vmatpush1.msra.mxu0 %v1799
    %1814 = vmatprep.subr.mxu0 0.0
    %1815 = vmatpush1.msra.mxu0 %v1800
    %1816 = vmatprep.subr.mxu0 0.0
    %1817 = vmatpush1.msra.mxu0 %v1801
    %1818 = vmatprep.subr.mxu0 0.0
    %1819 = vmatpush1.msra.mxu0 %v1802
    %1820 = vmatprep.subr.mxu0 0.0
    %1821 = vmatpush1.msra.mxu0 0.0
    %1822 = vmatprep.subr.mxu0 0.0
    %1823 = vmatpush1.msra.mxu0 0.0
    %1824 = vmatprep.subr.mxu0 0.0
    %1825 = vmatpush1.msra.mxu0 0.0
    %1826 = vmatprep.subr.mxu0 0.0
    %1827 = vmatpush1.msra.mxu0 0.0
    %1828 = vmatprep.subr.mxu0 0.0
    %1829 = vmatpush1.msra.mxu0 0.0
    %1830 = vmatprep.subr.mxu0 0.0
    %1831 = vmatpush1.msra.mxu0 0.0
    %1832 = vmatprep.subr.mxu0 0.0
    %1833 = vmatpush1.msra.mxu0 0.0
    %1834 = vmatprep.subr.mxu0 0.0
    %1835 = vmatpush1.msra.mxu0 0.0
    %1836 = vmatprep.subr.mxu0 0.0
    %1837 = vmatpush1.msra.mxu0 0.0
    %1838 = vmatprep.subr.mxu0 0.0
    %1839 = vmatpush1.msra.mxu0 0.0
    %1840 = vmatprep.subr.mxu0 0.0
    %1841 = vmatpush1.msra.mxu0 0.0
    %1842 = vmatprep.subr.mxu0 0.0
    %1843 = vmatpush1.msra.mxu0 0.0
    %1844 = vmatprep.subr.mxu0 0.0
    %1845 = vmatpush1.msra.mxu0 0.0
    %1846 = vmatprep.subr.mxu0 0.0
    %1847 = vmatpush1.msra.mxu0 0.0
    %1848 = vmatprep.subr.mxu0 0.0
    %1849 = vmatpush1.msra.mxu0 0.0
    %1850 = vmatprep.subr.mxu0 0.0
    %1851 = vmatpush1.msra.mxu0 0.0
    %1852 = vmatprep.subr.mxu0 0.0
    %1853 = vmatpush1.msra.mxu0 0.0
    %1854 = vmatprep.subr.mxu0 0.0
    %1855 = vmatpush1.msra.mxu0 0.0
    %1856 = vmatprep.subr.mxu0 0.0
    %1857 = vmatpush1.msra.mxu0 0.0
    %1858 = vmatprep.subr.mxu0 0.0
    %1859 = vmatpush1.msra.mxu0 0.0
    %1860 = vmatprep.subr.mxu0 0.0
    %1861 = vmatpush1.msra.mxu0 0.0
    %1862 = vmatprep.subr.mxu0 0.0
    %1863 = vmatpush1.msra.mxu0 0.0
    %1864 = vmatprep.subr.mxu0 0.0
    %1865 = vmatpush1.msra.mxu0 0.0
    %1866 = vmatprep.subr.mxu0 0.0
    %1867 = vmatpush1.msra.mxu0 0.0
    %1868 = vmatprep.subr.mxu0 0.0
    %1869 = vmatpush1.msra.mxu0 0.0
    %1870 = vmatprep.subr.mxu0 0.0
    %1871 = vmatpush1.msra.mxu0 0.0
    %1872 = vmatprep.mubr.f32.mxu0 0.0
    %1873 = vmatmul.mubr.f32.gmra.mrb[0].mxu0 %v1806
    %v1874 = vpop.f32.mrb[0].mxu0
    %v1875 = vadd.f32 0.0, %v1874
    %v1876 = vpop.f32.mrb[0].mxu0
    %1877 = vdwg.mxu0
    %v1878 = vsel %vm1805, %v1789, 0
    %1880 = vmatprep.subr.mxu0 0.0
    %1881 = vmatpush1.msra.mxu0 %v1790
    %1882 = vmatprep.subr.mxu0 0.0
    %1883 = vmatpush1.msra.mxu0 %v1791
    %1884 = vmatprep.subr.mxu0 0.0
    %1885 = vmatpush1.msra.mxu0 %v1792
    %1886 = vmatprep.subr.mxu0 0.0
    %1887 = vmatpush1.msra.mxu0 %v1793
    %1888 = vmatprep.subr.mxu0 0.0
    %1889 = vmatpush1.msra.mxu0 %v1794
    %1890 = vmatprep.subr.mxu0 0.0
    %1891 = vmatpush1.msra.mxu0 %v1795
    %1892 = vmatprep.subr.mxu0 0.0
    %1893 = vmatpush1.msra.mxu0 0.0
    %1894 = vmatprep.subr.mxu0 0.0
    %1895 = vmatpush1.msra.mxu0 0.0
    %1896 = vmatprep.subr.mxu0 0.0
    %1897 = vmatpush1.msra.mxu0 0.0
    %1898 = vmatprep.subr.mxu0 0.0
    %1899 = vmatpush1.msra.mxu0 0.0
    %1900 = vmatprep.subr.mxu0 0.0
    %1901 = vmatpush1.msra.mxu0 0.0
    %1902 = vmatprep.subr.mxu0 0.0
    %1903 = vmatpush1.msra.mxu0 0.0
    %1904 = vmatprep.subr.mxu0 0.0
    %1905 = vmatpush1.msra.mxu0 0.0
    %1906 = vmatprep.subr.mxu0 0.0
    %1907 = vmatpush1.msra.mxu0 0.0
    %1908 = vmatprep.subr.mxu0 0.0
    %1909 = vmatpush1.msra.mxu0 0.0
    %1910 = vmatprep.subr.mxu0 0.0
    %1911 = vmatpush1.msra.mxu0 0.0
    %1912 = vmatprep.subr.mxu0 0.0
    %1913 = vmatpush1.msra.mxu0 0.0
    %1914 = vmatprep.subr.mxu0 0.0
    %1915 = vmatpush1.msra.mxu0 0.0
    %1916 = vmatprep.subr.mxu0 0.0
    %1917 = vmatpush1.msra.mxu0 0.0
    %1918 = vmatprep.subr.mxu0 0.0
    %1919 = vmatpush1.msra.mxu0 0.0
    %1920 = vmatprep.subr.mxu0 0.0
    %1921 = vmatpush1.msra.mxu0 0.0
    %1922 = vmatprep.subr.mxu0 0.0
    %1923 = vmatpush1.msra.mxu0 0.0
    %1924 = vmatprep.subr.mxu0 0.0
    %1925 = vmatpush1.msra.mxu0 0.0
    %1926 = vmatprep.subr.mxu0 0.0
    %1927 = vmatpush1.msra.mxu0 0.0
    %1928 = vmatprep.subr.mxu0 0.0
    %1929 = vmatpush1.msra.mxu0 0.0
    %1930 = vmatprep.subr.mxu0 0.0
    %1931 = vmatpush1.msra.mxu0 0.0
    %1932 = vmatprep.subr.mxu0 0.0
    %1933 = vmatpush1.msra.mxu0 0.0
    %1934 = vmatprep.subr.mxu0 0.0
    %1935 = vmatpush1.msra.mxu0 0.0
    %1936 = vmatprep.subr.mxu0 0.0
    %1937 = vmatpush1.msra.mxu0 0.0
    %1938 = vmatprep.subr.mxu0 0.0
    %1939 = vmatpush1.msra.mxu0 0.0
    %1940 = vmatprep.subr.mxu0 0.0
    %1941 = vmatpush1.msra.mxu0 0.0
    %1942 = vmatprep.subr.mxu0 0.0
    %1943 = vmatpush1.msra.mxu0 0.0
    %1944 = vmatprep.mubr.f32.mxu0 0.0
    %1945 = vmatmul.mubr.f32.gmra.mrb[0].mxu0 %v1878
    %v1946 = vpop.f32.mrb[0].mxu0
    %v1947 = vadd.f32 %v1875, %v1946
    %v1948 = vpop.f32.mrb[0].mxu0
    %1949 = vdwg.mxu0
    %s1950 = scalar_lea.vmem %s9, 96
    %v1951 = vld [vmem:[%s1950] sm:$0xff]
    %v1952 = vld [vmem:[%s1950 + $0x8] sm:$0xff]
    %v1953 = vld [vmem:[%s1950 + $0x10] sm:$0xff]
    %v1954 = vld [vmem:[%s1950 + $0x18] sm:$0xff]
    %v1955 = vld [vmem:[%s1950 + $0x20] sm:$0xff]
    %v1956 = vld [vmem:[%s1950 + $0x28] sm:$0xff]
    %v1957 = vrot.slane %v1789, 2
    %v1958 = vsel %vm1805, %v1957, 0
    %1960 = vmatprep.subr.mxu0 0.0
    %1961 = vmatpush1.msra.mxu0 %v1951
    %1962 = vmatprep.subr.mxu0 0.0
    %1963 = vmatpush1.msra.mxu0 %v1952
    %1964 = vmatprep.subr.mxu0 0.0
    %1965 = vmatpush1.msra.mxu0 %v1953
    %1966 = vmatprep.subr.mxu0 0.0
    %1967 = vmatpush1.msra.mxu0 %v1954
    %1968 = vmatprep.subr.mxu0 0.0
    %1969 = vmatpush1.msra.mxu0 %v1955
    %1970 = vmatprep.subr.mxu0 0.0
    %1971 = vmatpush1.msra.mxu0 %v1956
    %1972 = vmatprep.subr.mxu0 0.0
    %1973 = vmatpush1.msra.mxu0 0.0
    %1974 = vmatprep.subr.mxu0 0.0
    %1975 = vmatpush1.msra.mxu0 0.0
    %1976 = vmatprep.subr.mxu0 0.0
    %1977 = vmatpush1.msra.mxu0 0.0
    %1978 = vmatprep.subr.mxu0 0.0
    %1979 = vmatpush1.msra.mxu0 0.0
    %1980 = vmatprep.subr.mxu0 0.0
    %1981 = vmatpush1.msra.mxu0 0.0
    %1982 = vmatprep.subr.mxu0 0.0
    %1983 = vmatpush1.msra.mxu0 0.0
    %1984 = vmatprep.subr.mxu0 0.0
    %1985 = vmatpush1.msra.mxu0 0.0
    %1986 = vmatprep.subr.mxu0 0.0
    %1987 = vmatpush1.msra.mxu0 0.0
    %1988 = vmatprep.subr.mxu0 0.0
    %1989 = vmatpush1.msra.mxu0 0.0
    %1990 = vmatprep.subr.mxu0 0.0
    %1991 = vmatpush1.msra.mxu0 0.0
    %1992 = vmatprep.subr.mxu0 0.0
    %1993 = vmatpush1.msra.mxu0 0.0
    %1994 = vmatprep.subr.mxu0 0.0
    %1995 = vmatpush1.msra.mxu0 0.0
    %1996 = vmatprep.subr.mxu0 0.0
    %1997 = vmatpush1.msra.mxu0 0.0
    %1998 = vmatprep.subr.mxu0 0.0
    %1999 = vmatpush1.msra.mxu0 0.0
    %2000 = vmatprep.subr.mxu0 0.0
    %2001 = vmatpush1.msra.mxu0 0.0
    %2002 = vmatprep.subr.mxu0 0.0
    %2003 = vmatpush1.msra.mxu0 0.0
    %2004 = vmatprep.subr.mxu0 0.0
    %2005 = vmatpush1.msra.mxu0 0.0
    %2006 = vmatprep.subr.mxu0 0.0
    %2007 = vmatpush1.msra.mxu0 0.0
    %2008 = vmatprep.subr.mxu0 0.0
    %2009 = vmatpush1.msra.mxu0 0.0
    %2010 = vmatprep.subr.mxu0 0.0
    %2011 = vmatpush1.msra.mxu0 0.0
    %2012 = vmatprep.subr.mxu0 0.0
    %2013 = vmatpush1.msra.mxu0 0.0
    %2014 = vmatprep.subr.mxu0 0.0
    %2015 = vmatpush1.msra.mxu0 0.0
    %2016 = vmatprep.subr.mxu0 0.0
    %2017 = vmatpush1.msra.mxu0 0.0
    %2018 = vmatprep.subr.mxu0 0.0
    %2019 = vmatpush1.msra.mxu0 0.0
    %2020 = vmatprep.subr.mxu0 0.0
    %2021 = vmatpush1.msra.mxu0 0.0
    %2022 = vmatprep.subr.mxu0 0.0
    %2023 = vmatpush1.msra.mxu0 0.0
    %2024 = vmatprep.mubr.f32.mxu0 0.0
    %2025 = vmatmul.mubr.f32.gmra.mrb[0].mxu0 %v1958
    %v2026 = vpop.f32.mrb[0].mxu0
    %v2027 = vadd.f32 0.0, %v2026
    %v2028 = vpop.f32.mrb[0].mxu0
    %2029 = vdwg.mxu0
    %v2030 = vadd.f32 %v1947, %v2027
    %s2031 = scalar_lea.vmem %s9, 144
    %v2032 = vld [vmem:[%s2031] sm:$0xff]
    %v2033 = vld [vmem:[%s2031 + $0x8] sm:$0xff]
    %v2034 = vld [vmem:[%s2031 + $0x10] sm:$0xff]
    %v2035 = vld [vmem:[%s2031 + $0x18] sm:$0xff]
    %v2036 = vld [vmem:[%s2031 + $0x20] sm:$0xff]
    %v2037 = vld [vmem:[%s2031 + $0x28] sm:$0xff]
    %v2038 = vrot.slane %v1789, 3
    %v2039 = vsel %vm1805, %v2038, 0
    %2041 = vmatprep.subr.mxu0 0.0
    %2042 = vmatpush1.msra.mxu0 %v2032
    %2043 = vmatprep.subr.mxu0 0.0
    %2044 = vmatpush1.msra.mxu0 %v2033
    %2045 = vmatprep.subr.mxu0 0.0
    %2046 = vmatpush1.msra.mxu0 %v2034
    %2047 = vmatprep.subr.mxu0 0.0
    %2048 = vmatpush1.msra.mxu0 %v2035
    %2049 = vmatprep.subr.mxu0 0.0
    %2050 = vmatpush1.msra.mxu0 %v2036
    %2051 = vmatprep.subr.mxu0 0.0
    %2052 = vmatpush1.msra.mxu0 %v2037
    %2053 = vmatprep.subr.mxu0 0.0
    %2054 = vmatpush1.msra.mxu0 0.0
    %2055 = vmatprep.subr.mxu0 0.0
    %2056 = vmatpush1.msra.mxu0 0.0
    %2057 = vmatprep.subr.mxu0 0.0
    %2058 = vmatpush1.msra.mxu0 0.0
    %2059 = vmatprep.subr.mxu0 0.0
    %2060 = vmatpush1.msra.mxu0 0.0
    %2061 = vmatprep.subr.mxu0 0.0
    %2062 = vmatpush1.msra.mxu0 0.0
    %2063 = vmatprep.subr.mxu0 0.0
    %2064 = vmatpush1.msra.mxu0 0.0
    %2065 = vmatprep.subr.mxu0 0.0
    %2066 = vmatpush1.msra.mxu0 0.0
    %2067 = vmatprep.subr.mxu0 0.0
    %2068 = vmatpush1.msra.mxu0 0.0
    %2069 = vmatprep.subr.mxu0 0.0
    %2070 = vmatpush1.msra.mxu0 0.0
    %2071 = vmatprep.subr.mxu0 0.0
    %2072 = vmatpush1.msra.mxu0 0.0
    %2073 = vmatprep.subr.mxu0 0.0
    %2074 = vmatpush1.msra.mxu0 0.0
    %2075 = vmatprep.subr.mxu0 0.0
    %2076 = vmatpush1.msra.mxu0 0.0
    %2077 = vmatprep.subr.mxu0 0.0
    %2078 = vmatpush1.msra.mxu0 0.0
    %2079 = vmatprep.subr.mxu0 0.0
    %2080 = vmatpush1.msra.mxu0 0.0
    %2081 = vmatprep.subr.mxu0 0.0
    %2082 = vmatpush1.msra.mxu0 0.0
    %2083 = vmatprep.subr.mxu0 0.0
    %2084 = vmatpush1.msra.mxu0 0.0
    %2085 = vmatprep.subr.mxu0 0.0
    %2086 = vmatpush1.msra.mxu0 0.0
    %2087 = vmatprep.subr.mxu0 0.0
    %2088 = vmatpush1.msra.mxu0 0.0
    %2089 = vmatprep.subr.mxu0 0.0
    %2090 = vmatpush1.msra.mxu0 0.0
    %2091 = vmatprep.subr.mxu0 0.0
    %2092 = vmatpush1.msra.mxu0 0.0
    %2093 = vmatprep.subr.mxu0 0.0
    %2094 = vmatpush1.msra.mxu0 0.0
    %2095 = vmatprep.subr.mxu0 0.0
    %2096 = vmatpush1.msra.mxu0 0.0
    %2097 = vmatprep.subr.mxu0 0.0
    %2098 = vmatpush1.msra.mxu0 0.0
    %2099 = vmatprep.subr.mxu0 0.0
    %2100 = vmatpush1.msra.mxu0 0.0
    %2101 = vmatprep.subr.mxu0 0.0
    %2102 = vmatpush1.msra.mxu0 0.0
    %2103 = vmatprep.subr.mxu0 0.0
    %2104 = vmatpush1.msra.mxu0 0.0
    %2105 = vmatprep.mubr.f32.mxu0 0.0
    %2106 = vmatmul.mubr.f32.gmra.mrb[0].mxu0 %v2039
    %v2107 = vpop.f32.mrb[0].mxu0
    %v2108 = vadd.f32 0.0, %v2107
    %v2109 = vpop.f32.mrb[0].mxu0
    %2110 = vdwg.mxu0
    %v2111 = vadd.f32 %v2030, %v2108
    %2112 = vst [vmem:[#allocation2] sm:$0x1] %v2111
    %s2113 = scalar_lea.vmem %s0, 32
    %v2114 = vld [vmem:[%s2113] sm:$0xff]
    %v2115 = vld [vmem:[%s2113 + $0x8] sm:$0xff]
    %v2116 = vld [vmem:[%s2113 + $0x10] sm:$0xff]
    %v2117 = vld [vmem:[%s2113 + $0x18] sm:$0xf]
    %v2118 = vld [vmem:[%s1] sm:$0xff]
    %v2119 = vld [vmem:[%s1 + $0x8] sm:$0xff]
    %v2120 = vld [vmem:[%s1 + $0x10] sm:$0xff]
    %v2121 = vld [vmem:[%s1 + $0x18] sm:$0xff]
    %v2122 = vld [vmem:[%s1 + $0x20] sm:$0xff]
    %v2123 = vld [vmem:[%s1 + $0x28] sm:$0xff]
    %v2124 = vld [vmem:[%s1 + $0x30] sm:$0xf]
    %v2125 = vld [vmem:[%s1 + $0x38] sm:$0xf]
    %v2126 = vld [vmem:[%s63] sm:$0xff]
    %v2127 = vld [vmem:[%s63 + $0x8] sm:$0xff]
    %v2128 = vld [vmem:[%s63 + $0x10] sm:$0xff]
    %v2129 = vld [vmem:[%s63 + $0x18] sm:$0xff]
    %v2130 = vld [vmem:[%s63 + $0x20] sm:$0xff]
    %v2131 = vld [vmem:[%s63 + $0x28] sm:$0xff]
    %v2132 = vld [vmem:[%s63 + $0x30] sm:$0xf]
    %v2133 = vld [vmem:[%s63 + $0x38] sm:$0xf]
    %v2138 = vrot.slane %v2114, 1
    %v2139 = vrot.slane %v2115, 1
    %v2140 = vsel %vm76, %v2138, %v2139
    %v2141 = vrot.slane %v2116, 1
    %v2142 = vsel %vm76, %v2139, %v2141
    %v2143 = vrot.slane %v2117, 1
    %v2144 = vsel %vm76, %v2141, %v2143
    %v2145 = vsel %vm84, %v2140, 0
    %v2147 = vsel %vm84, %v2142, 0
    %v2149 = vsel %vm84, %v2144, 0
    %v2152 = vsel %vm91, %v2132, 0
    %v2155 = vsel %vm91, %v2133, 0
    %2157 = vmatprep.subr.mxu0 %v2127
    %2158 = vmatpush1.msra.mxu0 %v2126
    %2159 = vmatprep.subr.mxu0 %v2129
    %2160 = vmatpush1.msra.mxu0 %v2128
    %2161 = vmatprep.subr.mxu0 %v2131
    %2162 = vmatpush1.msra.mxu0 %v2130
    %2163 = vmatprep.subr.mxu0 %v2155
    %2164 = vmatpush1.msra.mxu0 %v2152
    %2165 = vmatprep.subr.mxu0 0.0
    %2166 = vmatpush1.msra.mxu0 0.0
    %2167 = vmatprep.subr.mxu0 0.0
    %2168 = vmatpush1.msra.mxu0 0.0
    %2169 = vmatprep.subr.mxu0 0.0
    %2170 = vmatpush1.msra.mxu0 0.0
    %2171 = vmatprep.subr.mxu0 0.0
    %2172 = vmatpush1.msra.mxu0 0.0
    %2173 = vmatprep.subr.mxu0 0.0
    %2174 = vmatpush1.msra.mxu0 0.0
    %2175 = vmatprep.subr.mxu0 0.0
    %2176 = vmatpush1.msra.mxu0 0.0
    %2177 = vmatprep.subr.mxu0 0.0
    %2178 = vmatpush1.msra.mxu0 0.0
    %2179 = vmatprep.subr.mxu0 0.0
    %2180 = vmatpush1.msra.mxu0 0.0
    %2181 = vmatprep.subr.mxu0 0.0
    %2182 = vmatpush1.msra.mxu0 0.0
    %2183 = vmatprep.subr.mxu0 0.0
    %2184 = vmatpush1.msra.mxu0 0.0
    %2185 = vmatprep.subr.mxu0 0.0
    %2186 = vmatpush1.msra.mxu0 0.0
    %2187 = vmatprep.subr.mxu0 0.0
    %2188 = vmatpush1.msra.mxu0 0.0
    %2189 = vmatprep.subr.mxu0 0.0
    %2190 = vmatpush1.msra.mxu0 0.0
    %2191 = vmatprep.subr.mxu0 0.0
    %2192 = vmatpush1.msra.mxu0 0.0
    %2193 = vmatprep.subr.mxu0 0.0
    %2194 = vmatpush1.msra.mxu0 0.0
    %2195 = vmatprep.subr.mxu0 0.0
    %2196 = vmatpush1.msra.mxu0 0.0
    %2197 = vmatprep.subr.mxu0 0.0
    %2198 = vmatpush1.msra.mxu0 0.0
    %2199 = vmatprep.subr.mxu0 0.0
    %2200 = vmatpush1.msra.mxu0 0.0
    %2201 = vmatprep.subr.mxu0 0.0
    %2202 = vmatpush1.msra.mxu0 0.0
    %2203 = vmatprep.subr.mxu0 0.0
    %2204 = vmatpush1.msra.mxu0 0.0
    %2205 = vmatprep.subr.mxu0 0.0
    %2206 = vmatpush1.msra.mxu0 0.0
    %2207 = vmatprep.subr.mxu0 0.0
    %2208 = vmatpush1.msra.mxu0 0.0
    %2209 = vmatprep.subr.mxu0 0.0
    %2210 = vmatpush1.msra.mxu0 0.0
    %2211 = vmatprep.subr.mxu0 0.0
    %2212 = vmatpush1.msra.mxu0 0.0
    %2213 = vmatprep.subr.mxu0 0.0
    %2214 = vmatpush1.msra.mxu0 0.0
    %2215 = vmatprep.subr.mxu0 0.0
    %2216 = vmatpush1.msra.mxu0 0.0
    %2217 = vmatprep.subr.mxu0 0.0
    %2218 = vmatpush1.msra.mxu0 0.0
    %2219 = vmatprep.subr.mxu0 0.0
    %2220 = vmatpush1.msra.mxu0 0.0
    %2221 = vmatprep.mubr.f32.mxu0 0.0
    %2222 = vmatmul.mubr.f32.gmra.mrb[0].mxu0 %v2145
    %v2223 = vpop.f32.mrb[0].mxu0
    %v2224 = vadd.f32 0.0, %v2223
    %v2225 = vpop.f32.mrb[0].mxu0
    %v2226 = vadd.f32 0.0, %v2225
    %2227 = vmatprep.mubr.f32.mxu0 0.0
    %2228 = vmatmul.mubr.f32.gmra.mrb[0].mxu0 %v2147
    %v2229 = vpop.f32.mrb[0].mxu0
    %v2230 = vadd.f32 0.0, %v2229
    %v2231 = vpop.f32.mrb[0].mxu0
    %v2232 = vadd.f32 0.0, %v2231
    %2233 = vmatprep.mubr.f32.mxu0 0.0
    %2234 = vmatmul.mubr.f32.gmra.mrb[0].mxu0 %v2149
    %v2235 = vpop.f32.mrb[0].mxu0
    %v2236 = vadd.f32 0.0, %v2235
    %v2237 = vpop.f32.mrb[0].mxu0
    %v2238 = vadd.f32 0.0, %v2237
    %2239 = vdwg.mxu0
    %v2240 = vsel %vm84, %v2114, 0
    %v2242 = vsel %vm84, %v2115, 0
    %v2244 = vsel %vm84, %v2116, 0
    %v2247 = vsel %vm91, %v2124, 0
    %v2250 = vsel %vm91, %v2125, 0
    %2252 = vmatprep.subr.mxu0 %v2119
    %2253 = vmatpush1.msra.mxu0 %v2118
    %2254 = vmatprep.subr.mxu0 %v2121
    %2255 = vmatpush1.msra.mxu0 %v2120
    %2256 = vmatprep.subr.mxu0 %v2123
    %2257 = vmatpush1.msra.mxu0 %v2122
    %2258 = vmatprep.subr.mxu0 %v2250
    %2259 = vmatpush1.msra.mxu0 %v2247
    %2260 = vmatprep.subr.mxu0 0.0
    %2261 = vmatpush1.msra.mxu0 0.0
    %2262 = vmatprep.subr.mxu0 0.0
    %2263 = vmatpush1.msra.mxu0 0.0
    %2264 = vmatprep.subr.mxu0 0.0
    %2265 = vmatpush1.msra.mxu0 0.0
    %2266 = vmatprep.subr.mxu0 0.0
    %2267 = vmatpush1.msra.mxu0 0.0
    %2268 = vmatprep.subr.mxu0 0.0
    %2269 = vmatpush1.msra.mxu0 0.0
    %2270 = vmatprep.subr.mxu0 0.0
    %2271 = vmatpush1.msra.mxu0 0.0
    %2272 = vmatprep.subr.mxu0 0.0
    %2273 = vmatpush1.msra.mxu0 0.0
    %2274 = vmatprep.subr.mxu0 0.0
    %2275 = vmatpush1.msra.mxu0 0.0
    %2276 = vmatprep.subr.mxu0 0.0
    %2277 = vmatpush1.msra.mxu0 0.0
    %2278 = vmatprep.subr.mxu0 0.0
    %2279 = vmatpush1.msra.mxu0 0.0
    %2280 = vmatprep.subr.mxu0 0.0
    %2281 = vmatpush1.msra.mxu0 0.0
    %2282 = vmatprep.subr.mxu0 0.0
    %2283 = vmatpush1.msra.mxu0 0.0
    %2284 = vmatprep.subr.mxu0 0.0
    %2285 = vmatpush1.msra.mxu0 0.0
    %2286 = vmatprep.subr.mxu0 0.0
    %2287 = vmatpush1.msra.mxu0 0.0
    %2288 = vmatprep.subr.mxu0 0.0
    %2289 = vmatpush1.msra.mxu0 0.0
    %2290 = vmatprep.subr.mxu0 0.0
    %2291 = vmatpush1.msra.mxu0 0.0
    %2292 = vmatprep.subr.mxu0 0.0
    %2293 = vmatpush1.msra.mxu0 0.0
    %2294 = vmatprep.subr.mxu0 0.0
    %2295 = vmatpush1.msra.mxu0 0.0
    %2296 = vmatprep.subr.mxu0 0.0
    %2297 = vmatpush1.msra.mxu0 0.0
    %2298 = vmatprep.subr.mxu0 0.0
    %2299 = vmatpush1.msra.mxu0 0.0
    %2300 = vmatprep.subr.mxu0 0.0
    %2301 = vmatpush1.msra.mxu0 0.0
    %2302 = vmatprep.subr.mxu0 0.0
    %2303 = vmatpush1.msra.mxu0 0.0
    %2304 = vmatprep.subr.mxu0 0.0
    %2305 = vmatpush1.msra.mxu0 0.0
    %2306 = vmatprep.subr.mxu0 0.0
    %2307 = vmatpush1.msra.mxu0 0.0
    %2308 = vmatprep.subr.mxu0 0.0
    %2309 = vmatpush1.msra.mxu0 0.0
    %2310 = vmatprep.subr.mxu0 0.0
    %2311 = vmatpush1.msra.mxu0 0.0
    %2312 = vmatprep.subr.mxu0 0.0
    %2313 = vmatpush1.msra.mxu0 0.0
    %2314 = vmatprep.subr.mxu0 0.0
    %2315 = vmatpush1.msra.mxu0 0.0
    %2316 = vmatprep.mubr.f32.mxu0 0.0
    %2317 = vmatmul.mubr.f32.gmra.mrb[0].mxu0 %v2240
    %v2318 = vpop.f32.mrb[0].mxu0
    %v2319 = vadd.f32 %v2224, %v2318
    %v2320 = vpop.f32.mrb[0].mxu0
    %v2321 = vadd.f32 %v2226, %v2320
    %2322 = vmatprep.mubr.f32.mxu0 0.0
    %2323 = vmatmul.mubr.f32.gmra.mrb[0].mxu0 %v2242
    %v2324 = vpop.f32.mrb[0].mxu0
    %v2325 = vadd.f32 %v2230, %v2324
    %v2326 = vpop.f32.mrb[0].mxu0
    %v2327 = vadd.f32 %v2232, %v2326
    %2328 = vmatprep.mubr.f32.mxu0 0.0
    %2329 = vmatmul.mubr.f32.gmra.mrb[0].mxu0 %v2244
    %v2330 = vpop.f32.mrb[0].mxu0
    %v2331 = vadd.f32 %v2236, %v2330
    %v2332 = vpop.f32.mrb[0].mxu0
    %v2333 = vadd.f32 %v2238, %v2332
    %2334 = vdwg.mxu0
    %v2335 = vld [vmem:[%s276] sm:$0xff]
    %v2336 = vld [vmem:[%s276 + $0x8] sm:$0xff]
    %v2337 = vld [vmem:[%s276 + $0x10] sm:$0xff]
    %v2338 = vld [vmem:[%s276 + $0x18] sm:$0xff]
    %v2339 = vld [vmem:[%s276 + $0x20] sm:$0xff]
    %v2340 = vld [vmem:[%s276 + $0x28] sm:$0xff]
    %v2341 = vld [vmem:[%s276 + $0x30] sm:$0xf]
    %v2342 = vld [vmem:[%s276 + $0x38] sm:$0xf]
    %v2343 = vrot.slane %v2114, 2
    %v2344 = vrot.slane %v2115, 2
    %v2345 = vsel %vm285, %v2343, %v2344
    %v2346 = vrot.slane %v2116, 2
    %v2347 = vsel %vm285, %v2344, %v2346
    %v2348 = vrot.slane %v2117, 2
    %v2349 = vsel %vm285, %v2346, %v2348
    %v2350 = vsel %vm84, %v2345, 0
    %v2352 = vsel %vm84, %v2347, 0
    %v2354 = vsel %vm84, %v2349, 0
    %v2357 = vsel %vm91, %v2341, 0
    %v2360 = vsel %vm91, %v2342, 0
    %2362 = vmatprep.subr.mxu0 %v2336
    %2363 = vmatpush1.msra.mxu0 %v2335
    %2364 = vmatprep.subr.mxu0 %v2338
    %2365 = vmatpush1.msra.mxu0 %v2337
    %2366 = vmatprep.subr.mxu0 %v2340
    %2367 = vmatpush1.msra.mxu0 %v2339
    %2368 = vmatprep.subr.mxu0 %v2360
    %2369 = vmatpush1.msra.mxu0 %v2357
    %2370 = vmatprep.subr.mxu0 0.0
    %2371 = vmatpush1.msra.mxu0 0.0
    %2372 = vmatprep.subr.mxu0 0.0
    %2373 = vmatpush1.msra.mxu0 0.0
    %2374 = vmatprep.subr.mxu0 0.0
    %2375 = vmatpush1.msra.mxu0 0.0
    %2376 = vmatprep.subr.mxu0 0.0
    %2377 = vmatpush1.msra.mxu0 0.0
    %2378 = vmatprep.subr.mxu0 0.0
    %2379 = vmatpush1.msra.mxu0 0.0
    %2380 = vmatprep.subr.mxu0 0.0
    %2381 = vmatpush1.msra.mxu0 0.0
    %2382 = vmatprep.subr.mxu0 0.0
    %2383 = vmatpush1.msra.mxu0 0.0
    %2384 = vmatprep.subr.mxu0 0.0
    %2385 = vmatpush1.msra.mxu0 0.0
    %2386 = vmatprep.subr.mxu0 0.0
    %2387 = vmatpush1.msra.mxu0 0.0
    %2388 = vmatprep.subr.mxu0 0.0
    %2389 = vmatpush1.msra.mxu0 0.0
    %2390 = vmatprep.subr.mxu0 0.0
    %2391 = vmatpush1.msra.mxu0 0.0
    %2392 = vmatprep.subr.mxu0 0.0
    %2393 = vmatpush1.msra.mxu0 0.0
    %2394 = vmatprep.subr.mxu0 0.0
    %2395 = vmatpush1.msra.mxu0 0.0
    %2396 = vmatprep.subr.mxu0 0.0
    %2397 = vmatpush1.msra.mxu0 0.0
    %2398 = vmatprep.subr.mxu0 0.0
    %2399 = vmatpush1.msra.mxu0 0.0
    %2400 = vmatprep.subr.mxu0 0.0
    %2401 = vmatpush1.msra.mxu0 0.0
    %2402 = vmatprep.subr.mxu0 0.0
    %2403 = vmatpush1.msra.mxu0 0.0
    %2404 = vmatprep.subr.mxu0 0.0
    %2405 = vmatpush1.msra.mxu0 0.0
    %2406 = vmatprep.subr.mxu0 0.0
    %2407 = vmatpush1.msra.mxu0 0.0
    %2408 = vmatprep.subr.mxu0 0.0
    %2409 = vmatpush1.msra.mxu0 0.0
    %2410 = vmatprep.subr.mxu0 0.0
    %2411 = vmatpush1.msra.mxu0 0.0
    %2412 = vmatprep.subr.mxu0 0.0
    %2413 = vmatpush1.msra.mxu0 0.0
    %2414 = vmatprep.subr.mxu0 0.0
    %2415 = vmatpush1.msra.mxu0 0.0
    %2416 = vmatprep.subr.mxu0 0.0
    %2417 = vmatpush1.msra.mxu0 0.0
    %2418 = vmatprep.subr.mxu0 0.0
    %2419 = vmatpush1.msra.mxu0 0.0
    %2420 = vmatprep.subr.mxu0 0.0
    %2421 = vmatpush1.msra.mxu0 0.0
    %2422 = vmatprep.subr.mxu0 0.0
    %2423 = vmatpush1.msra.mxu0 0.0
    %2424 = vmatprep.subr.mxu0 0.0
    %2425 = vmatpush1.msra.mxu0 0.0
    %2426 = vmatprep.mubr.f32.mxu0 0.0
    %2427 = vmatmul.mubr.f32.gmra.mrb[0].mxu0 %v2350
    %v2428 = vpop.f32.mrb[0].mxu0
    %v2429 = vadd.f32 0.0, %v2428
    %v2430 = vpop.f32.mrb[0].mxu0
    %v2431 = vadd.f32 0.0, %v2430
    %2432 = vmatprep.mubr.f32.mxu0 0.0
    %2433 = vmatmul.mubr.f32.gmra.mrb[0].mxu0 %v2352
    %v2434 = vpop.f32.mrb[0].mxu0
    %v2435 = vadd.f32 0.0, %v2434
    %v2436 = vpop.f32.mrb[0].mxu0
    %v2437 = vadd.f32 0.0, %v2436
    %2438 = vmatprep.mubr.f32.mxu0 0.0
    %2439 = vmatmul.mubr.f32.gmra.mrb[0].mxu0 %v2354
    %v2440 = vpop.f32.mrb[0].mxu0
    %v2441 = vadd.f32 0.0, %v2440
    %v2442 = vpop.f32.mrb[0].mxu0
    %v2443 = vadd.f32 0.0, %v2442
    %2444 = vdwg.mxu0
    %v2445 = vadd.f32 %v2319, %v2429
    %v2446 = vadd.f32 %v2321, %v2431
    %v2447 = vadd.f32 %v2325, %v2435
    %v2448 = vadd.f32 %v2327, %v2437
    %v2449 = vadd.f32 %v2331, %v2441
    %v2450 = vadd.f32 %v2333, %v2443
    %v2451 = vld [vmem:[%s394] sm:$0xff]
    %v2452 = vld [vmem:[%s394 + $0x8] sm:$0xff]
    %v2453 = vld [vmem:[%s394 + $0x10] sm:$0xff]
    %v2454 = vld [vmem:[%s394 + $0x18] sm:$0xff]
    %v2455 = vld [vmem:[%s394 + $0x20] sm:$0xff]
    %v2456 = vld [vmem:[%s394 + $0x28] sm:$0xff]
    %v2457 = vld [vmem:[%s394 + $0x30] sm:$0xf]
    %v2458 = vld [vmem:[%s394 + $0x38] sm:$0xf]
    %v2459 = vrot.slane %v2114, 3
    %v2460 = vrot.slane %v2115, 3
    %v2461 = vsel %vm403, %v2459, %v2460
    %v2462 = vrot.slane %v2116, 3
    %v2463 = vsel %vm403, %v2460, %v2462
    %v2464 = vrot.slane %v2117, 3
    %v2465 = vsel %vm403, %v2462, %v2464
    %v2466 = vsel %vm84, %v2461, 0
    %v2468 = vsel %vm84, %v2463, 0
    %v2470 = vsel %vm84, %v2465, 0
    %v2473 = vsel %vm91, %v2457, 0
    %v2476 = vsel %vm91, %v2458, 0
    %2478 = vmatprep.subr.mxu0 %v2452
    %2479 = vmatpush1.msra.mxu0 %v2451
    %2480 = vmatprep.subr.mxu0 %v2454
    %2481 = vmatpush1.msra.mxu0 %v2453
    %2482 = vmatprep.subr.mxu0 %v2456
    %2483 = vmatpush1.msra.mxu0 %v2455
    %2484 = vmatprep.subr.mxu0 %v2476
    %2485 = vmatpush1.msra.mxu0 %v2473
    %2486 = vmatprep.subr.mxu0 0.0
    %2487 = vmatpush1.msra.mxu0 0.0
    %2488 = vmatprep.subr.mxu0 0.0
    %2489 = vmatpush1.msra.mxu0 0.0
    %2490 = vmatprep.subr.mxu0 0.0
    %2491 = vmatpush1.msra.mxu0 0.0
    %2492 = vmatprep.subr.mxu0 0.0
    %2493 = vmatpush1.msra.mxu0 0.0
    %2494 = vmatprep.subr.mxu0 0.0
    %2495 = vmatpush1.msra.mxu0 0.0
    %2496 = vmatprep.subr.mxu0 0.0
    %2497 = vmatpush1.msra.mxu0 0.0
    %2498 = vmatprep.subr.mxu0 0.0
    %2499 = vmatpush1.msra.mxu0 0.0
    %2500 = vmatprep.subr.mxu0 0.0
    %2501 = vmatpush1.msra.mxu0 0.0
    %2502 = vmatprep.subr.mxu0 0.0
    %2503 = vmatpush1.msra.mxu0 0.0
    %2504 = vmatprep.subr.mxu0 0.0
    %2505 = vmatpush1.msra.mxu0 0.0
    %2506 = vmatprep.subr.mxu0 0.0
    %2507 = vmatpush1.msra.mxu0 0.0
    %2508 = vmatprep.subr.mxu0 0.0
    %2509 = vmatpush1.msra.mxu0 0.0
    %2510 = vmatprep.subr.mxu0 0.0
    %2511 = vmatpush1.msra.mxu0 0.0
    %2512 = vmatprep.subr.mxu0 0.0
    %2513 = vmatpush1.msra.mxu0 0.0
    %2514 = vmatprep.subr.mxu0 0.0
    %2515 = vmatpush1.msra.mxu0 0.0
    %2516 = vmatprep.subr.mxu0 0.0
    %2517 = vmatpush1.msra.mxu0 0.0
    %2518 = vmatprep.subr.mxu0 0.0
    %2519 = vmatpush1.msra.mxu0 0.0
    %2520 = vmatprep.subr.mxu0 0.0
    %2521 = vmatpush1.msra.mxu0 0.0
    %2522 = vmatprep.subr.mxu0 0.0
    %2523 = vmatpush1.msra.mxu0 0.0
    %2524 = vmatprep.subr.mxu0 0.0
    %2525 = vmatpush1.msra.mxu0 0.0
    %2526 = vmatprep.subr.mxu0 0.0
    %2527 = vmatpush1.msra.mxu0 0.0
    %2528 = vmatprep.subr.mxu0 0.0
    %2529 = vmatpush1.msra.mxu0 0.0
    %2530 = vmatprep.subr.mxu0 0.0
    %2531 = vmatpush1.msra.mxu0 0.0
    %2532 = vmatprep.subr.mxu0 0.0
    %2533 = vmatpush1.msra.mxu0 0.0
    %2534 = vmatprep.subr.mxu0 0.0
    %2535 = vmatpush1.msra.mxu0 0.0
    %2536 = vmatprep.subr.mxu0 0.0
    %2537 = vmatpush1.msra.mxu0 0.0
    %2538 = vmatprep.subr.mxu0 0.0
    %2539 = vmatpush1.msra.mxu0 0.0
    %2540 = vmatprep.subr.mxu0 0.0
    %2541 = vmatpush1.msra.mxu0 0.0
    %2542 = vmatprep.mubr.f32.mxu0 0.0
    %2543 = vmatmul.mubr.f32.gmra.mrb[0].mxu0 %v2466
    %v2544 = vpop.f32.mrb[0].mxu0
    %v2545 = vadd.f32 0.0, %v2544
    %v2546 = vpop.f32.mrb[0].mxu0
    %v2547 = vadd.f32 0.0, %v2546
    %2548 = vmatprep.mubr.f32.mxu0 0.0
    %2549 = vmatmul.mubr.f32.gmra.mrb[0].mxu0 %v2468
    %v2550 = vpop.f32.mrb[0].mxu0
    %v2551 = vadd.f32 0.0, %v2550
    %v2552 = vpop.f32.mrb[0].mxu0
    %v2553 = vadd.f32 0.0, %v2552
    %2554 = vmatprep.mubr.f32.mxu0 0.0
    %2555 = vmatmul.mubr.f32.gmra.mrb[0].mxu0 %v2470
    %v2556 = vpop.f32.mrb[0].mxu0
    %v2557 = vadd.f32 0.0, %v2556
    %v2558 = vpop.f32.mrb[0].mxu0
    %v2559 = vadd.f32 0.0, %v2558
    %2560 = vdwg.mxu0
    %v2561 = vadd.f32 %v2445, %v2545
    %v2562 = vadd.f32 %v2446, %v2547
    %v2563 = vadd.f32 %v2447, %v2551
    %v2564 = vadd.f32 %v2448, %v2553
    %v2565 = vadd.f32 %v2449, %v2557
    %v2566 = vadd.f32 %v2450, %v2559
    %v2567 = vld [vmem:[%s512] sm:$0xff]
    %v2568 = vld [vmem:[%s512 + $0x8] sm:$0xff]
    %v2569 = vld [vmem:[%s512 + $0x10] sm:$0xff]
    %v2570 = vld [vmem:[%s512 + $0x18] sm:$0xff]
    %v2571 = vld [vmem:[%s512 + $0x20] sm:$0xff]
    %v2572 = vld [vmem:[%s512 + $0x28] sm:$0xff]
    %v2573 = vld [vmem:[%s512 + $0x30] sm:$0xf]
    %v2574 = vld [vmem:[%s512 + $0x38] sm:$0xf]
    %v2575 = vrot.slane %v2114, 4
    %v2576 = vrot.slane %v2115, 4
    %v2577 = vsel %vm91, %v2575, %v2576
    %v2578 = vrot.slane %v2116, 4
    %v2579 = vsel %vm91, %v2576, %v2578
    %v2580 = vrot.slane %v2117, 4
    %v2581 = vsel %vm91, %v2578, %v2580
    %v2582 = vsel %vm84, %v2577, 0
    %v2584 = vsel %vm84, %v2579, 0
    %v2586 = vsel %vm84, %v2581, 0
    %v2589 = vsel %vm91, %v2573, 0
    %v2592 = vsel %vm91, %v2574, 0
    %2594 = vmatprep.subr.mxu0 %v2568
    %2595 = vmatpush1.msra.mxu0 %v2567
    %2596 = vmatprep.subr.mxu0 %v2570
    %2597 = vmatpush1.msra.mxu0 %v2569
    %2598 = vmatprep.subr.mxu0 %v2572
    %2599 = vmatpush1.msra.mxu0 %v2571
    %2600 = vmatprep.subr.mxu0 %v2592
    %2601 = vmatpush1.msra.mxu0 %v2589
    %2602 = vmatprep.subr.mxu0 0.0
    %2603 = vmatpush1.msra.mxu0 0.0
    %2604 = vmatprep.subr.mxu0 0.0
    %2605 = vmatpush1.msra.mxu0 0.0
    %2606 = vmatprep.subr.mxu0 0.0
    %2607 = vmatpush1.msra.mxu0 0.0
    %2608 = vmatprep.subr.mxu0 0.0
    %2609 = vmatpush1.msra.mxu0 0.0
    %2610 = vmatprep.subr.mxu0 0.0
    %2611 = vmatpush1.msra.mxu0 0.0
    %2612 = vmatprep.subr.mxu0 0.0
    %2613 = vmatpush1.msra.mxu0 0.0
    %2614 = vmatprep.subr.mxu0 0.0
    %2615 = vmatpush1.msra.mxu0 0.0
    %2616 = vmatprep.subr.mxu0 0.0
    %2617 = vmatpush1.msra.mxu0 0.0
    %2618 = vmatprep.subr.mxu0 0.0
    %2619 = vmatpush1.msra.mxu0 0.0
    %2620 = vmatprep.subr.mxu0 0.0
    %2621 = vmatpush1.msra.mxu0 0.0
    %2622 = vmatprep.subr.mxu0 0.0
    %2623 = vmatpush1.msra.mxu0 0.0
    %2624 = vmatprep.subr.mxu0 0.0
    %2625 = vmatpush1.msra.mxu0 0.0
    %2626 = vmatprep.subr.mxu0 0.0
    %2627 = vmatpush1.msra.mxu0 0.0
    %2628 = vmatprep.subr.mxu0 0.0
    %2629 = vmatpush1.msra.mxu0 0.0
    %2630 = vmatprep.subr.mxu0 0.0
    %2631 = vmatpush1.msra.mxu0 0.0
    %2632 = vmatprep.subr.mxu0 0.0
    %2633 = vmatpush1.msra.mxu0 0.0
    %2634 = vmatprep.subr.mxu0 0.0
    %2635 = vmatpush1.msra.mxu0 0.0
    %2636 = vmatprep.subr.mxu0 0.0
    %2637 = vmatpush1.msra.mxu0 0.0
    %2638 = vmatprep.subr.mxu0 0.0
    %2639 = vmatpush1.msra.mxu0 0.0
    %2640 = vmatprep.subr.mxu0 0.0
    %2641 = vmatpush1.msra.mxu0 0.0
    %2642 = vmatprep.subr.mxu0 0.0
    %2643 = vmatpush1.msra.mxu0 0.0
    %2644 = vmatprep.subr.mxu0 0.0
    %2645 = vmatpush1.msra.mxu0 0.0
    %2646 = vmatprep.subr.mxu0 0.0
    %2647 = vmatpush1.msra.mxu0 0.0
    %2648 = vmatprep.subr.mxu0 0.0
    %2649 = vmatpush1.msra.mxu0 0.0
    %2650 = vmatprep.subr.mxu0 0.0
    %2651 = vmatpush1.msra.mxu0 0.0
    %2652 = vmatprep.subr.mxu0 0.0
    %2653 = vmatpush1.msra.mxu0 0.0
    %2654 = vmatprep.subr.mxu0 0.0
    %2655 = vmatpush1.msra.mxu0 0.0
    %2656 = vmatprep.subr.mxu0 0.0
    %2657 = vmatpush1.msra.mxu0 0.0
    %2658 = vmatprep.mubr.f32.mxu0 0.0
    %2659 = vmatmul.mubr.f32.gmra.mrb[0].mxu0 %v2582
    %v2660 = vpop.f32.mrb[0].mxu0
    %v2661 = vadd.f32 0.0, %v2660
    %v2662 = vpop.f32.mrb[0].mxu0
    %v2663 = vadd.f32 0.0, %v2662
    %2664 = vmatprep.mubr.f32.mxu0 0.0
    %2665 = vmatmul.mubr.f32.gmra.mrb[0].mxu0 %v2584
    %v2666 = vpop.f32.mrb[0].mxu0
    %v2667 = vadd.f32 0.0, %v2666
    %v2668 = vpop.f32.mrb[0].mxu0
    %v2669 = vadd.f32 0.0, %v2668
    %2670 = vmatprep.mubr.f32.mxu0 0.0
    %2671 = vmatmul.mubr.f32.gmra.mrb[0].mxu0 %v2586
    %v2672 = vpop.f32.mrb[0].mxu0
    %v2673 = vadd.f32 0.0, %v2672
    %v2674 = vpop.f32.mrb[0].mxu0
    %v2675 = vadd.f32 0.0, %v2674
    %2676 = vdwg.mxu0
    %v2677 = vadd.f32 %v2561, %v2661
    %v2678 = vadd.f32 %v2562, %v2663
    %v2679 = vadd.f32 %v2563, %v2667
    %v2680 = vadd.f32 %v2564, %v2669
    %v2681 = vadd.f32 %v2565, %v2673
    %v2682 = vadd.f32 %v2566, %v2675
    %v2683 = vld [vmem:[%s2] sm:$0x3]
    %v2685 = vlaneseq
    %v2686 = vshrl.u32 %v2685, 7
    %v2687 = vsub.s32 0, %v2686
    %v2688 = vrot.slane %v2683, %v2687
    %v2689 = vlaneseq
    %v2690 = vshrl.u32 %v2689, 7
    %v2691 = vsub.s32 1, %v2690
    %v2692 = vrot.slane %v2683, %v2691
    %v2695 = vadd.f32 %v2677, %v2688
    %v2696 = vadd.f32 %v2678, %v2692
    %v2697 = vadd.f32 %v2679, %v2688
    %v2698 = vadd.f32 %v2680, %v2692
    %v2699 = vadd.f32 %v2681, %v2688
    %v2700 = vadd.f32 %v2682, %v2692
    %v2701 = vmax.f32 %v2695, 0.0
    %v2702 = vmax.f32 %v2696, 0.0
    %v2703 = vmax.f32 %v2697, 0.0
    %v2704 = vmax.f32 %v2698, 0.0
    %v2705 = vmax.f32 %v2699, 0.0
    %v2706 = vmax.f32 %v2700, 0.0
    %v2707 = vld [vmem:[%s3] sm:$0xff]
    %v2708 = vld [vmem:[%s3 + $0x8] sm:$0xff]
    %v2709 = vld [vmem:[%s3 + $0x10] sm:$0xff]
    %v2710 = vld [vmem:[%s3 + $0x18] sm:$0xff]
    %v2711 = vld [vmem:[%s3 + $0x20] sm:$0xff]
    %v2712 = vld [vmem:[%s3 + $0x28] sm:$0xff]
    %v2713 = vld [vmem:[%s3 + $0x30] sm:$0xff]
    %v2714 = vld [vmem:[%s3 + $0x38] sm:$0xff]
    %v2715 = vld [vmem:[%s3 + $0x40] sm:$0xff]
    %v2716 = vld [vmem:[%s3 + $0x48] sm:$0xff]
    %v2717 = vld [vmem:[%s3 + $0x50] sm:$0xff]
    %v2718 = vld [vmem:[%s3 + $0x58] sm:$0xff]
    %v2719 = vld [vmem:[%s3 + $0x60] sm:$0xff]
    %v2720 = vld [vmem:[%s3 + $0x68] sm:$0xff]
    %v2721 = vld [vmem:[%s3 + $0x70] sm:$0xff]
    %v2722 = vld [vmem:[%s3 + $0x78] sm:$0xff]
    %v2723 = vld [vmem:[%s3 + $0x80] sm:$0xff]
    %v2724 = vld [vmem:[%s3 + $0x88] sm:$0xff]
    %v2726 = vsel %vm671, %v2702, 0
    %v2729 = vsel %vm671, %v2704, 0
    %v2732 = vsel %vm671, %v2706, 0
    %2734 = vmatprep.subr.mxu0 0.0
    %2735 = vmatpush1.msra.mxu0 %v2707
    %2736 = vmatprep.subr.mxu0 0.0
    %2737 = vmatpush1.msra.mxu0 %v2708
    %2738 = vmatprep.subr.mxu0 0.0
    %2739 = vmatpush1.msra.mxu0 %v2709
    %2740 = vmatprep.subr.mxu0 0.0
    %2741 = vmatpush1.msra.mxu0 %v2710
    %2742 = vmatprep.subr.mxu0 0.0
    %2743 = vmatpush1.msra.mxu0 %v2711
    %2744 = vmatprep.subr.mxu0 0.0
    %2745 = vmatpush1.msra.mxu0 %v2712
    %2746 = vmatprep.subr.mxu0 0.0
    %2747 = vmatpush1.msra.mxu0 %v2713
    %2748 = vmatprep.subr.mxu0 0.0
    %2749 = vmatpush1.msra.mxu0 %v2714
    %2750 = vmatprep.subr.mxu0 0.0
    %2751 = vmatpush1.msra.mxu0 %v2715
    %2752 = vmatprep.subr.mxu0 0.0
    %2753 = vmatpush1.msra.mxu0 %v2716
    %2754 = vmatprep.subr.mxu0 0.0
    %2755 = vmatpush1.msra.mxu0 %v2717
    %2756 = vmatprep.subr.mxu0 0.0
    %2757 = vmatpush1.msra.mxu0 %v2718
    %2758 = vmatprep.subr.mxu0 0.0
    %2759 = vmatpush1.msra.mxu0 %v2719
    %2760 = vmatprep.subr.mxu0 0.0
    %2761 = vmatpush1.msra.mxu0 %v2720
    %2762 = vmatprep.subr.mxu0 0.0
    %2763 = vmatpush1.msra.mxu0 %v2721
    %2764 = vmatprep.subr.mxu0 0.0
    %2765 = vmatpush1.msra.mxu0 %v2722
    %2766 = vmatprep.subr.mxu0 0.0
    %2767 = vmatpush1.msra.mxu0 %v2723
    %2768 = vmatprep.subr.mxu0 0.0
    %2769 = vmatpush1.msra.mxu0 %v2724
    %2770 = vmatprep.subr.mxu0 0.0
    %2771 = vmatpush1.msra.mxu0 0.0
    %2772 = vmatprep.subr.mxu0 0.0
    %2773 = vmatpush1.msra.mxu0 0.0
    %2774 = vmatprep.subr.mxu0 0.0
    %2775 = vmatpush1.msra.mxu0 0.0
    %2776 = vmatprep.subr.mxu0 0.0
    %2777 = vmatpush1.msra.mxu0 0.0
    %2778 = vmatprep.subr.mxu0 0.0
    %2779 = vmatpush1.msra.mxu0 0.0
    %2780 = vmatprep.subr.mxu0 0.0
    %2781 = vmatpush1.msra.mxu0 0.0
    %2782 = vmatprep.subr.mxu0 0.0
    %2783 = vmatpush1.msra.mxu0 0.0
    %2784 = vmatprep.subr.mxu0 0.0
    %2785 = vmatpush1.msra.mxu0 0.0
    %2786 = vmatprep.subr.mxu0 0.0
    %2787 = vmatpush1.msra.mxu0 0.0
    %2788 = vmatprep.subr.mxu0 0.0
    %2789 = vmatpush1.msra.mxu0 0.0
    %2790 = vmatprep.subr.mxu0 0.0
    %2791 = vmatpush1.msra.mxu0 0.0
    %2792 = vmatprep.subr.mxu0 0.0
    %2793 = vmatpush1.msra.mxu0 0.0
    %2794 = vmatprep.subr.mxu0 0.0
    %2795 = vmatpush1.msra.mxu0 0.0
    %2796 = vmatprep.subr.mxu0 0.0
    %2797 = vmatpush1.msra.mxu0 0.0
    %2798 = vmatprep.mubr.f32.mxu0 %v2726
    %2799 = vmatmul.mubr.f32.gmra.mrb[0].mxu0 %v2701
    %v2800 = vpop.f32.mrb[0].mxu0
    %v2801 = vadd.f32 0.0, %v2800
    %v2802 = vpop.f32.mrb[0].mxu0
    %2803 = vmatprep.mubr.f32.mxu0 %v2729
    %2804 = vmatmul.mubr.f32.gmra.mrb[0].mxu0 %v2703
    %v2805 = vpop.f32.mrb[0].mxu0
    %v2806 = vadd.f32 0.0, %v2805
    %v2807 = vpop.f32.mrb[0].mxu0
    %2808 = vmatprep.mubr.f32.mxu0 %v2732
    %2809 = vmatmul.mubr.f32.gmra.mrb[0].mxu0 %v2705
    %v2810 = vpop.f32.mrb[0].mxu0
    %v2811 = vadd.f32 0.0, %v2810
    %v2812 = vpop.f32.mrb[0].mxu0
    %2813 = vdwg.mxu0
    %v2814 = vld [vmem:[%s761] sm:$0xff]
    %v2815 = vld [vmem:[%s761 + $0x8] sm:$0xff]
    %v2816 = vld [vmem:[%s761 + $0x10] sm:$0xff]
    %v2817 = vld [vmem:[%s761 + $0x18] sm:$0xff]
    %v2818 = vld [vmem:[%s761 + $0x20] sm:$0xff]
    %v2819 = vld [vmem:[%s761 + $0x28] sm:$0xff]
    %v2820 = vld [vmem:[%s761 + $0x30] sm:$0xff]
    %v2821 = vld [vmem:[%s761 + $0x38] sm:$0xff]
    %v2822 = vld [vmem:[%s761 + $0x40] sm:$0xff]
    %v2823 = vld [vmem:[%s761 + $0x48] sm:$0xff]
    %v2824 = vld [vmem:[%s761 + $0x50] sm:$0xff]
    %v2825 = vld [vmem:[%s761 + $0x58] sm:$0xff]
    %v2826 = vld [vmem:[%s761 + $0x60] sm:$0xff]
    %v2827 = vld [vmem:[%s761 + $0x68] sm:$0xff]
    %v2828 = vld [vmem:[%s761 + $0x70] sm:$0xff]
    %v2829 = vld [vmem:[%s761 + $0x78] sm:$0xff]
    %v2830 = vld [vmem:[%s761 + $0x80] sm:$0xff]
    %v2831 = vld [vmem:[%s761 + $0x88] sm:$0xff]
    %2832 = vmatprep.subr.mxu0 0.0
    %2833 = vmatpush1.msra.mxu0 %v2814
    %2834 = vmatprep.subr.mxu0 0.0
    %2835 = vmatpush1.msra.mxu0 %v2815
    %2836 = vmatprep.subr.mxu0 0.0
    %2837 = vmatpush1.msra.mxu0 %v2816
    %2838 = vmatprep.subr.mxu0 0.0
    %2839 = vmatpush1.msra.mxu0 %v2817
    %2840 = vmatprep.subr.mxu0 0.0
    %2841 = vmatpush1.msra.mxu0 %v2818
    %2842 = vmatprep.subr.mxu0 0.0
    %2843 = vmatpush1.msra.mxu0 %v2819
    %2844 = vmatprep.subr.mxu0 0.0
    %2845 = vmatpush1.msra.mxu0 %v2820
    %2846 = vmatprep.subr.mxu0 0.0
    %2847 = vmatpush1.msra.mxu0 %v2821
    %2848 = vmatprep.subr.mxu0 0.0
    %2849 = vmatpush1.msra.mxu0 %v2822
    %2850 = vmatprep.subr.mxu0 0.0
    %2851 = vmatpush1.msra.mxu0 %v2823
    %2852 = vmatprep.subr.mxu0 0.0
    %2853 = vmatpush1.msra.mxu0 %v2824
    %2854 = vmatprep.subr.mxu0 0.0
    %2855 = vmatpush1.msra.mxu0 %v2825
    %2856 = vmatprep.subr.mxu0 0.0
    %2857 = vmatpush1.msra.mxu0 %v2826
    %2858 = vmatprep.subr.mxu0 0.0
    %2859 = vmatpush1.msra.mxu0 %v2827
    %2860 = vmatprep.subr.mxu0 0.0
    %2861 = vmatpush1.msra.mxu0 %v2828
    %2862 = vmatprep.subr.mxu0 0.0
    %2863 = vmatpush1.msra.mxu0 %v2829
    %2864 = vmatprep.subr.mxu0 0.0
    %2865 = vmatpush1.msra.mxu0 %v2830
    %2866 = vmatprep.subr.mxu0 0.0
    %2867 = vmatpush1.msra.mxu0 %v2831
    %2868 = vmatprep.subr.mxu0 0.0
    %2869 = vmatpush1.msra.mxu0 0.0
    %2870 = vmatprep.subr.mxu0 0.0
    %2871 = vmatpush1.msra.mxu0 0.0
    %2872 = vmatprep.subr.mxu0 0.0
    %2873 = vmatpush1.msra.mxu0 0.0
    %2874 = vmatprep.subr.mxu0 0.0
    %2875 = vmatpush1.msra.mxu0 0.0
    %2876 = vmatprep.subr.mxu0 0.0
    %2877 = vmatpush1.msra.mxu0 0.0
    %2878 = vmatprep.subr.mxu0 0.0
    %2879 = vmatpush1.msra.mxu0 0.0
    %2880 = vmatprep.subr.mxu0 0.0
    %2881 = vmatpush1.msra.mxu0 0.0
    %2882 = vmatprep.subr.mxu0 0.0
    %2883 = vmatpush1.msra.mxu0 0.0
    %2884 = vmatprep.subr.mxu0 0.0
    %2885 = vmatpush1.msra.mxu0 0.0
    %2886 = vmatprep.subr.mxu0 0.0
    %2887 = vmatpush1.msra.mxu0 0.0
    %2888 = vmatprep.subr.mxu0 0.0
    %2889 = vmatpush1.msra.mxu0 0.0
    %2890 = vmatprep.subr.mxu0 0.0
    %2891 = vmatpush1.msra.mxu0 0.0
    %2892 = vmatprep.subr.mxu0 0.0
    %2893 = vmatpush1.msra.mxu0 0.0
    %2894 = vmatprep.subr.mxu0 0.0
    %2895 = vmatpush1.msra.mxu0 0.0
    %2896 = vmatprep.mubr.f32.mxu0 %v2726
    %2897 = vmatmul.mubr.f32.gmra.mrb[0].mxu0 %v2701
    %v2898 = vpop.f32.mrb[0].mxu0
    %v2899 = vadd.f32 0.0, %v2898
    %v2900 = vpop.f32.mrb[0].mxu0
    %2901 = vmatprep.mubr.f32.mxu0 %v2729
    %2902 = vmatmul.mubr.f32.gmra.mrb[0].mxu0 %v2703
    %v2903 = vpop.f32.mrb[0].mxu0
    %v2904 = vadd.f32 0.0, %v2903
    %v2905 = vpop.f32.mrb[0].mxu0
    %2906 = vmatprep.mubr.f32.mxu0 %v2732
    %2907 = vmatmul.mubr.f32.gmra.mrb[0].mxu0 %v2705
    %v2908 = vpop.f32.mrb[0].mxu0
    %v2909 = vadd.f32 0.0, %v2908
    %v2910 = vpop.f32.mrb[0].mxu0
    %2911 = vdwg.mxu0
    %v2912 = vmax.f32 %v2801, %v2899
    %v2913 = vmax.f32 %v2806, %v2904
    %v2914 = vmax.f32 %v2811, %v2909
    %v2915 = vld [vmem:[%s4] sm:$0xff]
    %v2916 = vld [vmem:[%s4 + $0x8] sm:$0xf]
    %v2918 = vsel %vm865, %v2915, 0
    %v2921 = vsel %vm865, %v2916, 0
    %2923 = vmatprep.subr.mxu0 0.0
    %2924 = vmatpush1.msra.mxu0 %v2912
    %2925 = vmatprep.subr.mxu0 0.0
    %2926 = vmatpush1.msra.mxu0 %v2913
    %2927 = vmatprep.subr.mxu0 0.0
    %2928 = vmatpush1.msra.mxu0 %v2914
    %2929 = vmatprep.subr.mxu0 0.0
    %2930 = vmatpush1.msra.mxu0 0.0
    %2931 = vmatprep.subr.mxu0 0.0
    %2932 = vmatpush1.msra.mxu0 0.0
    %2933 = vmatprep.subr.mxu0 0.0
    %2934 = vmatpush1.msra.mxu0 0.0
    %2935 = vmatprep.subr.mxu0 0.0
    %2936 = vmatpush1.msra.mxu0 0.0
    %2937 = vmatprep.subr.mxu0 0.0
    %2938 = vmatpush1.msra.mxu0 0.0
    %2939 = vmatprep.subr.mxu0 0.0
    %2940 = vmatpush1.msra.mxu0 0.0
    %2941 = vmatprep.subr.mxu0 0.0
    %2942 = vmatpush1.msra.mxu0 0.0
    %2943 = vmatprep.subr.mxu0 0.0
    %2944 = vmatpush1.msra.mxu0 0.0
    %2945 = vmatprep.subr.mxu0 0.0
    %2946 = vmatpush1.msra.mxu0 0.0
    %2947 = vmatprep.subr.mxu0 0.0
    %2948 = vmatpush1.msra.mxu0 0.0
    %2949 = vmatprep.subr.mxu0 0.0
    %2950 = vmatpush1.msra.mxu0 0.0
    %2951 = vmatprep.subr.mxu0 0.0
    %2952 = vmatpush1.msra.mxu0 0.0
    %2953 = vmatprep.subr.mxu0 0.0
    %2954 = vmatpush1.msra.mxu0 0.0
    %2955 = vmatprep.subr.mxu0 0.0
    %2956 = vmatpush1.msra.mxu0 0.0
    %2957 = vmatprep.subr.mxu0 0.0
    %2958 = vmatpush1.msra.mxu0 0.0
    %2959 = vmatprep.subr.mxu0 0.0
    %2960 = vmatpush1.msra.mxu0 0.0
    %2961 = vmatprep.subr.mxu0 0.0
    %2962 = vmatpush1.msra.mxu0 0.0
    %2963 = vmatprep.subr.mxu0 0.0
    %2964 = vmatpush1.msra.mxu0 0.0
    %2965 = vmatprep.subr.mxu0 0.0
    %2966 = vmatpush1.msra.mxu0 0.0
    %2967 = vmatprep.subr.mxu0 0.0
    %2968 = vmatpush1.msra.mxu0 0.0
    %2969 = vmatprep.subr.mxu0 0.0
    %2970 = vmatpush1.msra.mxu0 0.0
    %2971 = vmatprep.subr.mxu0 0.0
    %2972 = vmatpush1.msra.mxu0 0.0
    %2973 = vmatprep.subr.mxu0 0.0
    %2974 = vmatpush1.msra.mxu0 0.0
    %2975 = vmatprep.subr.mxu0 0.0
    %2976 = vmatpush1.msra.mxu0 0.0
    %2977 = vmatprep.subr.mxu0 0.0
    %2978 = vmatpush1.msra.mxu0 0.0
    %2979 = vmatprep.subr.mxu0 0.0
    %2980 = vmatpush1.msra.mxu0 0.0
    %2981 = vmatprep.subr.mxu0 0.0
    %2982 = vmatpush1.msra.mxu0 0.0
    %2983 = vmatprep.subr.mxu0 0.0
    %2984 = vmatpush1.msra.mxu0 0.0
    %2985 = vmatprep.subr.mxu0 0.0
    %2986 = vmatpush1.msra.mxu0 0.0
    %2987 = vmatprep.mubr.f32.mxu0 0.0
    %2988 = vmatmul.mubr.f32.gmra.mrb[0].mxu0 %v2918
    %v2989 = vpop.f32.mrb[0].mxu0
    %v2990 = vadd.f32 0.0, %v2989
    %v2991 = vpop.f32.mrb[0].mxu0
    %2992 = vmatprep.mubr.f32.mxu0 0.0
    %2993 = vmatmul.mubr.f32.gmra.mrb[0].mxu0 %v2921
    %v2994 = vpop.f32.mrb[0].mxu0
    %v2995 = vadd.f32 0.0, %v2994
    %v2996 = vpop.f32.mrb[0].mxu0
    %2997 = vdwg.mxu0
    %v2998 = vld [vmem:[%s947] sm:$0xff]
    %v2999 = vld [vmem:[%s947 + $0x8] sm:$0xf]
    %v3001 = vsel %vm865, %v2998, 0
    %v3004 = vsel %vm865, %v2999, 0
    %3006 = vmatprep.subr.mxu0 0.0
    %3007 = vmatpush1.msra.mxu0 %v2912
    %3008 = vmatprep.subr.mxu0 0.0
    %3009 = vmatpush1.msra.mxu0 %v2913
    %3010 = vmatprep.subr.mxu0 0.0
    %3011 = vmatpush1.msra.mxu0 %v2914
    %3012 = vmatprep.subr.mxu0 0.0
    %3013 = vmatpush1.msra.mxu0 0.0
    %3014 = vmatprep.subr.mxu0 0.0
    %3015 = vmatpush1.msra.mxu0 0.0
    %3016 = vmatprep.subr.mxu0 0.0
    %3017 = vmatpush1.msra.mxu0 0.0
    %3018 = vmatprep.subr.mxu0 0.0
    %3019 = vmatpush1.msra.mxu0 0.0
    %3020 = vmatprep.subr.mxu0 0.0
    %3021 = vmatpush1.msra.mxu0 0.0
    %3022 = vmatprep.subr.mxu0 0.0
    %3023 = vmatpush1.msra.mxu0 0.0
    %3024 = vmatprep.subr.mxu0 0.0
    %3025 = vmatpush1.msra.mxu0 0.0
    %3026 = vmatprep.subr.mxu0 0.0
    %3027 = vmatpush1.msra.mxu0 0.0
    %3028 = vmatprep.subr.mxu0 0.0
    %3029 = vmatpush1.msra.mxu0 0.0
    %3030 = vmatprep.subr.mxu0 0.0
    %3031 = vmatpush1.msra.mxu0 0.0
    %3032 = vmatprep.subr.mxu0 0.0
    %3033 = vmatpush1.msra.mxu0 0.0
    %3034 = vmatprep.subr.mxu0 0.0
    %3035 = vmatpush1.msra.mxu0 0.0
    %3036 = vmatprep.subr.mxu0 0.0
    %3037 = vmatpush1.msra.mxu0 0.0
    %3038 = vmatprep.subr.mxu0 0.0
    %3039 = vmatpush1.msra.mxu0 0.0
    %3040 = vmatprep.subr.mxu0 0.0
    %3041 = vmatpush1.msra.mxu0 0.0
    %3042 = vmatprep.subr.mxu0 0.0
    %3043 = vmatpush1.msra.mxu0 0.0
    %3044 = vmatprep.subr.mxu0 0.0
    %3045 = vmatpush1.msra.mxu0 0.0
    %3046 = vmatprep.subr.mxu0 0.0
    %3047 = vmatpush1.msra.mxu0 0.0
    %3048 = vmatprep.subr.mxu0 0.0
    %3049 = vmatpush1.msra.mxu0 0.0
    %3050 = vmatprep.subr.mxu0 0.0
    %3051 = vmatpush1.msra.mxu0 0.0
    %3052 = vmatprep.subr.mxu0 0.0
    %3053 = vmatpush1.msra.mxu0 0.0
    %3054 = vmatprep.subr.mxu0 0.0
    %3055 = vmatpush1.msra.mxu0 0.0
    %3056 = vmatprep.subr.mxu0 0.0
    %3057 = vmatpush1.msra.mxu0 0.0
    %3058 = vmatprep.subr.mxu0 0.0
    %3059 = vmatpush1.msra.mxu0 0.0
    %3060 = vmatprep.subr.mxu0 0.0
    %3061 = vmatpush1.msra.mxu0 0.0
    %3062 = vmatprep.subr.mxu0 0.0
    %3063 = vmatpush1.msra.mxu0 0.0
    %3064 = vmatprep.subr.mxu0 0.0
    %3065 = vmatpush1.msra.mxu0 0.0
    %3066 = vmatprep.subr.mxu0 0.0
    %3067 = vmatpush1.msra.mxu0 0.0
    %3068 = vmatprep.subr.mxu0 0.0
    %3069 = vmatpush1.msra.mxu0 0.0
    %3070 = vmatprep.mubr.f32.mxu0 0.0
    %3071 = vmatmul.mubr.f32.gmra.mrb[0].mxu0 %v3001
    %v3072 = vpop.f32.mrb[0].mxu0
    %v3073 = vadd.f32 0.0, %v3072
    %v3074 = vpop.f32.mrb[0].mxu0
    %3075 = vmatprep.mubr.f32.mxu0 0.0
    %3076 = vmatmul.mubr.f32.gmra.mrb[0].mxu0 %v3004
    %v3077 = vpop.f32.mrb[0].mxu0
    %v3078 = vadd.f32 0.0, %v3077
    %v3079 = vpop.f32.mrb[0].mxu0
    %3080 = vdwg.mxu0
    %v3081 = vmax.f32 %v2990, %v3073
    %v3082 = vmax.f32 %v2995, %v3078
    %v3083 = vld [vmem:[%s5] sm:$0xff]
    %v3084 = vld [vmem:[%s5 + $0x8] sm:$0xff]
    %v3085 = vld [vmem:[%s5 + $0x10] sm:$0xff]
    %v3086 = vld [vmem:[%s5 + $0x18] sm:$0xff]
    %v3087 = vld [vmem:[%s5 + $0x20] sm:$0xff]
    %v3088 = vld [vmem:[%s5 + $0x28] sm:$0xff]
    %v3089 = vld [vmem:[%s5 + $0x30] sm:$0xff]
    %v3090 = vld [vmem:[%s5 + $0x38] sm:$0xff]
    %v3091 = vld [vmem:[%s5 + $0x40] sm:$0xff]
    %v3092 = vld [vmem:[%s1042] sm:$0xff]
    %v3093 = vld [vmem:[%s1042 + $0x8] sm:$0xff]
    %v3094 = vld [vmem:[%s1042 + $0x10] sm:$0xff]
    %v3095 = vld [vmem:[%s1042 + $0x18] sm:$0xff]
    %v3096 = vld [vmem:[%s1042 + $0x20] sm:$0xff]
    %v3097 = vld [vmem:[%s1042 + $0x28] sm:$0xff]
    %v3098 = vld [vmem:[%s1042 + $0x30] sm:$0xff]
    %v3099 = vld [vmem:[%s1042 + $0x38] sm:$0xff]
    %v3100 = vld [vmem:[%s1042 + $0x40] sm:$0xff]
    %v3103 = vrot.slane %v3081, 1
    %v3104 = vrot.slane %v3082, 1
    %v3105 = vsel %vm76, %v3103, %v3104
    %v3106 = vsel %vm1057, %v3105, 0
    %3108 = vmatprep.subr.mxu0 0.0
    %3109 = vmatpush1.msra.mxu0 %v3092
    %3110 = vmatprep.subr.mxu0 0.0
    %3111 = vmatpush1.msra.mxu0 %v3093
    %3112 = vmatprep.subr.mxu0 0.0
    %3113 = vmatpush1.msra.mxu0 %v3094
    %3114 = vmatprep.subr.mxu0 0.0
    %3115 = vmatpush1.msra.mxu0 %v3095
    %3116 = vmatprep.subr.mxu0 0.0
    %3117 = vmatpush1.msra.mxu0 %v3096
    %3118 = vmatprep.subr.mxu0 0.0
    %3119 = vmatpush1.msra.mxu0 %v3097
    %3120 = vmatprep.subr.mxu0 0.0
    %3121 = vmatpush1.msra.mxu0 %v3098
    %3122 = vmatprep.subr.mxu0 0.0
    %3123 = vmatpush1.msra.mxu0 %v3099
    %3124 = vmatprep.subr.mxu0 0.0
    %3125 = vmatpush1.msra.mxu0 %v3100
    %3126 = vmatprep.subr.mxu0 0.0
    %3127 = vmatpush1.msra.mxu0 0.0
    %3128 = vmatprep.subr.mxu0 0.0
    %3129 = vmatpush1.msra.mxu0 0.0
    %3130 = vmatprep.subr.mxu0 0.0
    %3131 = vmatpush1.msra.mxu0 0.0
    %3132 = vmatprep.subr.mxu0 0.0
    %3133 = vmatpush1.msra.mxu0 0.0
    %3134 = vmatprep.subr.mxu0 0.0
    %3135 = vmatpush1.msra.mxu0 0.0
    %3136 = vmatprep.subr.mxu0 0.0
    %3137 = vmatpush1.msra.mxu0 0.0
    %3138 = vmatprep.subr.mxu0 0.0
    %3139 = vmatpush1.msra.mxu0 0.0
    %3140 = vmatprep.subr.mxu0 0.0
    %3141 = vmatpush1.msra.mxu0 0.0
    %3142 = vmatprep.subr.mxu0 0.0
    %3143 = vmatpush1.msra.mxu0 0.0
    %3144 = vmatprep.subr.mxu0 0.0
    %3145 = vmatpush1.msra.mxu0 0.0
    %3146 = vmatprep.subr.mxu0 0.0
    %3147 = vmatpush1.msra.mxu0 0.0
    %3148 = vmatprep.subr.mxu0 0.0
    %3149 = vmatpush1.msra.mxu0 0.0
    %3150 = vmatprep.subr.mxu0 0.0
    %3151 = vmatpush1.msra.mxu0 0.0
    %3152 = vmatprep.subr.mxu0 0.0
    %3153 = vmatpush1.msra.mxu0 0.0
    %3154 = vmatprep.subr.mxu0 0.0
    %3155 = vmatpush1.msra.mxu0 0.0
    %3156 = vmatprep.subr.mxu0 0.0
    %3157 = vmatpush1.msra.mxu0 0.0
    %3158 = vmatprep.subr.mxu0 0.0
    %3159 = vmatpush1.msra.mxu0 0.0
    %3160 = vmatprep.subr.mxu0 0.0
    %3161 = vmatpush1.msra.mxu0 0.0
    %3162 = vmatprep.subr.mxu0 0.0
    %3163 = vmatpush1.msra.mxu0 0.0
    %3164 = vmatprep.subr.mxu0 0.0
    %3165 = vmatpush1.msra.mxu0 0.0
    %3166 = vmatprep.subr.mxu0 0.0
    %3167 = vmatpush1.msra.mxu0 0.0
    %3168 = vmatprep.subr.mxu0 0.0
    %3169 = vmatpush1.msra.mxu0 0.0
    %3170 = vmatprep.subr.mxu0 0.0
    %3171 = vmatpush1.msra.mxu0 0.0
    %3172 = vmatprep.mubr.f32.mxu0 0.0
    %3173 = vmatmul.mubr.f32.gmra.mrb[0].mxu0 %v3106
    %v3174 = vpop.f32.mrb[0].mxu0
    %v3175 = vadd.f32 0.0, %v3174
    %v3176 = vpop.f32.mrb[0].mxu0
    %3177 = vdwg.mxu0
    %v3178 = vsel %vm1057, %v3081, 0
    %3180 = vmatprep.subr.mxu0 0.0
    %3181 = vmatpush1.msra.mxu0 %v3083
    %3182 = vmatprep.subr.mxu0 0.0
    %3183 = vmatpush1.msra.mxu0 %v3084
    %3184 = vmatprep.subr.mxu0 0.0
    %3185 = vmatpush1.msra.mxu0 %v3085
    %3186 = vmatprep.subr.mxu0 0.0
    %3187 = vmatpush1.msra.mxu0 %v3086
    %3188 = vmatprep.subr.mxu0 0.0
    %3189 = vmatpush1.msra.mxu0 %v3087
    %3190 = vmatprep.subr.mxu0 0.0
    %3191 = vmatpush1.msra.mxu0 %v3088
    %3192 = vmatprep.subr.mxu0 0.0
    %3193 = vmatpush1.msra.mxu0 %v3089
    %3194 = vmatprep.subr.mxu0 0.0
    %3195 = vmatpush1.msra.mxu0 %v3090
    %3196 = vmatprep.subr.mxu0 0.0
    %3197 = vmatpush1.msra.mxu0 %v3091
    %3198 = vmatprep.subr.mxu0 0.0
    %3199 = vmatpush1.msra.mxu0 0.0
    %3200 = vmatprep.subr.mxu0 0.0
    %3201 = vmatpush1.msra.mxu0 0.0
    %3202 = vmatprep.subr.mxu0 0.0
    %3203 = vmatpush1.msra.mxu0 0.0
    %3204 = vmatprep.subr.mxu0 0.0
    %3205 = vmatpush1.msra.mxu0 0.0
    %3206 = vmatprep.subr.mxu0 0.0
    %3207 = vmatpush1.msra.mxu0 0.0
    %3208 = vmatprep.subr.mxu0 0.0
    %3209 = vmatpush1.msra.mxu0 0.0
    %3210 = vmatprep.subr.mxu0 0.0
    %3211 = vmatpush1.msra.mxu0 0.0
    %3212 = vmatprep.subr.mxu0 0.0
    %3213 = vmatpush1.msra.mxu0 0.0
    %3214 = vmatprep.subr.mxu0 0.0
    %3215 = vmatpush1.msra.mxu0 0.0
    %3216 = vmatprep.subr.mxu0 0.0
    %3217 = vmatpush1.msra.mxu0 0.0
    %3218 = vmatprep.subr.mxu0 0.0
    %3219 = vmatpush1.msra.mxu0 0.0
    %3220 = vmatprep.subr.mxu0 0.0
    %3221 = vmatpush1.msra.mxu0 0.0
    %3222 = vmatprep.subr.mxu0 0.0
    %3223 = vmatpush1.msra.mxu0 0.0
    %3224 = vmatprep.subr.mxu0 0.0
    %3225 = vmatpush1.msra.mxu0 0.0
    %3226 = vmatprep.subr.mxu0 0.0
    %3227 = vmatpush1.msra.mxu0 0.0
    %3228 = vmatprep.subr.mxu0 0.0
    %3229 = vmatpush1.msra.mxu0 0.0
    %3230 = vmatprep.subr.mxu0 0.0
    %3231 = vmatpush1.msra.mxu0 0.0
    %3232 = vmatprep.subr.mxu0 0.0
    %3233 = vmatpush1.msra.mxu0 0.0
    %3234 = vmatprep.subr.mxu0 0.0
    %3235 = vmatpush1.msra.mxu0 0.0
    %3236 = vmatprep.subr.mxu0 0.0
    %3237 = vmatpush1.msra.mxu0 0.0
    %3238 = vmatprep.subr.mxu0 0.0
    %3239 = vmatpush1.msra.mxu0 0.0
    %3240 = vmatprep.subr.mxu0 0.0
    %3241 = vmatpush1.msra.mxu0 0.0
    %3242 = vmatprep.subr.mxu0 0.0
    %3243 = vmatpush1.msra.mxu0 0.0
    %3244 = vmatprep.mubr.f32.mxu0 0.0
    %3245 = vmatmul.mubr.f32.gmra.mrb[0].mxu0 %v3178
    %v3246 = vpop.f32.mrb[0].mxu0
    %v3247 = vadd.f32 %v3175, %v3246
    %v3248 = vpop.f32.mrb[0].mxu0
    %3249 = vdwg.mxu0
    %v3250 = vld [vmem:[%s1202] sm:$0xff]
    %v3251 = vld [vmem:[%s1202 + $0x8] sm:$0xff]
    %v3252 = vld [vmem:[%s1202 + $0x10] sm:$0xff]
    %v3253 = vld [vmem:[%s1202 + $0x18] sm:$0xff]
    %v3254 = vld [vmem:[%s1202 + $0x20] sm:$0xff]
    %v3255 = vld [vmem:[%s1202 + $0x28] sm:$0xff]
    %v3256 = vld [vmem:[%s1202 + $0x30] sm:$0xff]
    %v3257 = vld [vmem:[%s1202 + $0x38] sm:$0xff]
    %v3258 = vld [vmem:[%s1202 + $0x40] sm:$0xff]
    %v3259 = vrot.slane %v3081, 2
    %v3260 = vrot.slane %v3082, 2
    %v3261 = vsel %vm285, %v3259, %v3260
    %v3262 = vsel %vm1057, %v3261, 0
    %3264 = vmatprep.subr.mxu0 0.0
    %3265 = vmatpush1.msra.mxu0 %v3250
    %3266 = vmatprep.subr.mxu0 0.0
    %3267 = vmatpush1.msra.mxu0 %v3251
    %3268 = vmatprep.subr.mxu0 0.0
    %3269 = vmatpush1.msra.mxu0 %v3252
    %3270 = vmatprep.subr.mxu0 0.0
    %3271 = vmatpush1.msra.mxu0 %v3253
    %3272 = vmatprep.subr.mxu0 0.0
    %3273 = vmatpush1.msra.mxu0 %v3254
    %3274 = vmatprep.subr.mxu0 0.0
    %3275 = vmatpush1.msra.mxu0 %v3255
    %3276 = vmatprep.subr.mxu0 0.0
    %3277 = vmatpush1.msra.mxu0 %v3256
    %3278 = vmatprep.subr.mxu0 0.0
    %3279 = vmatpush1.msra.mxu0 %v3257
    %3280 = vmatprep.subr.mxu0 0.0
    %3281 = vmatpush1.msra.mxu0 %v3258
    %3282 = vmatprep.subr.mxu0 0.0
    %3283 = vmatpush1.msra.mxu0 0.0
    %3284 = vmatprep.subr.mxu0 0.0
    %3285 = vmatpush1.msra.mxu0 0.0
    %3286 = vmatprep.subr.mxu0 0.0
    %3287 = vmatpush1.msra.mxu0 0.0
    %3288 = vmatprep.subr.mxu0 0.0
    %3289 = vmatpush1.msra.mxu0 0.0
    %3290 = vmatprep.subr.mxu0 0.0
    %3291 = vmatpush1.msra.mxu0 0.0
    %3292 = vmatprep.subr.mxu0 0.0
    %3293 = vmatpush1.msra.mxu0 0.0
    %3294 = vmatprep.subr.mxu0 0.0
    %3295 = vmatpush1.msra.mxu0 0.0
    %3296 = vmatprep.subr.mxu0 0.0
    %3297 = vmatpush1.msra.mxu0 0.0
    %3298 = vmatprep.subr.mxu0 0.0
    %3299 = vmatpush1.msra.mxu0 0.0
    %3300 = vmatprep.subr.mxu0 0.0
    %3301 = vmatpush1.msra.mxu0 0.0
    %3302 = vmatprep.subr.mxu0 0.0
    %3303 = vmatpush1.msra.mxu0 0.0
    %3304 = vmatprep.subr.mxu0 0.0
    %3305 = vmatpush1.msra.mxu0 0.0
    %3306 = vmatprep.subr.mxu0 0.0
    %3307 = vmatpush1.msra.mxu0 0.0
    %3308 = vmatprep.subr.mxu0 0.0
    %3309 = vmatpush1.msra.mxu0 0.0
    %3310 = vmatprep.subr.mxu0 0.0
    %3311 = vmatpush1.msra.mxu0 0.0
    %3312 = vmatprep.subr.mxu0 0.0
    %3313 = vmatpush1.msra.mxu0 0.0
    %3314 = vmatprep.subr.mxu0 0.0
    %3315 = vmatpush1.msra.mxu0 0.0
    %3316 = vmatprep.subr.mxu0 0.0
    %3317 = vmatpush1.msra.mxu0 0.0
    %3318 = vmatprep.subr.mxu0 0.0
    %3319 = vmatpush1.msra.mxu0 0.0
    %3320 = vmatprep.subr.mxu0 0.0
    %3321 = vmatpush1.msra.mxu0 0.0
    %3322 = vmatprep.subr.mxu0 0.0
    %3323 = vmatpush1.msra.mxu0 0.0
    %3324 = vmatprep.subr.mxu0 0.0
    %3325 = vmatpush1.msra.mxu0 0.0
    %3326 = vmatprep.subr.mxu0 0.0
    %3327 = vmatpush1.msra.mxu0 0.0
    %3328 = vmatprep.mubr.f32.mxu0 0.0
    %3329 = vmatmul.mubr.f32.gmra.mrb[0].mxu0 %v3262
    %v3330 = vpop.f32.mrb[0].mxu0
    %v3331 = vadd.f32 0.0, %v3330
    %v3332 = vpop.f32.mrb[0].mxu0
    %3333 = vdwg.mxu0
    %v3334 = vadd.f32 %v3247, %v3331
    %v3335 = vld [vmem:[%s1288] sm:$0xff]
    %v3336 = vld [vmem:[%s1288 + $0x8] sm:$0xff]
    %v3337 = vld [vmem:[%s1288 + $0x10] sm:$0xff]
    %v3338 = vld [vmem:[%s1288 + $0x18] sm:$0xff]
    %v3339 = vld [vmem:[%s1288 + $0x20] sm:$0xff]
    %v3340 = vld [vmem:[%s1288 + $0x28] sm:$0xff]
    %v3341 = vld [vmem:[%s1288 + $0x30] sm:$0xff]
    %v3342 = vld [vmem:[%s1288 + $0x38] sm:$0xff]
    %v3343 = vld [vmem:[%s1288 + $0x40] sm:$0xff]
    %v3344 = vrot.slane %v3081, 3
    %v3345 = vrot.slane %v3082, 3
    %v3346 = vsel %vm403, %v3344, %v3345
    %v3347 = vsel %vm1057, %v3346, 0
    %3349 = vmatprep.subr.mxu0 0.0
    %3350 = vmatpush1.msra.mxu0 %v3335
    %3351 = vmatprep.subr.mxu0 0.0
    %3352 = vmatpush1.msra.mxu0 %v3336
    %3353 = vmatprep.subr.mxu0 0.0
    %3354 = vmatpush1.msra.mxu0 %v3337
    %3355 = vmatprep.subr.mxu0 0.0
    %3356 = vmatpush1.msra.mxu0 %v3338
    %3357 = vmatprep.subr.mxu0 0.0
    %3358 = vmatpush1.msra.mxu0 %v3339
    %3359 = vmatprep.subr.mxu0 0.0
    %3360 = vmatpush1.msra.mxu0 %v3340
    %3361 = vmatprep.subr.mxu0 0.0
    %3362 = vmatpush1.msra.mxu0 %v3341
    %3363 = vmatprep.subr.mxu0 0.0
    %3364 = vmatpush1.msra.mxu0 %v3342
    %3365 = vmatprep.subr.mxu0 0.0
    %3366 = vmatpush1.msra.mxu0 %v3343
    %3367 = vmatprep.subr.mxu0 0.0
    %3368 = vmatpush1.msra.mxu0 0.0
    %3369 = vmatprep.subr.mxu0 0.0
    %3370 = vmatpush1.msra.mxu0 0.0
    %3371 = vmatprep.subr.mxu0 0.0
    %3372 = vmatpush1.msra.mxu0 0.0
    %3373 = vmatprep.subr.mxu0 0.0
    %3374 = vmatpush1.msra.mxu0 0.0
    %3375 = vmatprep.subr.mxu0 0.0
    %3376 = vmatpush1.msra.mxu0 0.0
    %3377 = vmatprep.subr.mxu0 0.0
    %3378 = vmatpush1.msra.mxu0 0.0
    %3379 = vmatprep.subr.mxu0 0.0
    %3380 = vmatpush1.msra.mxu0 0.0
    %3381 = vmatprep.subr.mxu0 0.0
    %3382 = vmatpush1.msra.mxu0 0.0
    %3383 = vmatprep.subr.mxu0 0.0
    %3384 = vmatpush1.msra.mxu0 0.0
    %3385 = vmatprep.subr.mxu0 0.0
    %3386 = vmatpush1.msra.mxu0 0.0
    %3387 = vmatprep.subr.mxu0 0.0
    %3388 = vmatpush1.msra.mxu0 0.0
    %3389 = vmatprep.subr.mxu0 0.0
    %3390 = vmatpush1.msra.mxu0 0.0
    %3391 = vmatprep.subr.mxu0 0.0
    %3392 = vmatpush1.msra.mxu0 0.0
    %3393 = vmatprep.subr.mxu0 0.0
    %3394 = vmatpush1.msra.mxu0 0.0
    %3395 = vmatprep.subr.mxu0 0.0
    %3396 = vmatpush1.msra.mxu0 0.0
    %3397 = vmatprep.subr.mxu0 0.0
    %3398 = vmatpush1.msra.mxu0 0.0
    %3399 = vmatprep.subr.mxu0 0.0
    %3400 = vmatpush1.msra.mxu0 0.0
    %3401 = vmatprep.subr.mxu0 0.0
    %3402 = vmatpush1.msra.mxu0 0.0
    %3403 = vmatprep.subr.mxu0 0.0
    %3404 = vmatpush1.msra.mxu0 0.0
    %3405 = vmatprep.subr.mxu0 0.0
    %3406 = vmatpush1.msra.mxu0 0.0
    %3407 = vmatprep.subr.mxu0 0.0
    %3408 = vmatpush1.msra.mxu0 0.0
    %3409 = vmatprep.subr.mxu0 0.0
    %3410 = vmatpush1.msra.mxu0 0.0
    %3411 = vmatprep.subr.mxu0 0.0
    %3412 = vmatpush1.msra.mxu0 0.0
    %3413 = vmatprep.mubr.f32.mxu0 0.0
    %3414 = vmatmul.mubr.f32.gmra.mrb[0].mxu0 %v3347
    %v3415 = vpop.f32.mrb[0].mxu0
    %v3416 = vadd.f32 0.0, %v3415
    %v3417 = vpop.f32.mrb[0].mxu0
    %3418 = vdwg.mxu0
    %v3419 = vadd.f32 %v3334, %v3416
    %v3420 = vld [vmem:[%s1374] sm:$0xff]
    %v3421 = vld [vmem:[%s1374 + $0x8] sm:$0xff]
    %v3422 = vld [vmem:[%s1374 + $0x10] sm:$0xff]
    %v3423 = vld [vmem:[%s1374 + $0x18] sm:$0xff]
    %v3424 = vld [vmem:[%s1374 + $0x20] sm:$0xff]
    %v3425 = vld [vmem:[%s1374 + $0x28] sm:$0xff]
    %v3426 = vld [vmem:[%s1374 + $0x30] sm:$0xff]
    %v3427 = vld [vmem:[%s1374 + $0x38] sm:$0xff]
    %v3428 = vld [vmem:[%s1374 + $0x40] sm:$0xff]
    %v3429 = vrot.slane %v3081, 4
    %v3430 = vrot.slane %v3082, 4
    %v3431 = vsel %vm91, %v3429, %v3430
    %v3432 = vsel %vm1057, %v3431, 0
    %3434 = vmatprep.subr.mxu0 0.0
    %3435 = vmatpush1.msra.mxu0 %v3420
    %3436 = vmatprep.subr.mxu0 0.0
    %3437 = vmatpush1.msra.mxu0 %v3421
    %3438 = vmatprep.subr.mxu0 0.0
    %3439 = vmatpush1.msra.mxu0 %v3422
    %3440 = vmatprep.subr.mxu0 0.0
    %3441 = vmatpush1.msra.mxu0 %v3423
    %3442 = vmatprep.subr.mxu0 0.0
    %3443 = vmatpush1.msra.mxu0 %v3424
    %3444 = vmatprep.subr.mxu0 0.0
    %3445 = vmatpush1.msra.mxu0 %v3425
    %3446 = vmatprep.subr.mxu0 0.0
    %3447 = vmatpush1.msra.mxu0 %v3426
    %3448 = vmatprep.subr.mxu0 0.0
    %3449 = vmatpush1.msra.mxu0 %v3427
    %3450 = vmatprep.subr.mxu0 0.0
    %3451 = vmatpush1.msra.mxu0 %v3428
    %3452 = vmatprep.subr.mxu0 0.0
    %3453 = vmatpush1.msra.mxu0 0.0
    %3454 = vmatprep.subr.mxu0 0.0
    %3455 = vmatpush1.msra.mxu0 0.0
    %3456 = vmatprep.subr.mxu0 0.0
    %3457 = vmatpush1.msra.mxu0 0.0
    %3458 = vmatprep.subr.mxu0 0.0
    %3459 = vmatpush1.msra.mxu0 0.0
    %3460 = vmatprep.subr.mxu0 0.0
    %3461 = vmatpush1.msra.mxu0 0.0
    %3462 = vmatprep.subr.mxu0 0.0
    %3463 = vmatpush1.msra.mxu0 0.0
    %3464 = vmatprep.subr.mxu0 0.0
    %3465 = vmatpush1.msra.mxu0 0.0
    %3466 = vmatprep.subr.mxu0 0.0
    %3467 = vmatpush1.msra.mxu0 0.0
    %3468 = vmatprep.subr.mxu0 0.0
    %3469 = vmatpush1.msra.mxu0 0.0
    %3470 = vmatprep.subr.mxu0 0.0
    %3471 = vmatpush1.msra.mxu0 0.0
    %3472 = vmatprep.subr.mxu0 0.0
    %3473 = vmatpush1.msra.mxu0 0.0
    %3474 = vmatprep.subr.mxu0 0.0
    %3475 = vmatpush1.msra.mxu0 0.0
    %3476 = vmatprep.subr.mxu0 0.0
    %3477 = vmatpush1.msra.mxu0 0.0
    %3478 = vmatprep.subr.mxu0 0.0
    %3479 = vmatpush1.msra.mxu0 0.0
    %3480 = vmatprep.subr.mxu0 0.0
    %3481 = vmatpush1.msra.mxu0 0.0
    %3482 = vmatprep.subr.mxu0 0.0
    %3483 = vmatpush1.msra.mxu0 0.0
    %3484 = vmatprep.subr.mxu0 0.0
    %3485 = vmatpush1.msra.mxu0 0.0
    %3486 = vmatprep.subr.mxu0 0.0
    %3487 = vmatpush1.msra.mxu0 0.0
    %3488 = vmatprep.subr.mxu0 0.0
    %3489 = vmatpush1.msra.mxu0 0.0
    %3490 = vmatprep.subr.mxu0 0.0
    %3491 = vmatpush1.msra.mxu0 0.0
    %3492 = vmatprep.subr.mxu0 0.0
    %3493 = vmatpush1.msra.mxu0 0.0
    %3494 = vmatprep.subr.mxu0 0.0
    %3495 = vmatpush1.msra.mxu0 0.0
    %3496 = vmatprep.subr.mxu0 0.0
    %3497 = vmatpush1.msra.mxu0 0.0
    %3498 = vmatprep.mubr.f32.mxu0 0.0
    %3499 = vmatmul.mubr.f32.gmra.mrb[0].mxu0 %v3432
    %v3500 = vpop.f32.mrb[0].mxu0
    %v3501 = vadd.f32 0.0, %v3500
    %v3502 = vpop.f32.mrb[0].mxu0
    %3503 = vdwg.mxu0
    %v3504 = vadd.f32 %v3419, %v3501
    %v3505 = vld [vmem:[%s6] sm:$0x1]
    %v3507 = vlaneseq
    %v3508 = vshrl.u32 %v3507, 7
    %v3509 = vsub.s32 0, %v3508
    %v3510 = vrot.slane %v3505, %v3509
    %v3512 = vadd.f32 %v3504, %v3510
    %v3513 = vmax.f32 %v3512, 0.0
    %v3514 = vld [vmem:[%s7] sm:$0xff]
    %v3515 = vld [vmem:[%s7 + $0x8] sm:$0xff]
    %v3516 = vld [vmem:[%s7 + $0x10] sm:$0xff]
    %v3517 = vld [vmem:[%s7 + $0x18] sm:$0xff]
    %v3518 = vld [vmem:[%s7 + $0x20] sm:$0xff]
    %v3519 = vld [vmem:[%s7 + $0x28] sm:$0xff]
    %v3520 = vld [vmem:[%s7 + $0x30] sm:$0xff]
    %v3521 = vld [vmem:[%s7 + $0x38] sm:$0xff]
    %v3522 = vld [vmem:[%s7 + $0x40] sm:$0xff]
    %v3523 = vld [vmem:[%s7 + $0x48] sm:$0xff]
    %v3524 = vld [vmem:[%s7 + $0x50] sm:$0xff]
    %v3525 = vld [vmem:[%s7 + $0x58] sm:$0xff]
    %v3527 = vsel %vm1481, %v3513, 0
    %3529 = vmatprep.subr.mxu0 0.0
    %3530 = vmatpush1.msra.mxu0 %v3514
    %3531 = vmatprep.subr.mxu0 0.0
    %3532 = vmatpush1.msra.mxu0 %v3515
    %3533 = vmatprep.subr.mxu0 0.0
    %3534 = vmatpush1.msra.mxu0 %v3516
    %3535 = vmatprep.subr.mxu0 0.0
    %3536 = vmatpush1.msra.mxu0 %v3517
    %3537 = vmatprep.subr.mxu0 0.0
    %3538 = vmatpush1.msra.mxu0 %v3518
    %3539 = vmatprep.subr.mxu0 0.0
    %3540 = vmatpush1.msra.mxu0 %v3519
    %3541 = vmatprep.subr.mxu0 0.0
    %3542 = vmatpush1.msra.mxu0 %v3520
    %3543 = vmatprep.subr.mxu0 0.0
    %3544 = vmatpush1.msra.mxu0 %v3521
    %3545 = vmatprep.subr.mxu0 0.0
    %3546 = vmatpush1.msra.mxu0 %v3522
    %3547 = vmatprep.subr.mxu0 0.0
    %3548 = vmatpush1.msra.mxu0 %v3523
    %3549 = vmatprep.subr.mxu0 0.0
    %3550 = vmatpush1.msra.mxu0 %v3524
    %3551 = vmatprep.subr.mxu0 0.0
    %3552 = vmatpush1.msra.mxu0 %v3525
    %3553 = vmatprep.subr.mxu0 0.0
    %3554 = vmatpush1.msra.mxu0 0.0
    %3555 = vmatprep.subr.mxu0 0.0
    %3556 = vmatpush1.msra.mxu0 0.0
    %3557 = vmatprep.subr.mxu0 0.0
    %3558 = vmatpush1.msra.mxu0 0.0
    %3559 = vmatprep.subr.mxu0 0.0
    %3560 = vmatpush1.msra.mxu0 0.0
    %3561 = vmatprep.subr.mxu0 0.0
    %3562 = vmatpush1.msra.mxu0 0.0
    %3563 = vmatprep.subr.mxu0 0.0
    %3564 = vmatpush1.msra.mxu0 0.0
    %3565 = vmatprep.subr.mxu0 0.0
    %3566 = vmatpush1.msra.mxu0 0.0
    %3567 = vmatprep.subr.mxu0 0.0
    %3568 = vmatpush1.msra.mxu0 0.0
    %3569 = vmatprep.subr.mxu0 0.0
    %3570 = vmatpush1.msra.mxu0 0.0
    %3571 = vmatprep.subr.mxu0 0.0
    %3572 = vmatpush1.msra.mxu0 0.0
    %3573 = vmatprep.subr.mxu0 0.0
    %3574 = vmatpush1.msra.mxu0 0.0
    %3575 = vmatprep.subr.mxu0 0.0
    %3576 = vmatpush1.msra.mxu0 0.0
    %3577 = vmatprep.subr.mxu0 0.0
    %3578 = vmatpush1.msra.mxu0 0.0
    %3579 = vmatprep.subr.mxu0 0.0
    %3580 = vmatpush1.msra.mxu0 0.0
    %3581 = vmatprep.subr.mxu0 0.0
    %3582 = vmatpush1.msra.mxu0 0.0
    %3583 = vmatprep.subr.mxu0 0.0
    %3584 = vmatpush1.msra.mxu0 0.0
    %3585 = vmatprep.subr.mxu0 0.0
    %3586 = vmatpush1.msra.mxu0 0.0
    %3587 = vmatprep.subr.mxu0 0.0
    %3588 = vmatpush1.msra.mxu0 0.0
    %3589 = vmatprep.subr.mxu0 0.0
    %3590 = vmatpush1.msra.mxu0 0.0
    %3591 = vmatprep.subr.mxu0 0.0
    %3592 = vmatpush1.msra.mxu0 0.0
    %3593 = vmatprep.mubr.f32.mxu0 0.0
    %3594 = vmatmul.mubr.f32.gmra.mrb[0].mxu0 %v3527
    %v3595 = vpop.f32.mrb[0].mxu0
    %v3596 = vadd.f32 0.0, %v3595
    %v3597 = vpop.f32.mrb[0].mxu0
    %3598 = vdwg.mxu0
    %v3599 = vld [vmem:[%s1555] sm:$0xff]
    %v3600 = vld [vmem:[%s1555 + $0x8] sm:$0xff]
    %v3601 = vld [vmem:[%s1555 + $0x10] sm:$0xff]
    %v3602 = vld [vmem:[%s1555 + $0x18] sm:$0xff]
    %v3603 = vld [vmem:[%s1555 + $0x20] sm:$0xff]
    %v3604 = vld [vmem:[%s1555 + $0x28] sm:$0xff]
    %v3605 = vld [vmem:[%s1555 + $0x30] sm:$0xff]
    %v3606 = vld [vmem:[%s1555 + $0x38] sm:$0xff]
    %v3607 = vld [vmem:[%s1555 + $0x40] sm:$0xff]
    %v3608 = vld [vmem:[%s1555 + $0x48] sm:$0xff]
    %v3609 = vld [vmem:[%s1555 + $0x50] sm:$0xff]
    %v3610 = vld [vmem:[%s1555 + $0x58] sm:$0xff]
    %3611 = vmatprep.subr.mxu0 0.0
    %3612 = vmatpush1.msra.mxu0 %v3599
    %3613 = vmatprep.subr.mxu0 0.0
    %3614 = vmatpush1.msra.mxu0 %v3600
    %3615 = vmatprep.subr.mxu0 0.0
    %3616 = vmatpush1.msra.mxu0 %v3601
    %3617 = vmatprep.subr.mxu0 0.0
    %3618 = vmatpush1.msra.mxu0 %v3602
    %3619 = vmatprep.subr.mxu0 0.0
    %3620 = vmatpush1.msra.mxu0 %v3603
    %3621 = vmatprep.subr.mxu0 0.0
    %3622 = vmatpush1.msra.mxu0 %v3604
    %3623 = vmatprep.subr.mxu0 0.0
    %3624 = vmatpush1.msra.mxu0 %v3605
    %3625 = vmatprep.subr.mxu0 0.0
    %3626 = vmatpush1.msra.mxu0 %v3606
    %3627 = vmatprep.subr.mxu0 0.0
    %3628 = vmatpush1.msra.mxu0 %v3607
    %3629 = vmatprep.subr.mxu0 0.0
    %3630 = vmatpush1.msra.mxu0 %v3608
    %3631 = vmatprep.subr.mxu0 0.0
    %3632 = vmatpush1.msra.mxu0 %v3609
    %3633 = vmatprep.subr.mxu0 0.0
    %3634 = vmatpush1.msra.mxu0 %v3610
    %3635 = vmatprep.subr.mxu0 0.0
    %3636 = vmatpush1.msra.mxu0 0.0
    %3637 = vmatprep.subr.mxu0 0.0
    %3638 = vmatpush1.msra.mxu0 0.0
    %3639 = vmatprep.subr.mxu0 0.0
    %3640 = vmatpush1.msra.mxu0 0.0
    %3641 = vmatprep.subr.mxu0 0.0
    %3642 = vmatpush1.msra.mxu0 0.0
    %3643 = vmatprep.subr.mxu0 0.0
    %3644 = vmatpush1.msra.mxu0 0.0
    %3645 = vmatprep.subr.mxu0 0.0
    %3646 = vmatpush1.msra.mxu0 0.0
    %3647 = vmatprep.subr.mxu0 0.0
    %3648 = vmatpush1.msra.mxu0 0.0
    %3649 = vmatprep.subr.mxu0 0.0
    %3650 = vmatpush1.msra.mxu0 0.0
    %3651 = vmatprep.subr.mxu0 0.0
    %3652 = vmatpush1.msra.mxu0 0.0
    %3653 = vmatprep.subr.mxu0 0.0
    %3654 = vmatpush1.msra.mxu0 0.0
    %3655 = vmatprep.subr.mxu0 0.0
    %3656 = vmatpush1.msra.mxu0 0.0
    %3657 = vmatprep.subr.mxu0 0.0
    %3658 = vmatpush1.msra.mxu0 0.0
    %3659 = vmatprep.subr.mxu0 0.0
    %3660 = vmatpush1.msra.mxu0 0.0
    %3661 = vmatprep.subr.mxu0 0.0
    %3662 = vmatpush1.msra.mxu0 0.0
    %3663 = vmatprep.subr.mxu0 0.0
    %3664 = vmatpush1.msra.mxu0 0.0
    %3665 = vmatprep.subr.mxu0 0.0
    %3666 = vmatpush1.msra.mxu0 0.0
    %3667 = vmatprep.subr.mxu0 0.0
    %3668 = vmatpush1.msra.mxu0 0.0
    %3669 = vmatprep.subr.mxu0 0.0
    %3670 = vmatpush1.msra.mxu0 0.0
    %3671 = vmatprep.subr.mxu0 0.0
    %3672 = vmatpush1.msra.mxu0 0.0
    %3673 = vmatprep.subr.mxu0 0.0
    %3674 = vmatpush1.msra.mxu0 0.0
    %3675 = vmatprep.mubr.f32.mxu0 0.0
    %3676 = vmatmul.mubr.f32.gmra.mrb[0].mxu0 %v3527
    %v3677 = vpop.f32.mrb[0].mxu0
    %v3678 = vadd.f32 0.0, %v3677
    %v3679 = vpop.f32.mrb[0].mxu0
    %3680 = vdwg.mxu0
    %v3681 = vmax.f32 %v3596, %v3678
    %v3682 = vld [vmem:[%s8] sm:$0xf]
    %v3684 = vsel %vm1640, %v3682, 0
    %3686 = vmatprep.subr.mxu0 0.0
    %3687 = vmatpush1.msra.mxu0 %v3681
    %3688 = vmatprep.subr.mxu0 0.0
    %3689 = vmatpush1.msra.mxu0 0.0
    %3690 = vmatprep.subr.mxu0 0.0
    %3691 = vmatpush1.msra.mxu0 0.0
    %3692 = vmatprep.subr.mxu0 0.0
    %3693 = vmatpush1.msra.mxu0 0.0
    %3694 = vmatprep.subr.mxu0 0.0
    %3695 = vmatpush1.msra.mxu0 0.0
    %3696 = vmatprep.subr.mxu0 0.0
    %3697 = vmatpush1.msra.mxu0 0.0
    %3698 = vmatprep.subr.mxu0 0.0
    %3699 = vmatpush1.msra.mxu0 0.0
    %3700 = vmatprep.subr.mxu0 0.0
    %3701 = vmatpush1.msra.mxu0 0.0
    %3702 = vmatprep.subr.mxu0 0.0
    %3703 = vmatpush1.msra.mxu0 0.0
    %3704 = vmatprep.subr.mxu0 0.0
    %3705 = vmatpush1.msra.mxu0 0.0
    %3706 = vmatprep.subr.mxu0 0.0
    %3707 = vmatpush1.msra.mxu0 0.0
    %3708 = vmatprep.subr.mxu0 0.0
    %3709 = vmatpush1.msra.mxu0 0.0
    %3710 = vmatprep.subr.mxu0 0.0
    %3711 = vmatpush1.msra.mxu0 0.0
    %3712 = vmatprep.subr.mxu0 0.0
    %3713 = vmatpush1.msra.mxu0 0.0
    %3714 = vmatprep.subr.mxu0 0.0
    %3715 = vmatpush1.msra.mxu0 0.0
    %3716 = vmatprep.subr.mxu0 0.0
    %3717 = vmatpush1.msra.mxu0 0.0
    %3718 = vmatprep.subr.mxu0 0.0
    %3719 = vmatpush1.msra.mxu0 0.0
    %3720 = vmatprep.subr.mxu0 0.0
    %3721 = vmatpush1.msra.mxu0 0.0
    %3722 = vmatprep.subr.mxu0 0.0
    %3723 = vmatpush1.msra.mxu0 0.0
    %3724 = vmatprep.subr.mxu0 0.0
    %3725 = vmatpush1.msra.mxu0 0.0
    %3726 = vmatprep.subr.mxu0 0.0
    %3727 = vmatpush1.msra.mxu0 0.0
    %3728 = vmatprep.subr.mxu0 0.0
    %3729 = vmatpush1.msra.mxu0 0.0
    %3730 = vmatprep.subr.mxu0 0.0
    %3731 = vmatpush1.msra.mxu0 0.0
    %3732 = vmatprep.subr.mxu0 0.0
    %3733 = vmatpush1.msra.mxu0 0.0
    %3734 = vmatprep.subr.mxu0 0.0
    %3735 = vmatpush1.msra.mxu0 0.0
    %3736 = vmatprep.subr.mxu0 0.0
    %3737 = vmatpush1.msra.mxu0 0.0
    %3738 = vmatprep.subr.mxu0 0.0
    %3739 = vmatpush1.msra.mxu0 0.0
    %3740 = vmatprep.subr.mxu0 0.0
    %3741 = vmatpush1.msra.mxu0 0.0
    %3742 = vmatprep.subr.mxu0 0.0
    %3743 = vmatpush1.msra.mxu0 0.0
    %3744 = vmatprep.subr.mxu0 0.0
    %3745 = vmatpush1.msra.mxu0 0.0
    %3746 = vmatprep.subr.mxu0 0.0
    %3747 = vmatpush1.msra.mxu0 0.0
    %3748 = vmatprep.subr.mxu0 0.0
    %3749 = vmatpush1.msra.mxu0 0.0
    %3750 = vmatprep.mubr.f32.mxu0 0.0
    %3751 = vmatmul.mubr.f32.gmra.mrb[0].mxu0 %v3684
    %v3752 = vpop.f32.mrb[0].mxu0
    %v3753 = vadd.f32 0.0, %v3752
    %v3754 = vpop.f32.mrb[0].mxu0
    %3755 = vdwg.mxu0
    %v3756 = vld [vmem:[%s1714] sm:$0xf]
    %v3758 = vsel %vm1640, %v3756, 0
    %3760 = vmatprep.subr.mxu0 0.0
    %3761 = vmatpush1.msra.mxu0 %v3681
    %3762 = vmatprep.subr.mxu0 0.0
    %3763 = vmatpush1.msra.mxu0 0.0
    %3764 = vmatprep.subr.mxu0 0.0
    %3765 = vmatpush1.msra.mxu0 0.0
    %3766 = vmatprep.subr.mxu0 0.0
    %3767 = vmatpush1.msra.mxu0 0.0
    %3768 = vmatprep.subr.mxu0 0.0
    %3769 = vmatpush1.msra.mxu0 0.0
    %3770 = vmatprep.subr.mxu0 0.0
    %3771 = vmatpush1.msra.mxu0 0.0
    %3772 = vmatprep.subr.mxu0 0.0
    %3773 = vmatpush1.msra.mxu0 0.0
    %3774 = vmatprep.subr.mxu0 0.0
    %3775 = vmatpush1.msra.mxu0 0.0
    %3776 = vmatprep.subr.mxu0 0.0
    %3777 = vmatpush1.msra.mxu0 0.0
    %3778 = vmatprep.subr.mxu0 0.0
    %3779 = vmatpush1.msra.mxu0 0.0
    %3780 = vmatprep.subr.mxu0 0.0
    %3781 = vmatpush1.msra.mxu0 0.0
    %3782 = vmatprep.subr.mxu0 0.0
    %3783 = vmatpush1.msra.mxu0 0.0
    %3784 = vmatprep.subr.mxu0 0.0
    %3785 = vmatpush1.msra.mxu0 0.0
    %3786 = vmatprep.subr.mxu0 0.0
    %3787 = vmatpush1.msra.mxu0 0.0
    %3788 = vmatprep.subr.mxu0 0.0
    %3789 = vmatpush1.msra.mxu0 0.0
    %3790 = vmatprep.subr.mxu0 0.0
    %3791 = vmatpush1.msra.mxu0 0.0
    %3792 = vmatprep.subr.mxu0 0.0
    %3793 = vmatpush1.msra.mxu0 0.0
    %3794 = vmatprep.subr.mxu0 0.0
    %3795 = vmatpush1.msra.mxu0 0.0
    %3796 = vmatprep.subr.mxu0 0.0
    %3797 = vmatpush1.msra.mxu0 0.0
    %3798 = vmatprep.subr.mxu0 0.0
    %3799 = vmatpush1.msra.mxu0 0.0
    %3800 = vmatprep.subr.mxu0 0.0
    %3801 = vmatpush1.msra.mxu0 0.0
    %3802 = vmatprep.subr.mxu0 0.0
    %3803 = vmatpush1.msra.mxu0 0.0
    %3804 = vmatprep.subr.mxu0 0.0
    %3805 = vmatpush1.msra.mxu0 0.0
    %3806 = vmatprep.subr.mxu0 0.0
    %3807 = vmatpush1.msra.mxu0 0.0
    %3808 = vmatprep.subr.mxu0 0.0
    %3809 = vmatpush1.msra.mxu0 0.0
    %3810 = vmatprep.subr.mxu0 0.0
    %3811 = vmatpush1.msra.mxu0 0.0
    %3812 = vmatprep.subr.mxu0 0.0
    %3813 = vmatpush1.msra.mxu0 0.0
    %3814 = vmatprep.subr.mxu0 0.0
    %3815 = vmatpush1.msra.mxu0 0.0
    %3816 = vmatprep.subr.mxu0 0.0
    %3817 = vmatpush1.msra.mxu0 0.0
    %3818 = vmatprep.subr.mxu0 0.0
    %3819 = vmatpush1.msra.mxu0 0.0
    %3820 = vmatprep.subr.mxu0 0.0
    %3821 = vmatpush1.msra.mxu0 0.0
    %3822 = vmatprep.subr.mxu0 0.0
    %3823 = vmatpush1.msra.mxu0 0.0
    %3824 = vmatprep.mubr.f32.mxu0 0.0
    %3825 = vmatmul.mubr.f32.gmra.mrb[0].mxu0 %v3758
    %v3826 = vpop.f32.mrb[0].mxu0
    %v3827 = vadd.f32 0.0, %v3826
    %v3828 = vpop.f32.mrb[0].mxu0
    %3829 = vdwg.mxu0
    %v3830 = vmax.f32 %v3753, %v3827
    %v3831 = vld [vmem:[%s9] sm:$0xff]
    %v3832 = vld [vmem:[%s9 + $0x8] sm:$0xff]
    %v3833 = vld [vmem:[%s9 + $0x10] sm:$0xff]
    %v3834 = vld [vmem:[%s9 + $0x18] sm:$0xff]
    %v3835 = vld [vmem:[%s9 + $0x20] sm:$0xff]
    %v3836 = vld [vmem:[%s9 + $0x28] sm:$0xff]
    %v3837 = vld [vmem:[%s1796] sm:$0xff]
    %v3838 = vld [vmem:[%s1796 + $0x8] sm:$0xff]
    %v3839 = vld [vmem:[%s1796 + $0x10] sm:$0xff]
    %v3840 = vld [vmem:[%s1796 + $0x18] sm:$0xff]
    %v3841 = vld [vmem:[%s1796 + $0x20] sm:$0xff]
    %v3842 = vld [vmem:[%s1796 + $0x28] sm:$0xff]
    %v3844 = vrot.slane %v3830, 1
    %v3845 = vsel %vm1805, %v3844, 0
    %3847 = vmatprep.subr.mxu0 0.0
    %3848 = vmatpush1.msra.mxu0 %v3837
    %3849 = vmatprep.subr.mxu0 0.0
    %3850 = vmatpush1.msra.mxu0 %v3838
    %3851 = vmatprep.subr.mxu0 0.0
    %3852 = vmatpush1.msra.mxu0 %v3839
    %3853 = vmatprep.subr.mxu0 0.0
    %3854 = vmatpush1.msra.mxu0 %v3840
    %3855 = vmatprep.subr.mxu0 0.0
    %3856 = vmatpush1.msra.mxu0 %v3841
    %3857 = vmatprep.subr.mxu0 0.0
    %3858 = vmatpush1.msra.mxu0 %v3842
    %3859 = vmatprep.subr.mxu0 0.0
    %3860 = vmatpush1.msra.mxu0 0.0
    %3861 = vmatprep.subr.mxu0 0.0
    %3862 = vmatpush1.msra.mxu0 0.0
    %3863 = vmatprep.subr.mxu0 0.0
    %3864 = vmatpush1.msra.mxu0 0.0
    %3865 = vmatprep.subr.mxu0 0.0
    %3866 = vmatpush1.msra.mxu0 0.0
    %3867 = vmatprep.subr.mxu0 0.0
    %3868 = vmatpush1.msra.mxu0 0.0
    %3869 = vmatprep.subr.mxu0 0.0
    %3870 = vmatpush1.msra.mxu0 0.0
    %3871 = vmatprep.subr.mxu0 0.0
    %3872 = vmatpush1.msra.mxu0 0.0
    %3873 = vmatprep.subr.mxu0 0.0
    %3874 = vmatpush1.msra.mxu0 0.0
    %3875 = vmatprep.subr.mxu0 0.0
    %3876 = vmatpush1.msra.mxu0 0.0
    %3877 = vmatprep.subr.mxu0 0.0
    %3878 = vmatpush1.msra.mxu0 0.0
    %3879 = vmatprep.subr.mxu0 0.0
    %3880 = vmatpush1.msra.mxu0 0.0
    %3881 = vmatprep.subr.mxu0 0.0
    %3882 = vmatpush1.msra.mxu0 0.0
    %3883 = vmatprep.subr.mxu0 0.0
    %3884 = vmatpush1.msra.mxu0 0.0
    %3885 = vmatprep.subr.mxu0 0.0
    %3886 = vmatpush1.msra.mxu0 0.0
    %3887 = vmatprep.subr.mxu0 0.0
    %3888 = vmatpush1.msra.mxu0 0.0
    %3889 = vmatprep.subr.mxu0 0.0
    %3890 = vmatpush1.msra.mxu0 0.0
    %3891 = vmatprep.subr.mxu0 0.0
    %3892 = vmatpush1.msra.mxu0 0.0
    %3893 = vmatprep.subr.mxu0 0.0
    %3894 = vmatpush1.msra.mxu0 0.0
    %3895 = vmatprep.subr.mxu0 0.0
    %3896 = vmatpush1.msra.mxu0 0.0
    %3897 = vmatprep.subr.mxu0 0.0
    %3898 = vmatpush1.msra.mxu0 0.0
    %3899 = vmatprep.subr.mxu0 0.0
    %3900 = vmatpush1.msra.mxu0 0.0
    %3901 = vmatprep.subr.mxu0 0.0
    %3902 = vmatpush1.msra.mxu0 0.0
    %3903 = vmatprep.subr.mxu0 0.0
    %3904 = vmatpush1.msra.mxu0 0.0
    %3905 = vmatprep.subr.mxu0 0.0
    %3906 = vmatpush1.msra.mxu0 0.0
    %3907 = vmatprep.subr.mxu0 0.0
    %3908 = vmatpush1.msra.mxu0 0.0
    %3909 = vmatprep.subr.mxu0 0.0
    %3910 = vmatpush1.msra.mxu0 0.0
    %3911 = vmatprep.mubr.f32.mxu0 0.0
    %3912 = vmatmul.mubr.f32.gmra.mrb[0].mxu0 %v3845
    %v3913 = vpop.f32.mrb[0].mxu0
    %v3914 = vadd.f32 0.0, %v3913
    %v3915 = vpop.f32.mrb[0].mxu0
    %3916 = vdwg.mxu0
    %v3917 = vsel %vm1805, %v3830, 0
    %3919 = vmatprep.subr.mxu0 0.0
    %3920 = vmatpush1.msra.mxu0 %v3831
    %3921 = vmatprep.subr.mxu0 0.0
    %3922 = vmatpush1.msra.mxu0 %v3832
    %3923 = vmatprep.subr.mxu0 0.0
    %3924 = vmatpush1.msra.mxu0 %v3833
    %3925 = vmatprep.subr.mxu0 0.0
    %3926 = vmatpush1.msra.mxu0 %v3834
    %3927 = vmatprep.subr.mxu0 0.0
    %3928 = vmatpush1.msra.mxu0 %v3835
    %3929 = vmatprep.subr.mxu0 0.0
    %3930 = vmatpush1.msra.mxu0 %v3836
    %3931 = vmatprep.subr.mxu0 0.0
    %3932 = vmatpush1.msra.mxu0 0.0
    %3933 = vmatprep.subr.mxu0 0.0
    %3934 = vmatpush1.msra.mxu0 0.0
    %3935 = vmatprep.subr.mxu0 0.0
    %3936 = vmatpush1.msra.mxu0 0.0
    %3937 = vmatprep.subr.mxu0 0.0
    %3938 = vmatpush1.msra.mxu0 0.0
    %3939 = vmatprep.subr.mxu0 0.0
    %3940 = vmatpush1.msra.mxu0 0.0
    %3941 = vmatprep.subr.mxu0 0.0
    %3942 = vmatpush1.msra.mxu0 0.0
    %3943 = vmatprep.subr.mxu0 0.0
    %3944 = vmatpush1.msra.mxu0 0.0
    %3945 = vmatprep.subr.mxu0 0.0
    %3946 = vmatpush1.msra.mxu0 0.0
    %3947 = vmatprep.subr.mxu0 0.0
    %3948 = vmatpush1.msra.mxu0 0.0
    %3949 = vmatprep.subr.mxu0 0.0
    %3950 = vmatpush1.msra.mxu0 0.0
    %3951 = vmatprep.subr.mxu0 0.0
    %3952 = vmatpush1.msra.mxu0 0.0
    %3953 = vmatprep.subr.mxu0 0.0
    %3954 = vmatpush1.msra.mxu0 0.0
    %3955 = vmatprep.subr.mxu0 0.0
    %3956 = vmatpush1.msra.mxu0 0.0
    %3957 = vmatprep.subr.mxu0 0.0
    %3958 = vmatpush1.msra.mxu0 0.0
    %3959 = vmatprep.subr.mxu0 0.0
    %3960 = vmatpush1.msra.mxu0 0.0
    %3961 = vmatprep.subr.mxu0 0.0
    %3962 = vmatpush1.msra.mxu0 0.0
    %3963 = vmatprep.subr.mxu0 0.0
    %3964 = vmatpush1.msra.mxu0 0.0
    %3965 = vmatprep.subr.mxu0 0.0
    %3966 = vmatpush1.msra.mxu0 0.0
    %3967 = vmatprep.subr.mxu0 0.0
    %3968 = vmatpush1.msra.mxu0 0.0
    %3969 = vmatprep.subr.mxu0 0.0
    %3970 = vmatpush1.msra.mxu0 0.0
    %3971 = vmatprep.subr.mxu0 0.0
    %3972 = vmatpush1.msra.mxu0 0.0
    %3973 = vmatprep.subr.mxu0 0.0
    %3974 = vmatpush1.msra.mxu0 0.0
    %3975 = vmatprep.subr.mxu0 0.0
    %3976 = vmatpush1.msra.mxu0 0.0
    %3977 = vmatprep.subr.mxu0 0.0
    %3978 = vmatpush1.msra.mxu0 0.0
    %3979 = vmatprep.subr.mxu0 0.0
    %3980 = vmatpush1.msra.mxu0 0.0
    %3981 = vmatprep.subr.mxu0 0.0
    %3982 = vmatpush1.msra.mxu0 0.0
    %3983 = vmatprep.mubr.f32.mxu0 0.0
    %3984 = vmatmul.mubr.f32.gmra.mrb[0].mxu0 %v3917
    %v3985 = vpop.f32.mrb[0].mxu0
    %v3986 = vadd.f32 %v3914, %v3985
    %v3987 = vpop.f32.mrb[0].mxu0
    %3988 = vdwg.mxu0
    %v3989 = vld [vmem:[%s1950] sm:$0xff]
    %v3990 = vld [vmem:[%s1950 + $0x8] sm:$0xff]
    %v3991 = vld [vmem:[%s1950 + $0x10] sm:$0xff]
    %v3992 = vld [vmem:[%s1950 + $0x18] sm:$0xff]
    %v3993 = vld [vmem:[%s1950 + $0x20] sm:$0xff]
    %v3994 = vld [vmem:[%s1950 + $0x28] sm:$0xff]
    %v3995 = vrot.slane %v3830, 2
    %v3996 = vsel %vm1805, %v3995, 0
    %3998 = vmatprep.subr.mxu0 0.0
    %3999 = vmatpush1.msra.mxu0 %v3989
    %4000 = vmatprep.subr.mxu0 0.0
    %4001 = vmatpush1.msra.mxu0 %v3990
    %4002 = vmatprep.subr.mxu0 0.0
    %4003 = vmatpush1.msra.mxu0 %v3991
    %4004 = vmatprep.subr.mxu0 0.0
    %4005 = vmatpush1.msra.mxu0 %v3992
    %4006 = vmatprep.subr.mxu0 0.0
    %4007 = vmatpush1.msra.mxu0 %v3993
    %4008 = vmatprep.subr.mxu0 0.0
    %4009 = vmatpush1.msra.mxu0 %v3994
    %4010 = vmatprep.subr.mxu0 0.0
    %4011 = vmatpush1.msra.mxu0 0.0
    %4012 = vmatprep.subr.mxu0 0.0
    %4013 = vmatpush1.msra.mxu0 0.0
    %4014 = vmatprep.subr.mxu0 0.0
    %4015 = vmatpush1.msra.mxu0 0.0
    %4016 = vmatprep.subr.mxu0 0.0
    %4017 = vmatpush1.msra.mxu0 0.0
    %4018 = vmatprep.subr.mxu0 0.0
    %4019 = vmatpush1.msra.mxu0 0.0
    %4020 = vmatprep.subr.mxu0 0.0
    %4021 = vmatpush1.msra.mxu0 0.0
    %4022 = vmatprep.subr.mxu0 0.0
    %4023 = vmatpush1.msra.mxu0 0.0
    %4024 = vmatprep.subr.mxu0 0.0
    %4025 = vmatpush1.msra.mxu0 0.0
    %4026 = vmatprep.subr.mxu0 0.0
    %4027 = vmatpush1.msra.mxu0 0.0
    %4028 = vmatprep.subr.mxu0 0.0
    %4029 = vmatpush1.msra.mxu0 0.0
    %4030 = vmatprep.subr.mxu0 0.0
    %4031 = vmatpush1.msra.mxu0 0.0
    %4032 = vmatprep.subr.mxu0 0.0
    %4033 = vmatpush1.msra.mxu0 0.0
    %4034 = vmatprep.subr.mxu0 0.0
    %4035 = vmatpush1.msra.mxu0 0.0
    %4036 = vmatprep.subr.mxu0 0.0
    %4037 = vmatpush1.msra.mxu0 0.0
    %4038 = vmatprep.subr.mxu0 0.0
    %4039 = vmatpush1.msra.mxu0 0.0
    %4040 = vmatprep.subr.mxu0 0.0
    %4041 = vmatpush1.msra.mxu0 0.0
    %4042 = vmatprep.subr.mxu0 0.0
    %4043 = vmatpush1.msra.mxu0 0.0
    %4044 = vmatprep.subr.mxu0 0.0
    %4045 = vmatpush1.msra.mxu0 0.0
    %4046 = vmatprep.subr.mxu0 0.0
    %4047 = vmatpush1.msra.mxu0 0.0
    %4048 = vmatprep.subr.mxu0 0.0
    %4049 = vmatpush1.msra.mxu0 0.0
    %4050 = vmatprep.subr.mxu0 0.0
    %4051 = vmatpush1.msra.mxu0 0.0
    %4052 = vmatprep.subr.mxu0 0.0
    %4053 = vmatpush1.msra.mxu0 0.0
    %4054 = vmatprep.subr.mxu0 0.0
    %4055 = vmatpush1.msra.mxu0 0.0
    %4056 = vmatprep.subr.mxu0 0.0
    %4057 = vmatpush1.msra.mxu0 0.0
    %4058 = vmatprep.subr.mxu0 0.0
    %4059 = vmatpush1.msra.mxu0 0.0
    %4060 = vmatprep.subr.mxu0 0.0
    %4061 = vmatpush1.msra.mxu0 0.0
    %4062 = vmatprep.mubr.f32.mxu0 0.0
    %4063 = vmatmul.mubr.f32.gmra.mrb[0].mxu0 %v3996
    %v4064 = vpop.f32.mrb[0].mxu0
    %v4065 = vadd.f32 0.0, %v4064
    %v4066 = vpop.f32.mrb[0].mxu0
    %4067 = vdwg.mxu0
    %v4068 = vadd.f32 %v3986, %v4065
    %v4069 = vld [vmem:[%s2031] sm:$0xff]
    %v4070 = vld [vmem:[%s2031 + $0x8] sm:$0xff]
    %v4071 = vld [vmem:[%s2031 + $0x10] sm:$0xff]
    %v4072 = vld [vmem:[%s2031 + $0x18] sm:$0xff]
    %v4073 = vld [vmem:[%s2031 + $0x20] sm:$0xff]
    %v4074 = vld [vmem:[%s2031 + $0x28] sm:$0xff]
    %v4075 = vrot.slane %v3830, 3
    %v4076 = vsel %vm1805, %v4075, 0
    %4078 = vmatprep.subr.mxu0 0.0
    %4079 = vmatpush1.msra.mxu0 %v4069
    %4080 = vmatprep.subr.mxu0 0.0
    %4081 = vmatpush1.msra.mxu0 %v4070
    %4082 = vmatprep.subr.mxu0 0.0
    %4083 = vmatpush1.msra.mxu0 %v4071
    %4084 = vmatprep.subr.mxu0 0.0
    %4085 = vmatpush1.msra.mxu0 %v4072
    %4086 = vmatprep.subr.mxu0 0.0
    %4087 = vmatpush1.msra.mxu0 %v4073
    %4088 = vmatprep.subr.mxu0 0.0
    %4089 = vmatpush1.msra.mxu0 %v4074
    %4090 = vmatprep.subr.mxu0 0.0
    %4091 = vmatpush1.msra.mxu0 0.0
    %4092 = vmatprep.subr.mxu0 0.0
    %4093 = vmatpush1.msra.mxu0 0.0
    %4094 = vmatprep.subr.mxu0 0.0
    %4095 = vmatpush1.msra.mxu0 0.0
    %4096 = vmatprep.subr.mxu0 0.0
    %4097 = vmatpush1.msra.mxu0 0.0
    %4098 = vmatprep.subr.mxu0 0.0
    %4099 = vmatpush1.msra.mxu0 0.0
    %4100 = vmatprep.subr.mxu0 0.0
    %4101 = vmatpush1.msra.mxu0 0.0
    %4102 = vmatprep.subr.mxu0 0.0
    %4103 = vmatpush1.msra.mxu0 0.0
    %4104 = vmatprep.subr.mxu0 0.0
    %4105 = vmatpush1.msra.mxu0 0.0
    %4106 = vmatprep.subr.mxu0 0.0
    %4107 = vmatpush1.msra.mxu0 0.0
    %4108 = vmatprep.subr.mxu0 0.0
    %4109 = vmatpush1.msra.mxu0 0.0
    %4110 = vmatprep.subr.mxu0 0.0
    %4111 = vmatpush1.msra.mxu0 0.0
    %4112 = vmatprep.subr.mxu0 0.0
    %4113 = vmatpush1.msra.mxu0 0.0
    %4114 = vmatprep.subr.mxu0 0.0
    %4115 = vmatpush1.msra.mxu0 0.0
    %4116 = vmatprep.subr.mxu0 0.0
    %4117 = vmatpush1.msra.mxu0 0.0
    %4118 = vmatprep.subr.mxu0 0.0
    %4119 = vmatpush1.msra.mxu0 0.0
    %4120 = vmatprep.subr.mxu0 0.0
    %4121 = vmatpush1.msra.mxu0 0.0
    %4122 = vmatprep.subr.mxu0 0.0
    %4123 = vmatpush1.msra.mxu0 0.0
    %4124 = vmatprep.subr.mxu0 0.0
    %4125 = vmatpush1.msra.mxu0 0.0
    %4126 = vmatprep.subr.mxu0 0.0
    %4127 = vmatpush1.msra.mxu0 0.0
    %4128 = vmatprep.subr.mxu0 0.0
    %4129 = vmatpush1.msra.mxu0 0.0
    %4130 = vmatprep.subr.mxu0 0.0
    %4131 = vmatpush1.msra.mxu0 0.0
    %4132 = vmatprep.subr.mxu0 0.0
    %4133 = vmatpush1.msra.mxu0 0.0
    %4134 = vmatprep.subr.mxu0 0.0
    %4135 = vmatpush1.msra.mxu0 0.0
    %4136 = vmatprep.subr.mxu0 0.0
    %4137 = vmatpush1.msra.mxu0 0.0
    %4138 = vmatprep.subr.mxu0 0.0
    %4139 = vmatpush1.msra.mxu0 0.0
    %4140 = vmatprep.subr.mxu0 0.0
    %4141 = vmatpush1.msra.mxu0 0.0
    %4142 = vmatprep.mubr.f32.mxu0 0.0
    %4143 = vmatmul.mubr.f32.gmra.mrb[0].mxu0 %v4076
    %v4144 = vpop.f32.mrb[0].mxu0
    %v4145 = vadd.f32 0.0, %v4144
    %v4146 = vpop.f32.mrb[0].mxu0
    %4147 = vdwg.mxu0
    %v4148 = vadd.f32 %v4068, %v4145
    %4149 = vst [vmem:[#allocation2 + $0x1] sm:$0x1] %v4148
    %v4150 = vld [vmem:[#allocation2] sm:$0x3]
    %v4151 = vld [vmem:[%s10] sm:$0x1]
    %v4153 = vlaneseq
    %v4154 = vshrl.u32 %v4153, 7
    %v4155 = vsub.s32 0, %v4154
    %v4156 = vrot.slane %v4151, %v4155
    %v4158 = vadd.f32 %v4150, %v4156
    %v4159 = vmax.f32 %v4158, 0.0
    %v4160 = vld [vmem:[%s11] sm:$0xff]
    %v4161 = vld [vmem:[%s11 + $0x8] sm:$0xff]
    %v4162 = vld [vmem:[%s11 + $0x10] sm:$0xff]
    %v4163 = vld [vmem:[%s11 + $0x18] sm:$0xff]
    %v4164 = vld [vmem:[%s11 + $0x20] sm:$0xff]
    %v4165 = vld [vmem:[%s11 + $0x28] sm:$0xff]
    %v4166 = vld [vmem:[%s11 + $0x30] sm:$0xff]
    %v4167 = vld [vmem:[%s11 + $0x38] sm:$0xff]
    %v4168 = vld [vmem:[%s11 + $0x40] sm:$0xff]
    %v4169 = vld [vmem:[%s11 + $0x48] sm:$0xff]
    %v4170 = vld [vmem:[%s11 + $0x50] sm:$0xff]
    %v4171 = vld [vmem:[%s11 + $0x58] sm:$0xff]
    %v4172 = vld [vmem:[%s11 + $0x60] sm:$0xff]
    %v4173 = vld [vmem:[%s11 + $0x68] sm:$0xff]
    %v4174 = vld [vmem:[%s11 + $0x70] sm:$0xff]
    %v4175 = vld [vmem:[%s11 + $0x78] sm:$0xff]
    %v4176 = vld [vmem:[%s12] sm:$0x1]
    %v4178 = vlaneseq
    %v4179 = vshrl.u32 %v4178, 7
    %v4180 = vsub.s32 0, %v4179
    %v4181 = vrot.slane %v4176, %v4180
    %4183 = vmatprep.subr.mxu0 0.0
    %4184 = vmatpush1.msra.mxu0 %v4160
    %4185 = vmatprep.subr.mxu0 0.0
    %4186 = vmatpush1.msra.mxu0 %v4161
    %4187 = vmatprep.subr.mxu0 0.0
    %4188 = vmatpush1.msra.mxu0 %v4162
    %4189 = vmatprep.subr.mxu0 0.0
    %4190 = vmatpush1.msra.mxu0 %v4163
    %4191 = vmatprep.subr.mxu0 0.0
    %4192 = vmatpush1.msra.mxu0 %v4164
    %4193 = vmatprep.subr.mxu0 0.0
    %4194 = vmatpush1.msra.mxu0 %v4165
    %4195 = vmatprep.subr.mxu0 0.0
    %4196 = vmatpush1.msra.mxu0 %v4166
    %4197 = vmatprep.subr.mxu0 0.0
    %4198 = vmatpush1.msra.mxu0 %v4167
    %4199 = vmatprep.subr.mxu0 0.0
    %4200 = vmatpush1.msra.mxu0 %v4168
    %4201 = vmatprep.subr.mxu0 0.0
    %4202 = vmatpush1.msra.mxu0 %v4169
    %4203 = vmatprep.subr.mxu0 0.0
    %4204 = vmatpush1.msra.mxu0 %v4170
    %4205 = vmatprep.subr.mxu0 0.0
    %4206 = vmatpush1.msra.mxu0 %v4171
    %4207 = vmatprep.subr.mxu0 0.0
    %4208 = vmatpush1.msra.mxu0 %v4172
    %4209 = vmatprep.subr.mxu0 0.0
    %4210 = vmatpush1.msra.mxu0 %v4173
    %4211 = vmatprep.subr.mxu0 0.0
    %4212 = vmatpush1.msra.mxu0 %v4174
    %4213 = vmatprep.subr.mxu0 0.0
    %4214 = vmatpush1.msra.mxu0 %v4175
    %4215 = vmatprep.subr.mxu0 0.0
    %4216 = vmatpush1.msra.mxu0 0.0
    %4217 = vmatprep.subr.mxu0 0.0
    %4218 = vmatpush1.msra.mxu0 0.0
    %4219 = vmatprep.subr.mxu0 0.0
    %4220 = vmatpush1.msra.mxu0 0.0
    %4221 = vmatprep.subr.mxu0 0.0
    %4222 = vmatpush1.msra.mxu0 0.0
    %4223 = vmatprep.subr.mxu0 0.0
    %4224 = vmatpush1.msra.mxu0 0.0
    %4225 = vmatprep.subr.mxu0 0.0
    %4226 = vmatpush1.msra.mxu0 0.0
    %4227 = vmatprep.subr.mxu0 0.0
    %4228 = vmatpush1.msra.mxu0 0.0
    %4229 = vmatprep.subr.mxu0 0.0
    %4230 = vmatpush1.msra.mxu0 0.0
    %4231 = vmatprep.subr.mxu0 0.0
    %4232 = vmatpush1.msra.mxu0 0.0
    %4233 = vmatprep.subr.mxu0 0.0
    %4234 = vmatpush1.msra.mxu0 0.0
    %4235 = vmatprep.subr.mxu0 0.0
    %4236 = vmatpush1.msra.mxu0 0.0
    %4237 = vmatprep.subr.mxu0 0.0
    %4238 = vmatpush1.msra.mxu0 0.0
    %4239 = vmatprep.subr.mxu0 0.0
    %4240 = vmatpush1.msra.mxu0 0.0
    %4241 = vmatprep.subr.mxu0 0.0
    %4242 = vmatpush1.msra.mxu0 0.0
    %4243 = vmatprep.subr.mxu0 0.0
    %4244 = vmatpush1.msra.mxu0 0.0
    %4245 = vmatprep.subr.mxu0 0.0
    %4246 = vmatpush1.msra.mxu0 0.0
    %4247 = vmatprep.mubr.f32.mxu0 0.0
    %4248 = vmatmul.mubr.f32.gmra.mrb[0].mxu0 %v4159
    %v4249 = vpop.f32.mrb[0].mxu0
    %v4250 = vadd.f32 %v4181, %v4249
    %v4251 = vpop.f32.mrb[0].mxu0
    %4252 = vdwg.mxu0
    %v4253 = vmax.f32 %v4250, 0.0
    %v4254 = vld [vmem:[%s13] sm:$0xff]
    %v4255 = vld [vmem:[%s13 + $0x8] sm:$0xff]
    %v4256 = vld [vmem:[%s13 + $0x10] sm:$0xff]
    %v4257 = vld [vmem:[%s13 + $0x18] sm:$0xff]
    %v4258 = vld [vmem:[%s13 + $0x20] sm:$0xff]
    %v4259 = vld [vmem:[%s13 + $0x28] sm:$0xff]
    %v4260 = vld [vmem:[%s13 + $0x30] sm:$0xff]
    %v4261 = vld [vmem:[%s13 + $0x38] sm:$0xff]
    %v4262 = vld [vmem:[%s13 + $0x40] sm:$0xff]
    %v4263 = vld [vmem:[%s13 + $0x48] sm:$0xff]
    %v4264 = vld [vmem:[%s13 + $0x50] sm:$0xff]
    %v4265 = vld [vmem:[%s13 + $0x58] sm:$0xff]
    %v4266 = vld [vmem:[%s13 + $0x60] sm:$0xff]
    %v4267 = vld [vmem:[%s13 + $0x68] sm:$0xff]
    %v4268 = vld [vmem:[%s13 + $0x70] sm:$0xff]
    %v4269 = vld [vmem:[%s13 + $0x78] sm:$0xff]
    %v4270 = vld [vmem:[%s14] sm:$0x1]
    %v4272 = vlaneseq
    %v4273 = vshrl.u32 %v4272, 7
    %v4274 = vsub.s32 0, %v4273
    %v4275 = vrot.slane %v4270, %v4274
    %4277 = vmatprep.subr.mxu0 0.0
    %4278 = vmatpush1.msra.mxu0 %v4254
    %4279 = vmatprep.subr.mxu0 0.0
    %4280 = vmatpush1.msra.mxu0 %v4255
    %4281 = vmatprep.subr.mxu0 0.0
    %4282 = vmatpush1.msra.mxu0 %v4256
    %4283 = vmatprep.subr.mxu0 0.0
    %4284 = vmatpush1.msra.mxu0 %v4257
    %4285 = vmatprep.subr.mxu0 0.0
    %4286 = vmatpush1.msra.mxu0 %v4258
    %4287 = vmatprep.subr.mxu0 0.0
    %4288 = vmatpush1.msra.mxu0 %v4259
    %4289 = vmatprep.subr.mxu0 0.0
    %4290 = vmatpush1.msra.mxu0 %v4260
    %4291 = vmatprep.subr.mxu0 0.0
    %4292 = vmatpush1.msra.mxu0 %v4261
    %4293 = vmatprep.subr.mxu0 0.0
    %4294 = vmatpush1.msra.mxu0 %v4262
    %4295 = vmatprep.subr.mxu0 0.0
    %4296 = vmatpush1.msra.mxu0 %v4263
    %4297 = vmatprep.subr.mxu0 0.0
    %4298 = vmatpush1.msra.mxu0 %v4264
    %4299 = vmatprep.subr.mxu0 0.0
    %4300 = vmatpush1.msra.mxu0 %v4265
    %4301 = vmatprep.subr.mxu0 0.0
    %4302 = vmatpush1.msra.mxu0 %v4266
    %4303 = vmatprep.subr.mxu0 0.0
    %4304 = vmatpush1.msra.mxu0 %v4267
    %4305 = vmatprep.subr.mxu0 0.0
    %4306 = vmatpush1.msra.mxu0 %v4268
    %4307 = vmatprep.subr.mxu0 0.0
    %4308 = vmatpush1.msra.mxu0 %v4269
    %4309 = vmatprep.subr.mxu0 0.0
    %4310 = vmatpush1.msra.mxu0 0.0
    %4311 = vmatprep.subr.mxu0 0.0
    %4312 = vmatpush1.msra.mxu0 0.0
    %4313 = vmatprep.subr.mxu0 0.0
    %4314 = vmatpush1.msra.mxu0 0.0
    %4315 = vmatprep.subr.mxu0 0.0
    %4316 = vmatpush1.msra.mxu0 0.0
    %4317 = vmatprep.subr.mxu0 0.0
    %4318 = vmatpush1.msra.mxu0 0.0
    %4319 = vmatprep.subr.mxu0 0.0
    %4320 = vmatpush1.msra.mxu0 0.0
    %4321 = vmatprep.subr.mxu0 0.0
    %4322 = vmatpush1.msra.mxu0 0.0
    %4323 = vmatprep.subr.mxu0 0.0
    %4324 = vmatpush1.msra.mxu0 0.0
    %4325 = vmatprep.subr.mxu0 0.0
    %4326 = vmatpush1.msra.mxu0 0.0
    %4327 = vmatprep.subr.mxu0 0.0
    %4328 = vmatpush1.msra.mxu0 0.0
    %4329 = vmatprep.subr.mxu0 0.0
    %4330 = vmatpush1.msra.mxu0 0.0
    %4331 = vmatprep.subr.mxu0 0.0
    %4332 = vmatpush1.msra.mxu0 0.0
    %4333 = vmatprep.subr.mxu0 0.0
    %4334 = vmatpush1.msra.mxu0 0.0
    %4335 = vmatprep.subr.mxu0 0.0
    %4336 = vmatpush1.msra.mxu0 0.0
    %4337 = vmatprep.subr.mxu0 0.0
    %4338 = vmatpush1.msra.mxu0 0.0
    %4339 = vmatprep.subr.mxu0 0.0
    %4340 = vmatpush1.msra.mxu0 0.0
    %4341 = vmatprep.mubr.f32.mxu0 0.0
    %4342 = vmatmul.mubr.f32.gmra.mrb[0].mxu0 %v4253
    %v4343 = vpop.f32.mrb[0].mxu0
    %v4344 = vadd.f32 %v4275, %v4343
    %v4345 = vpop.f32.mrb[0].mxu0
    %4346 = vdwg.mxu0
    %4347 = vst [vmem:[#allocation3] sm:$0x3] %v4344
    // Predicated region
    $region62: #{model_fashion_forward.1} parent=1 // pred_check
      _
    $region63: #{model_fashion_forward.1} parent=1 // pred_check_branch
      %4349 = sbr.rel (0) target = $region65
    $region64: #{model_fashion_forward.1} parent=1 // pred_region
      %s4351 = ssub.s32 32, 32
      %4352 = vsyncadd [#allocation4], %s4351
      %s4354 = sshll.u32 [#allocation3], 4
      %s4355 = int_to_ptr.vmem [resolvable:$true] %s4354
      %4357 = dma.vmem_to_hbm [thread:$0]  %s4355, 32, %s15, [#allocation4]
    $region65: #{model_fashion_forward.1} parent=1 // pred_fallthru
      _
    // Predicated region
    $region66: #{model_fashion_forward.1} parent=1 // pred_check
      _
    $region67: #{model_fashion_forward.1} parent=1 // pred_check_branch
      %4359 = sbr.rel (0) target = $region69
    $region68: #{model_fashion_forward.1} parent=1 // pred_region
      %4360 = dma.done [#allocation4], 32
    $region69: #{model_fashion_forward.1} parent=1 // pred_fallthru
      _
    %4361 = vsyncpa [#allocation4], 1

</llo_original>
